<compile_context>
chip_gen: v7x
topology: tpu7x:2x2x1
jax: 0.10.0
libtpu: 0.0.40
codegen_flags: <defaults>
</compile_context>

<pallas_src>
import numpy as np

import jax
import jax.numpy as jnp
from jax import lax
from jax.experimental import pallas as pl
from jax.experimental.pallas import tpu as pltpu


# ---------------------------------------------------------------------------
# Constant-matrix builders (run in the XLA wrapper; exact f32 element-wise ops)
# ---------------------------------------------------------------------------

def _row_select_conv(h):
    """R[ky, oh, ih]: ih == oh + ky - 1 (3x3 / stride 1 / pad 1; pad rows -> 0)."""
    r = np.zeros((3, h, h), np.float32)
    for ky in range(3):
        for oh in range(h):
            ih = oh + ky - 1
            if 0 <= ih < h:
                r[ky, oh, ih] = 1.0
    return jnp.asarray(r)


def _row_select_convt(h_in):
    """R[ky, oh, ih] for ConvTranspose2d(3, s=2, p=1, op=1): the dilated+padded
    row (oh + ky) holds input row ih iff oh + ky == 2*ih + 1."""
    h_out = 2 * h_in
    r = np.zeros((3, h_out, h_in), np.float32)
    for ky in range(3):
        for oh in range(h_out):
            u = oh + ky - 1
            if u >= 0 and u % 2 == 0 and u // 2 < h_in:
                r[ky, oh, u // 2] = 1.0
    return jnp.asarray(r)


def _band_conv(w_pt, w_in):
    """Banded weights for Conv2d. w_pt: (Cout, Cin, 3, 3).
    Returns (3, w_in*Cin, w_in*Cout) with
      M[ky, u*Cin+ci, w*Cout+co] = W[co, ci, ky, u-w+1]  (0 outside the band)."""
    cout, cin = int(w_pt.shape[0]), int(w_pt.shape[1])
    w_out = w_in
    wt = jnp.transpose(w_pt, (2, 3, 1, 0))                      # (ky, kx, cin, cout)
    u = np.arange(w_in)[:, None, None]
    w = np.arange(w_out)[None, :, None]
    kx = np.arange(3)[None, None, :]
    sel = jnp.asarray((u == w + kx - 1).astype(np.float32))     # (w_in, w_out, 3)
    wt_t = jnp.transpose(wt, (0, 2, 3, 1))                      # (ky, cin, cout, kx)
    m = (sel[None, :, None, :, None, :] *
         wt_t[:, None, :, None, :, :]).sum(axis=-1)             # (3, w_in, cin, w_out, cout)
    return m.reshape(3, w_in * cin, w_out * cout)


def _band_convt(w_pt, w_in):
    """Banded weights for ConvTranspose2d(3, s=2, p=1, op=1). w_pt: (Cin, Cout, 3, 3).
    Returns (3, w_in*Cin, 2*w_in*Cout); stride-2 dilation + spatial flip folded in."""
    cin, cout = int(w_pt.shape[0]), int(w_pt.shape[1])
    w_out = 2 * w_in
    wf = jnp.transpose(w_pt[:, :, ::-1, ::-1], (2, 3, 0, 1))    # flipped, (ky, kx, cin, cout)
    j = np.arange(w_in)[:, None, None]
    w = np.arange(w_out)[None, :, None]
    kx = np.arange(3)[None, None, :]
    sel = jnp.asarray((2 * j + 1 == w + kx).astype(np.float32))  # (w_in, w_out, 3)
    wf_t = jnp.transpose(wf, (0, 2, 3, 1))                       # (ky, cin, cout, kx)
    m = (sel[None, :, None, :, None, :] *
         wf_t[:, None, :, None, :, :]).sum(axis=-1)
    return m.reshape(3, w_in * cin, w_out * cout)


def _pool_row_sel(h_in):
    h_out = h_in // 2
    e = np.zeros((h_out, h_in), np.float32)
    o = np.zeros((h_out, h_in), np.float32)
    for a in range(h_out):
        e[a, 2 * a] = 1.0
        o[a, 2 * a + 1] = 1.0
    return jnp.asarray(e), jnp.asarray(o)


def _pool_col_sel(w_in, c):
    w_out = w_in // 2
    se = np.zeros((w_in * c, w_out * c), np.float32)
    so = np.zeros((w_in * c, w_out * c), np.float32)
    for b in range(w_out):
        for cc in range(c):
            se[(2 * b) * c + cc, b * c + cc] = 1.0
            so[(2 * b + 1) * c + cc, b * c + cc] = 1.0
    return jnp.asarray(se), jnp.asarray(so)


def _tile_bias(b, w_out):
    """Bias laid out to match the (H, W*Cout) activation layout."""
    return jnp.tile(b, (w_out,)).reshape(1, w_out * int(b.shape[0])).astype(jnp.float32)


# ---------------------------------------------------------------------------
# The single fused Pallas kernel (one image per grid step)
# ---------------------------------------------------------------------------

def _autoencoder_kernel(x_ref,
                        r1, m1, b1, pe1, po1, se1, so1,
                        r2, m2, b2, pe2, po2, se2, so2,
                        r3, m3, b3,
                        r4, m4, b4,
                        o_ref):
    f32 = jnp.float32

    def conv_like(x, r_ref, m_ref, b_ref, relu):
        # y = sum_ky (R_ky @ x) @ M_ky + bias
        # The three kx taps, the zero padding (or stride-2 dilation + flip for
        # the transposed convs) all live inside the constant R / M matrices.
        acc = None
        for ky in range(3):
            xk = jnp.dot(r_ref[ky], x, preferred_element_type=f32)
            t = jnp.dot(xk, m_ref[ky], preferred_element_type=f32)
            acc = t if acc is None else acc + t
        acc = acc + b_ref[...]
        if relu:
            acc = jnp.maximum(acc, 0.0)
        return acc

    def maxpool(x, pe_ref, po_ref, se_ref, so_ref):
        # 2x2 / stride-2 max pool via 0/1 row / column-block selection matmuls
        # followed by element-wise VPU max.
        rmax = jnp.maximum(jnp.dot(pe_ref[...], x, preferred_element_type=f32),
                           jnp.dot(po_ref[...], x, preferred_element_type=f32))
        return jnp.maximum(jnp.dot(rmax, se_ref[...], preferred_element_type=f32),
                           jnp.dot(rmax, so_ref[...], preferred_element_type=f32))

    x = x_ref[...].astype(f32)                     # (H,   W  * 3)
    x = conv_like(x, r1, m1, b1, relu=True)         # (H,   W  * 16)
    x = maxpool(x, pe1, po1, se1, so1)              # (H/2, W/2* 16)
    x = conv_like(x, r2, m2, b2, relu=True)         # (H/2, W/2* 8)
    x = maxpool(x, pe2, po2, se2, so2)              # (H/4, W/4* 8)
    x = conv_like(x, r3, m3, b3, relu=True)         # (H/2, W/2* 16)
    x = conv_like(x, r4, m4, b4, relu=False)        # (H,   W  * 3)
    o_ref[...] = x.astype(o_ref.dtype)


# ---------------------------------------------------------------------------
# Model forward (matches ConvAutoEncoder.forward); NCHW in / NCHW out.
# ---------------------------------------------------------------------------

def conv_autoencoder_forward(x_nchw, params):
    n, c_in, h, w = x_nchw.shape
    assert c_in == 3 and h % 4 == 0 and w % 4 == 0
    h2, w2 = h // 2, w // 2
    h3, w3 = h // 4, w // 4
    c1 = int(params["enc1_w"].shape[0])            # 16
    c2 = int(params["enc2_w"].shape[0])            # 8
    c_out = int(params["dec2_w"].shape[1])         # 3

    consts = [
        # encoder conv 1: 3 -> 16 at HxW
        _row_select_conv(h),
        _band_conv(params["enc1_w"], w),
        _tile_bias(params["enc1_b"], w),
        # pool 1: HxW -> H/2 x W/2 on 16 channels
        *_pool_row_sel(h),
        *_pool_col_sel(w, c1),
        # encoder conv 2: 16 -> 8 at H/2 x W/2
        _row_select_conv(h2),
        _band_conv(params["enc2_w"], w2),
        _tile_bias(params["enc2_b"], w2),
        # pool 2: H/2 x W/2 -> H/4 x W/4 on 8 channels
        *_pool_row_sel(h2),
        *_pool_col_sel(w2, c2),
        # decoder convT 1: 8 -> 16, H/4 x W/4 -> H/2 x W/2
        _row_select_convt(h3),
        _band_convt(params["dec1_w"], w3),
        _tile_bias(params["dec1_b"], w2),
        # decoder convT 2: 16 -> 3, H/2 x W/2 -> H x W
        _row_select_convt(h2),
        _band_convt(params["dec2_w"], w2),
        _tile_bias(params["dec2_b"], w),
    ]

    # NCHW -> lane-dense (N, H, W*C)
    x2 = jnp.transpose(x_nchw, (0, 2, 3, 1)).reshape(n, h, w * c_in)

    def _const_spec(a):
        nd = a.ndim

        def idx(i):
            return (0,) * nd

        return pl.BlockSpec(a.shape, idx)

    in_specs = [pl.BlockSpec((None, h, w * c_in), lambda i: (i, 0, 0))]
    in_specs += [_const_spec(a) for a in consts]

    out = pl.pallas_call(
        _autoencoder_kernel,
        out_shape=jax.ShapeDtypeStruct((n, h, w * c_out), jnp.float32),
        grid=(n,),
        in_specs=in_specs,
        out_specs=pl.BlockSpec((None, h, w * c_out), lambda i: (i, 0, 0)),
        compiler_params=pltpu.CompilerParams(
            dimension_semantics=("parallel",)),
    )(x2, *consts)

    return jnp.transpose(out.reshape(n, h, w, c_out), (0, 3, 1, 2))


def init_params(key):
    ks = jax.random.split(key, 8)

    def u(k, shape, fan_in):
        bound = 1.0 / jnp.sqrt(jnp.float32(fan_in))
        return jax.random.uniform(k, shape, jnp.float32, -bound, bound)

    return {
        # Conv2d weights: (Cout, Cin, 3, 3)
        "enc1_w": u(ks[0], (16, 3, 3, 3), 3 * 9),
        "enc1_b": u(ks[1], (16,), 3 * 9),
        "enc2_w": u(ks[2], (8, 16, 3, 3), 16 * 9),
        "enc2_b": u(ks[3], (8,), 16 * 9),
        # ConvTranspose2d weights: (Cin, Cout, 3, 3)
        "dec1_w": u(ks[4], (8, 16, 3, 3), 8 * 9),
        "dec1_b": u(ks[5], (16,), 8 * 9),
        "dec2_w": u(ks[6], (16, 3, 3, 3), 16 * 9),
        "dec2_b": u(ks[7], (3,), 16 * 9),
    }


# ---------------------------------------------------------------------------
# Pure-JAX reference (XLA convs) for a correctness check
# ---------------------------------------------------------------------------

def _ref_forward(x_nchw, params):
    dn = ("NHWC", "HWIO", "NHWC")
    prec = lax.Precision.HIGHEST

    def conv(x, wt, b, relu):
        w_hwio = jnp.transpose(wt, (2, 3, 1, 0))
        y = lax.conv_general_dilated(x, w_hwio, (1, 1), [(1, 1), (1, 1)],
                                     dimension_numbers=dn, precision=prec) + b
        return jnp.maximum(y, 0.0) if relu else y

    def convt(x, wt, b, relu):
        w_hwio = jnp.transpose(wt[:, :, ::-1, ::-1], (2, 3, 0, 1))
        y = lax.conv_general_dilated(x, w_hwio, (1, 1), [(1, 2), (1, 2)],
                                     lhs_dilation=(2, 2), dimension_numbers=dn,
                                     precision=prec) + b
        return jnp.maximum(y, 0.0) if relu else y

    def pool(x):
        n, h, w, c = x.shape
        return x.reshape(n, h // 2, 2, w // 2, 2, c).max(axis=(2, 4))

    x = jnp.transpose(x_nchw, (0, 2, 3, 1))
    x = pool(conv(x, params["enc1_w"], params["enc1_b"], True))
    x = pool(conv(x, params["enc2_w"], params["enc2_b"], True))
    x = convt(x, params["dec1_w"], params["dec1_b"], True)
    x = convt(x, params["dec2_w"], params["dec2_b"], False)
    return jnp.transpose(x, (0, 3, 1, 2))


# ---------------------------------------------------------------------------

if __name__ == "__main__":
    key = jax.random.PRNGKey(0)
    k_x, k_p = jax.random.split(key)
    x = jax.random.normal(k_x, (2, 3, 16, 16), jnp.float32)       # NCHW, like PyTorch
    params = init_params(k_p)

    fwd = jax.jit(conv_autoencoder_forward)
    y = fwd(x, params)
    jax.block_until_ready(y)

    assert y.shape == (2, 3, 16, 16), y.shape

    y_ref = _ref_forward(x, params)
    max_err = float(jnp.max(jnp.abs(y - y_ref)))
    if max_err > 2e-3:
        raise AssertionError(f"Pallas output mismatch, max abs err = {max_err}")

    print("KERNEL_OK")
</pallas_src>

<mosaic_0001>
module attributes {stable_mosaic.version = 11 : i64} {
  func.func @_autoencoder_kernel(%arg0: i32, %arg1: memref<1x16x48xf32, #tpu.memory_space<vmem>>, %arg2: memref<3x16x16xf32, #tpu.memory_space<vmem>>, %arg3: memref<3x48x256xf32, #tpu.memory_space<vmem>>, %arg4: memref<1x256xf32, #tpu.memory_space<vmem>>, %arg5: memref<8x16xf32, #tpu.memory_space<vmem>>, %arg6: memref<8x16xf32, #tpu.memory_space<vmem>>, %arg7: memref<256x128xf32, #tpu.memory_space<vmem>>, %arg8: memref<256x128xf32, #tpu.memory_space<vmem>>, %arg9: memref<3x8x8xf32, #tpu.memory_space<vmem>>, %arg10: memref<3x128x64xf32, #tpu.memory_space<vmem>>, %arg11: memref<1x64xf32, #tpu.memory_space<vmem>>, %arg12: memref<4x8xf32, #tpu.memory_space<vmem>>, %arg13: memref<4x8xf32, #tpu.memory_space<vmem>>, %arg14: memref<64x32xf32, #tpu.memory_space<vmem>>, %arg15: memref<64x32xf32, #tpu.memory_space<vmem>>, %arg16: memref<3x8x4xf32, #tpu.memory_space<vmem>>, %arg17: memref<3x32x128xf32, #tpu.memory_space<vmem>>, %arg18: memref<1x128xf32, #tpu.memory_space<vmem>>, %arg19: memref<3x16x8xf32, #tpu.memory_space<vmem>>, %arg20: memref<3x128x48xf32, #tpu.memory_space<vmem>>, %arg21: memref<1x48xf32, #tpu.memory_space<vmem>>, %arg22: memref<1x16x48xf32, #tpu.memory_space<vmem>>) attributes {dimension_semantics = [#tpu.dimension_semantics<parallel>], iteration_bounds = array<i64: 2>, scalar_prefetch = 0 : i64, scratch_operands = 0 : i64, tpu.core_type = #tpu.core_type<tc>, window_params = [{transform_indices = @transform_0, window_bounds = array<i64: 1, 16, 48>}, {pipeline_mode = #tpu.pipeline_mode<synchronous>, transform_indices = @transform_1, window_bounds = array<i64: 3, 16, 16>}, {pipeline_mode = #tpu.pipeline_mode<synchronous>, transform_indices = @transform_2, window_bounds = array<i64: 3, 48, 256>}, {pipeline_mode = #tpu.pipeline_mode<synchronous>, transform_indices = @transform_3, window_bounds = array<i64: 1, 256>}, {pipeline_mode = #tpu.pipeline_mode<synchronous>, transform_indices = @transform_4, window_bounds = array<i64: 8, 16>}, {pipeline_mode = #tpu.pipeline_mode<synchronous>, transform_indices = @transform_5, window_bounds = array<i64: 8, 16>}, {pipeline_mode = #tpu.pipeline_mode<synchronous>, transform_indices = @transform_6, window_bounds = array<i64: 256, 128>}, {pipeline_mode = #tpu.pipeline_mode<synchronous>, transform_indices = @transform_7, window_bounds = array<i64: 256, 128>}, {pipeline_mode = #tpu.pipeline_mode<synchronous>, transform_indices = @transform_8, window_bounds = array<i64: 3, 8, 8>}, {pipeline_mode = #tpu.pipeline_mode<synchronous>, transform_indices = @transform_9, window_bounds = array<i64: 3, 128, 64>}, {pipeline_mode = #tpu.pipeline_mode<synchronous>, transform_indices = @transform_10, window_bounds = array<i64: 1, 64>}, {pipeline_mode = #tpu.pipeline_mode<synchronous>, transform_indices = @transform_11, window_bounds = array<i64: 4, 8>}, {pipeline_mode = #tpu.pipeline_mode<synchronous>, transform_indices = @transform_12, window_bounds = array<i64: 4, 8>}, {pipeline_mode = #tpu.pipeline_mode<synchronous>, transform_indices = @transform_13, window_bounds = array<i64: 64, 32>}, {pipeline_mode = #tpu.pipeline_mode<synchronous>, transform_indices = @transform_14, window_bounds = array<i64: 64, 32>}, {pipeline_mode = #tpu.pipeline_mode<synchronous>, transform_indices = @transform_15, window_bounds = array<i64: 3, 8, 4>}, {pipeline_mode = #tpu.pipeline_mode<synchronous>, transform_indices = @transform_16, window_bounds = array<i64: 3, 32, 128>}, {pipeline_mode = #tpu.pipeline_mode<synchronous>, transform_indices = @transform_17, window_bounds = array<i64: 1, 128>}, {pipeline_mode = #tpu.pipeline_mode<synchronous>, transform_indices = @transform_18, window_bounds = array<i64: 3, 16, 8>}, {pipeline_mode = #tpu.pipeline_mode<synchronous>, transform_indices = @transform_19, window_bounds = array<i64: 3, 128, 48>}, {pipeline_mode = #tpu.pipeline_mode<synchronous>, transform_indices = @transform_20, window_bounds = array<i64: 1, 48>}, {transform_indices = @transform_21, window_bounds = array<i64: 1, 16, 48>}]} {
    %c0 = arith.constant 0 : index
    %c0_0 = arith.constant 0 : index
    %c0_1 = arith.constant 0 : index
    %0 = vector.load %arg1[%c0, %c0_0, %c0_1] : memref<1x16x48xf32, #tpu.memory_space<vmem>>, vector<1x16x48xf32>
    %1 = vector.shape_cast %0 : vector<1x16x48xf32> to vector<16x48xf32>
    %c0_2 = arith.constant 0 : index
    %c0_3 = arith.constant 0 : index
    %c0_4 = arith.constant 0 : index
    %2 = vector.load %arg2[%c0_2, %c0_3, %c0_4] : memref<3x16x16xf32, #tpu.memory_space<vmem>>, vector<1x16x16xf32>
    %3 = vector.shape_cast %2 : vector<1x16x16xf32> to vector<16x16xf32>
    %cst = arith.constant dense<0.000000e+00> : vector<16x48xf32>
    %4 = tpu.matmul %3, %1, %cst {dimension_numbers = #tpu.dot_dimension_numbers<[1], [0], [0], [1], [0, 0, 1, 1], [], []>} : vector<16x16xf32>, vector<16x48xf32>, vector<16x48xf32> -> vector<16x48xf32>
    %c0_5 = arith.constant 0 : index
    %c0_6 = arith.constant 0 : index
    %c0_7 = arith.constant 0 : index
    %5 = vector.load %arg3[%c0_5, %c0_6, %c0_7] : memref<3x48x256xf32, #tpu.memory_space<vmem>>, vector<1x48x256xf32>
    %6 = vector.shape_cast %5 : vector<1x48x256xf32> to vector<48x256xf32>
    %cst_8 = arith.constant dense<0.000000e+00> : vector<16x256xf32>
    %7 = tpu.matmul %4, %6, %cst_8 {dimension_numbers = #tpu.dot_dimension_numbers<[1], [0], [0], [1], [0, 0, 1, 1], [], []>} : vector<16x48xf32>, vector<48x256xf32>, vector<16x256xf32> -> vector<16x256xf32>
    %c1 = arith.constant 1 : index
    %c0_9 = arith.constant 0 : index
    %c0_10 = arith.constant 0 : index
    %8 = vector.load %arg2[%c1, %c0_9, %c0_10] : memref<3x16x16xf32, #tpu.memory_space<vmem>>, vector<1x16x16xf32>
    %9 = vector.shape_cast %8 : vector<1x16x16xf32> to vector<16x16xf32>
    %cst_11 = arith.constant dense<0.000000e+00> : vector<16x48xf32>
    %10 = tpu.matmul %9, %1, %cst_11 {dimension_numbers = #tpu.dot_dimension_numbers<[1], [0], [0], [1], [0, 0, 1, 1], [], []>} : vector<16x16xf32>, vector<16x48xf32>, vector<16x48xf32> -> vector<16x48xf32>
    %c1_12 = arith.constant 1 : index
    %c0_13 = arith.constant 0 : index
    %c0_14 = arith.constant 0 : index
    %11 = vector.load %arg3[%c1_12, %c0_13, %c0_14] : memref<3x48x256xf32, #tpu.memory_space<vmem>>, vector<1x48x256xf32>
    %12 = vector.shape_cast %11 : vector<1x48x256xf32> to vector<48x256xf32>
    %cst_15 = arith.constant dense<0.000000e+00> : vector<16x256xf32>
    %13 = tpu.matmul %10, %12, %cst_15 {dimension_numbers = #tpu.dot_dimension_numbers<[1], [0], [0], [1], [0, 0, 1, 1], [], []>} : vector<16x48xf32>, vector<48x256xf32>, vector<16x256xf32> -> vector<16x256xf32>
    %14 = arith.addf %7, %13 : vector<16x256xf32>
    %c2 = arith.constant 2 : index
    %c0_16 = arith.constant 0 : index
    %c0_17 = arith.constant 0 : index
    %15 = vector.load %arg2[%c2, %c0_16, %c0_17] : memref<3x16x16xf32, #tpu.memory_space<vmem>>, vector<1x16x16xf32>
    %16 = vector.shape_cast %15 : vector<1x16x16xf32> to vector<16x16xf32>
    %cst_18 = arith.constant dense<0.000000e+00> : vector<16x48xf32>
    %17 = tpu.matmul %16, %1, %cst_18 {dimension_numbers = #tpu.dot_dimension_numbers<[1], [0], [0], [1], [0, 0, 1, 1], [], []>} : vector<16x16xf32>, vector<16x48xf32>, vector<16x48xf32> -> vector<16x48xf32>
    %c2_19 = arith.constant 2 : index
    %c0_20 = arith.constant 0 : index
    %c0_21 = arith.constant 0 : index
    %18 = vector.load %arg3[%c2_19, %c0_20, %c0_21] : memref<3x48x256xf32, #tpu.memory_space<vmem>>, vector<1x48x256xf32>
    %19 = vector.shape_cast %18 : vector<1x48x256xf32> to vector<48x256xf32>
    %cst_22 = arith.constant dense<0.000000e+00> : vector<16x256xf32>
    %20 = tpu.matmul %17, %19, %cst_22 {dimension_numbers = #tpu.dot_dimension_numbers<[1], [0], [0], [1], [0, 0, 1, 1], [], []>} : vector<16x48xf32>, vector<48x256xf32>, vector<16x256xf32> -> vector<16x256xf32>
    %21 = arith.addf %14, %20 : vector<16x256xf32>
    %c0_23 = arith.constant 0 : index
    %c0_24 = arith.constant 0 : index
    %22 = vector.load %arg4[%c0_23, %c0_24] : memref<1x256xf32, #tpu.memory_space<vmem>>, vector<1x256xf32>
    %23 = vector.broadcast %22 : vector<1x256xf32> to vector<16x256xf32>
    %24 = arith.addf %21, %23 : vector<16x256xf32>
    %cst_25 = arith.constant 0.000000e+00 : f32
    %25 = vector.broadcast %cst_25 : f32 to vector<16x256xf32>
    %26 = arith.maximumf %24, %25 : vector<16x256xf32>
    %c0_26 = arith.constant 0 : index
    %c0_27 = arith.constant 0 : index
    %27 = vector.load %arg5[%c0_26, %c0_27] : memref<8x16xf32, #tpu.memory_space<vmem>>, vector<8x16xf32>
    %cst_28 = arith.constant dense<0.000000e+00> : vector<8x256xf32>
    %28 = tpu.matmul %27, %26, %cst_28 {dimension_numbers = #tpu.dot_dimension_numbers<[1], [0], [0], [1], [0, 0, 1, 1], [], []>} : vector<8x16xf32>, vector<16x256xf32>, vector<8x256xf32> -> vector<8x256xf32>
    %c0_29 = arith.constant 0 : index
    %c0_30 = arith.constant 0 : index
    %29 = vector.load %arg6[%c0_29, %c0_30] : memref<8x16xf32, #tpu.memory_space<vmem>>, vector<8x16xf32>
    %cst_31 = arith.constant dense<0.000000e+00> : vector<8x256xf32>
    %30 = tpu.matmul %29, %26, %cst_31 {dimension_numbers = #tpu.dot_dimension_numbers<[1], [0], [0], [1], [0, 0, 1, 1], [], []>} : vector<8x16xf32>, vector<16x256xf32>, vector<8x256xf32> -> vector<8x256xf32>
    %31 = arith.maximumf %28, %30 : vector<8x256xf32>
    %c0_32 = arith.constant 0 : index
    %c0_33 = arith.constant 0 : index
    %32 = vector.load %arg7[%c0_32, %c0_33] : memref<256x128xf32, #tpu.memory_space<vmem>>, vector<256x128xf32>
    %cst_34 = arith.constant dense<0.000000e+00> : vector<8x128xf32>
    %33 = tpu.matmul %31, %32, %cst_34 {dimension_numbers = #tpu.dot_dimension_numbers<[1], [0], [0], [1], [0, 0, 1, 1], [], []>} : vector<8x256xf32>, vector<256x128xf32>, vector<8x128xf32> -> vector<8x128xf32>
    %c0_35 = arith.constant 0 : index
    %c0_36 = arith.constant 0 : index
    %34 = vector.load %arg8[%c0_35, %c0_36] : memref<256x128xf32, #tpu.memory_space<vmem>>, vector<256x128xf32>
    %cst_37 = arith.constant dense<0.000000e+00> : vector<8x128xf32>
    %35 = tpu.matmul %31, %34, %cst_37 {dimension_numbers = #tpu.dot_dimension_numbers<[1], [0], [0], [1], [0, 0, 1, 1], [], []>} : vector<8x256xf32>, vector<256x128xf32>, vector<8x128xf32> -> vector<8x128xf32>
    %36 = arith.maximumf %33, %35 : vector<8x128xf32>
    %c0_38 = arith.constant 0 : index
    %c0_39 = arith.constant 0 : index
    %c0_40 = arith.constant 0 : index
    %37 = vector.load %arg9[%c0_38, %c0_39, %c0_40] : memref<3x8x8xf32, #tpu.memory_space<vmem>>, vector<1x8x8xf32>
    %38 = vector.shape_cast %37 : vector<1x8x8xf32> to vector<8x8xf32>
    %cst_41 = arith.constant dense<0.000000e+00> : vector<8x128xf32>
    %39 = tpu.matmul %38, %36, %cst_41 {dimension_numbers = #tpu.dot_dimension_numbers<[1], [0], [0], [1], [0, 0, 1, 1], [], []>} : vector<8x8xf32>, vector<8x128xf32>, vector<8x128xf32> -> vector<8x128xf32>
    %c0_42 = arith.constant 0 : index
    %c0_43 = arith.constant 0 : index
    %c0_44 = arith.constant 0 : index
    %40 = vector.load %arg10[%c0_42, %c0_43, %c0_44] : memref<3x128x64xf32, #tpu.memory_space<vmem>>, vector<1x128x64xf32>
    %41 = vector.shape_cast %40 : vector<1x128x64xf32> to vector<128x64xf32>
    %cst_45 = arith.constant dense<0.000000e+00> : vector<8x64xf32>
    %42 = tpu.matmul %39, %41, %cst_45 {dimension_numbers = #tpu.dot_dimension_numbers<[1], [0], [0], [1], [0, 0, 1, 1], [], []>} : vector<8x128xf32>, vector<128x64xf32>, vector<8x64xf32> -> vector<8x64xf32>
    %c1_46 = arith.constant 1 : index
    %c0_47 = arith.constant 0 : index
    %c0_48 = arith.constant 0 : index
    %43 = vector.load %arg9[%c1_46, %c0_47, %c0_48] : memref<3x8x8xf32, #tpu.memory_space<vmem>>, vector<1x8x8xf32>
    %44 = vector.shape_cast %43 : vector<1x8x8xf32> to vector<8x8xf32>
    %cst_49 = arith.constant dense<0.000000e+00> : vector<8x128xf32>
    %45 = tpu.matmul %44, %36, %cst_49 {dimension_numbers = #tpu.dot_dimension_numbers<[1], [0], [0], [1], [0, 0, 1, 1], [], []>} : vector<8x8xf32>, vector<8x128xf32>, vector<8x128xf32> -> vector<8x128xf32>
    %c1_50 = arith.constant 1 : index
    %c0_51 = arith.constant 0 : index
    %c0_52 = arith.constant 0 : index
    %46 = vector.load %arg10[%c1_50, %c0_51, %c0_52] : memref<3x128x64xf32, #tpu.memory_space<vmem>>, vector<1x128x64xf32>
    %47 = vector.shape_cast %46 : vector<1x128x64xf32> to vector<128x64xf32>
    %cst_53 = arith.constant dense<0.000000e+00> : vector<8x64xf32>
    %48 = tpu.matmul %45, %47, %cst_53 {dimension_numbers = #tpu.dot_dimension_numbers<[1], [0], [0], [1], [0, 0, 1, 1], [], []>} : vector<8x128xf32>, vector<128x64xf32>, vector<8x64xf32> -> vector<8x64xf32>
    %49 = arith.addf %42, %48 : vector<8x64xf32>
    %c2_54 = arith.constant 2 : index
    %c0_55 = arith.constant 0 : index
    %c0_56 = arith.constant 0 : index
    %50 = vector.load %arg9[%c2_54, %c0_55, %c0_56] : memref<3x8x8xf32, #tpu.memory_space<vmem>>, vector<1x8x8xf32>
    %51 = vector.shape_cast %50 : vector<1x8x8xf32> to vector<8x8xf32>
    %cst_57 = arith.constant dense<0.000000e+00> : vector<8x128xf32>
    %52 = tpu.matmul %51, %36, %cst_57 {dimension_numbers = #tpu.dot_dimension_numbers<[1], [0], [0], [1], [0, 0, 1, 1], [], []>} : vector<8x8xf32>, vector<8x128xf32>, vector<8x128xf32> -> vector<8x128xf32>
    %c2_58 = arith.constant 2 : index
    %c0_59 = arith.constant 0 : index
    %c0_60 = arith.constant 0 : index
    %53 = vector.load %arg10[%c2_58, %c0_59, %c0_60] : memref<3x128x64xf32, #tpu.memory_space<vmem>>, vector<1x128x64xf32>
    %54 = vector.shape_cast %53 : vector<1x128x64xf32> to vector<128x64xf32>
    %cst_61 = arith.constant dense<0.000000e+00> : vector<8x64xf32>
    %55 = tpu.matmul %52, %54, %cst_61 {dimension_numbers = #tpu.dot_dimension_numbers<[1], [0], [0], [1], [0, 0, 1, 1], [], []>} : vector<8x128xf32>, vector<128x64xf32>, vector<8x64xf32> -> vector<8x64xf32>
    %56 = arith.addf %49, %55 : vector<8x64xf32>
    %c0_62 = arith.constant 0 : index
    %c0_63 = arith.constant 0 : index
    %57 = vector.load %arg11[%c0_62, %c0_63] : memref<1x64xf32, #tpu.memory_space<vmem>>, vector<1x64xf32>
    %58 = vector.broadcast %57 : vector<1x64xf32> to vector<8x64xf32>
    %59 = arith.addf %56, %58 : vector<8x64xf32>
    %cst_64 = arith.constant 0.000000e+00 : f32
    %60 = vector.broadcast %cst_64 : f32 to vector<8x64xf32>
    %61 = arith.maximumf %59, %60 : vector<8x64xf32>
    %c0_65 = arith.constant 0 : index
    %c0_66 = arith.constant 0 : index
    %62 = vector.load %arg12[%c0_65, %c0_66] : memref<4x8xf32, #tpu.memory_space<vmem>>, vector<4x8xf32>
    %cst_67 = arith.constant dense<0.000000e+00> : vector<4x64xf32>
    %63 = tpu.matmul %62, %61, %cst_67 {dimension_numbers = #tpu.dot_dimension_numbers<[1], [0], [0], [1], [0, 0, 1, 1], [], []>} : vector<4x8xf32>, vector<8x64xf32>, vector<4x64xf32> -> vector<4x64xf32>
    %c0_68 = arith.constant 0 : index
    %c0_69 = arith.constant 0 : index
    %64 = vector.load %arg13[%c0_68, %c0_69] : memref<4x8xf32, #tpu.memory_space<vmem>>, vector<4x8xf32>
    %cst_70 = arith.constant dense<0.000000e+00> : vector<4x64xf32>
    %65 = tpu.matmul %64, %61, %cst_70 {dimension_numbers = #tpu.dot_dimension_numbers<[1], [0], [0], [1], [0, 0, 1, 1], [], []>} : vector<4x8xf32>, vector<8x64xf32>, vector<4x64xf32> -> vector<4x64xf32>
    %66 = arith.maximumf %63, %65 : vector<4x64xf32>
    %c0_71 = arith.constant 0 : index
    %c0_72 = arith.constant 0 : index
    %67 = vector.load %arg14[%c0_71, %c0_72] : memref<64x32xf32, #tpu.memory_space<vmem>>, vector<64x32xf32>
    %cst_73 = arith.constant dense<0.000000e+00> : vector<4x32xf32>
    %68 = tpu.matmul %66, %67, %cst_73 {dimension_numbers = #tpu.dot_dimension_numbers<[1], [0], [0], [1], [0, 0, 1, 1], [], []>} : vector<4x64xf32>, vector<64x32xf32>, vector<4x32xf32> -> vector<4x32xf32>
    %c0_74 = arith.constant 0 : index
    %c0_75 = arith.constant 0 : index
    %69 = vector.load %arg15[%c0_74, %c0_75] : memref<64x32xf32, #tpu.memory_space<vmem>>, vector<64x32xf32>
    %cst_76 = arith.constant dense<0.000000e+00> : vector<4x32xf32>
    %70 = tpu.matmul %66, %69, %cst_76 {dimension_numbers = #tpu.dot_dimension_numbers<[1], [0], [0], [1], [0, 0, 1, 1], [], []>} : vector<4x64xf32>, vector<64x32xf32>, vector<4x32xf32> -> vector<4x32xf32>
    %71 = arith.maximumf %68, %70 : vector<4x32xf32>
    %c0_77 = arith.constant 0 : index
    %c0_78 = arith.constant 0 : index
    %c0_79 = arith.constant 0 : index
    %72 = vector.load %arg16[%c0_77, %c0_78, %c0_79] : memref<3x8x4xf32, #tpu.memory_space<vmem>>, vector<1x8x4xf32>
    %73 = vector.shape_cast %72 : vector<1x8x4xf32> to vector<8x4xf32>
    %cst_80 = arith.constant dense<0.000000e+00> : vector<8x32xf32>
    %74 = tpu.matmul %73, %71, %cst_80 {dimension_numbers = #tpu.dot_dimension_numbers<[1], [0], [0], [1], [0, 0, 1, 1], [], []>} : vector<8x4xf32>, vector<4x32xf32>, vector<8x32xf32> -> vector<8x32xf32>
    %c0_81 = arith.constant 0 : index
    %c0_82 = arith.constant 0 : index
    %c0_83 = arith.constant 0 : index
    %75 = vector.load %arg17[%c0_81, %c0_82, %c0_83] : memref<3x32x128xf32, #tpu.memory_space<vmem>>, vector<1x32x128xf32>
    %76 = vector.shape_cast %75 : vector<1x32x128xf32> to vector<32x128xf32>
    %cst_84 = arith.constant dense<0.000000e+00> : vector<8x128xf32>
    %77 = tpu.matmul %74, %76, %cst_84 {dimension_numbers = #tpu.dot_dimension_numbers<[1], [0], [0], [1], [0, 0, 1, 1], [], []>} : vector<8x32xf32>, vector<32x128xf32>, vector<8x128xf32> -> vector<8x128xf32>
    %c1_85 = arith.constant 1 : index
    %c0_86 = arith.constant 0 : index
    %c0_87 = arith.constant 0 : index
    %78 = vector.load %arg16[%c1_85, %c0_86, %c0_87] : memref<3x8x4xf32, #tpu.memory_space<vmem>>, vector<1x8x4xf32>
    %79 = vector.shape_cast %78 : vector<1x8x4xf32> to vector<8x4xf32>
    %cst_88 = arith.constant dense<0.000000e+00> : vector<8x32xf32>
    %80 = tpu.matmul %79, %71, %cst_88 {dimension_numbers = #tpu.dot_dimension_numbers<[1], [0], [0], [1], [0, 0, 1, 1], [], []>} : vector<8x4xf32>, vector<4x32xf32>, vector<8x32xf32> -> vector<8x32xf32>
    %c1_89 = arith.constant 1 : index
    %c0_90 = arith.constant 0 : index
    %c0_91 = arith.constant 0 : index
    %81 = vector.load %arg17[%c1_89, %c0_90, %c0_91] : memref<3x32x128xf32, #tpu.memory_space<vmem>>, vector<1x32x128xf32>
    %82 = vector.shape_cast %81 : vector<1x32x128xf32> to vector<32x128xf32>
    %cst_92 = arith.constant dense<0.000000e+00> : vector<8x128xf32>
    %83 = tpu.matmul %80, %82, %cst_92 {dimension_numbers = #tpu.dot_dimension_numbers<[1], [0], [0], [1], [0, 0, 1, 1], [], []>} : vector<8x32xf32>, vector<32x128xf32>, vector<8x128xf32> -> vector<8x128xf32>
    %84 = arith.addf %77, %83 : vector<8x128xf32>
    %c2_93 = arith.constant 2 : index
    %c0_94 = arith.constant 0 : index
    %c0_95 = arith.constant 0 : index
    %85 = vector.load %arg16[%c2_93, %c0_94, %c0_95] : memref<3x8x4xf32, #tpu.memory_space<vmem>>, vector<1x8x4xf32>
    %86 = vector.shape_cast %85 : vector<1x8x4xf32> to vector<8x4xf32>
    %cst_96 = arith.constant dense<0.000000e+00> : vector<8x32xf32>
    %87 = tpu.matmul %86, %71, %cst_96 {dimension_numbers = #tpu.dot_dimension_numbers<[1], [0], [0], [1], [0, 0, 1, 1], [], []>} : vector<8x4xf32>, vector<4x32xf32>, vector<8x32xf32> -> vector<8x32xf32>
    %c2_97 = arith.constant 2 : index
    %c0_98 = arith.constant 0 : index
    %c0_99 = arith.constant 0 : index
    %88 = vector.load %arg17[%c2_97, %c0_98, %c0_99] : memref<3x32x128xf32, #tpu.memory_space<vmem>>, vector<1x32x128xf32>
    %89 = vector.shape_cast %88 : vector<1x32x128xf32> to vector<32x128xf32>
    %cst_100 = arith.constant dense<0.000000e+00> : vector<8x128xf32>
    %90 = tpu.matmul %87, %89, %cst_100 {dimension_numbers = #tpu.dot_dimension_numbers<[1], [0], [0], [1], [0, 0, 1, 1], [], []>} : vector<8x32xf32>, vector<32x128xf32>, vector<8x128xf32> -> vector<8x128xf32>
    %91 = arith.addf %84, %90 : vector<8x128xf32>
    %c0_101 = arith.constant 0 : index
    %c0_102 = arith.constant 0 : index
    %92 = vector.load %arg18[%c0_101, %c0_102] : memref<1x128xf32, #tpu.memory_space<vmem>>, vector<1x128xf32>
    %93 = vector.broadcast %92 : vector<1x128xf32> to vector<8x128xf32>
    %94 = arith.addf %91, %93 : vector<8x128xf32>
    %cst_103 = arith.constant 0.000000e+00 : f32
    %95 = vector.broadcast %cst_103 : f32 to vector<8x128xf32>
    %96 = arith.maximumf %94, %95 : vector<8x128xf32>
    %c0_104 = arith.constant 0 : index
    %c0_105 = arith.constant 0 : index
    %c0_106 = arith.constant 0 : index
    %97 = vector.load %arg19[%c0_104, %c0_105, %c0_106] : memref<3x16x8xf32, #tpu.memory_space<vmem>>, vector<1x16x8xf32>
    %98 = vector.shape_cast %97 : vector<1x16x8xf32> to vector<16x8xf32>
    %cst_107 = arith.constant dense<0.000000e+00> : vector<16x128xf32>
    %99 = tpu.matmul %98, %96, %cst_107 {dimension_numbers = #tpu.dot_dimension_numbers<[1], [0], [0], [1], [0, 0, 1, 1], [], []>} : vector<16x8xf32>, vector<8x128xf32>, vector<16x128xf32> -> vector<16x128xf32>
    %c0_108 = arith.constant 0 : index
    %c0_109 = arith.constant 0 : index
    %c0_110 = arith.constant 0 : index
    %100 = vector.load %arg20[%c0_108, %c0_109, %c0_110] : memref<3x128x48xf32, #tpu.memory_space<vmem>>, vector<1x128x48xf32>
    %101 = vector.shape_cast %100 : vector<1x128x48xf32> to vector<128x48xf32>
    %cst_111 = arith.constant dense<0.000000e+00> : vector<16x48xf32>
    %102 = tpu.matmul %99, %101, %cst_111 {dimension_numbers = #tpu.dot_dimension_numbers<[1], [0], [0], [1], [0, 0, 1, 1], [], []>} : vector<16x128xf32>, vector<128x48xf32>, vector<16x48xf32> -> vector<16x48xf32>
    %c1_112 = arith.constant 1 : index
    %c0_113 = arith.constant 0 : index
    %c0_114 = arith.constant 0 : index
    %103 = vector.load %arg19[%c1_112, %c0_113, %c0_114] : memref<3x16x8xf32, #tpu.memory_space<vmem>>, vector<1x16x8xf32>
    %104 = vector.shape_cast %103 : vector<1x16x8xf32> to vector<16x8xf32>
    %cst_115 = arith.constant dense<0.000000e+00> : vector<16x128xf32>
    %105 = tpu.matmul %104, %96, %cst_115 {dimension_numbers = #tpu.dot_dimension_numbers<[1], [0], [0], [1], [0, 0, 1, 1], [], []>} : vector<16x8xf32>, vector<8x128xf32>, vector<16x128xf32> -> vector<16x128xf32>
    %c1_116 = arith.constant 1 : index
    %c0_117 = arith.constant 0 : index
    %c0_118 = arith.constant 0 : index
    %106 = vector.load %arg20[%c1_116, %c0_117, %c0_118] : memref<3x128x48xf32, #tpu.memory_space<vmem>>, vector<1x128x48xf32>
    %107 = vector.shape_cast %106 : vector<1x128x48xf32> to vector<128x48xf32>
    %cst_119 = arith.constant dense<0.000000e+00> : vector<16x48xf32>
    %108 = tpu.matmul %105, %107, %cst_119 {dimension_numbers = #tpu.dot_dimension_numbers<[1], [0], [0], [1], [0, 0, 1, 1], [], []>} : vector<16x128xf32>, vector<128x48xf32>, vector<16x48xf32> -> vector<16x48xf32>
    %109 = arith.addf %102, %108 : vector<16x48xf32>
    %c2_120 = arith.constant 2 : index
    %c0_121 = arith.constant 0 : index
    %c0_122 = arith.constant 0 : index
    %110 = vector.load %arg19[%c2_120, %c0_121, %c0_122] : memref<3x16x8xf32, #tpu.memory_space<vmem>>, vector<1x16x8xf32>
    %111 = vector.shape_cast %110 : vector<1x16x8xf32> to vector<16x8xf32>
    %cst_123 = arith.constant dense<0.000000e+00> : vector<16x128xf32>
    %112 = tpu.matmul %111, %96, %cst_123 {dimension_numbers = #tpu.dot_dimension_numbers<[1], [0], [0], [1], [0, 0, 1, 1], [], []>} : vector<16x8xf32>, vector<8x128xf32>, vector<16x128xf32> -> vector<16x128xf32>
    %c2_124 = arith.constant 2 : index
    %c0_125 = arith.constant 0 : index
    %c0_126 = arith.constant 0 : index
    %113 = vector.load %arg20[%c2_124, %c0_125, %c0_126] : memref<3x128x48xf32, #tpu.memory_space<vmem>>, vector<1x128x48xf32>
    %114 = vector.shape_cast %113 : vector<1x128x48xf32> to vector<128x48xf32>
    %cst_127 = arith.constant dense<0.000000e+00> : vector<16x48xf32>
    %115 = tpu.matmul %112, %114, %cst_127 {dimension_numbers = #tpu.dot_dimension_numbers<[1], [0], [0], [1], [0, 0, 1, 1], [], []>} : vector<16x128xf32>, vector<128x48xf32>, vector<16x48xf32> -> vector<16x48xf32>
    %116 = arith.addf %109, %115 : vector<16x48xf32>
    %c0_128 = arith.constant 0 : index
    %c0_129 = arith.constant 0 : index
    %117 = vector.load %arg21[%c0_128, %c0_129] : memref<1x48xf32, #tpu.memory_space<vmem>>, vector<1x48xf32>
    %118 = vector.broadcast %117 : vector<1x48xf32> to vector<16x48xf32>
    %119 = arith.addf %116, %118 : vector<16x48xf32>
    %c0_130 = arith.constant 0 : index
    %c0_131 = arith.constant 0 : index
    %c0_132 = arith.constant 0 : index
    %120 = vector.load %arg22[%c0_130, %c0_131, %c0_132] : memref<1x16x48xf32, #tpu.memory_space<vmem>>, vector<1x16x48xf32>
    %121 = vector.shape_cast %120 : vector<1x16x48xf32> to vector<16x48xf32>
    %122 = vector.shape_cast %119 : vector<16x48xf32> to vector<1x16x48xf32>
    tpu.vector_store %arg22[%c0_130, %c0_131, %c0_132], %122 {strides = array<i32>} : memref<1x16x48xf32, #tpu.memory_space<vmem>>, vector<1x16x48xf32>,
    return
  }
  func.func @transform_0(%arg0: i32) -> (i32, i32, i32) {
    %c0_i32 = arith.constant 0 : i32
    %c0_i32_0 = arith.constant 0 : i32
    %c0_i32_1 = arith.constant 0 : i32
    return %arg0, %c0_i32, %c0_i32_0 : i32, i32, i32
  }
  func.func @transform_1(%arg0: i32) -> (i32, i32, i32) {
    %c0_i32 = arith.constant 0 : i32
    %c0_i32_0 = arith.constant 0 : i32
    %c0_i32_1 = arith.constant 0 : i32
    %c0_i32_2 = arith.constant 0 : i32
    return %c0_i32, %c0_i32_0, %c0_i32_1 : i32, i32, i32
  }
  func.func @transform_2(%arg0: i32) -> (i32, i32, i32) {
    %c0_i32 = arith.constant 0 : i32
    %c0_i32_0 = arith.constant 0 : i32
    %c0_i32_1 = arith.constant 0 : i32
    %c0_i32_2 = arith.constant 0 : i32
    return %c0_i32, %c0_i32_0, %c0_i32_1 : i32, i32, i32
  }
  func.func @transform_3(%arg0: i32) -> (i32, i32) {
    %c0_i32 = arith.constant 0 : i32
    %c0_i32_0 = arith.constant 0 : i32
    %c0_i32_1 = arith.constant 0 : i32
    return %c0_i32, %c0_i32_0 : i32, i32
  }
  func.func @transform_4(%arg0: i32) -> (i32, i32) {
    %c0_i32 = arith.constant 0 : i32
    %c0_i32_0 = arith.constant 0 : i32
    %c0_i32_1 = arith.constant 0 : i32
    return %c0_i32, %c0_i32_0 : i32, i32
  }
  func.func @transform_5(%arg0: i32) -> (i32, i32) {
    %c0_i32 = arith.constant 0 : i32
    %c0_i32_0 = arith.constant 0 : i32
    %c0_i32_1 = arith.constant 0 : i32
    return %c0_i32, %c0_i32_0 : i32, i32
  }
  func.func @transform_6(%arg0: i32) -> (i32, i32) {
    %c0_i32 = arith.constant 0 : i32
    %c0_i32_0 = arith.constant 0 : i32
    %c0_i32_1 = arith.constant 0 : i32
    return %c0_i32, %c0_i32_0 : i32, i32
  }
  func.func @transform_7(%arg0: i32) -> (i32, i32) {
    %c0_i32 = arith.constant 0 : i32
    %c0_i32_0 = arith.constant 0 : i32
    %c0_i32_1 = arith.constant 0 : i32
    return %c0_i32, %c0_i32_0 : i32, i32
  }
  func.func @transform_8(%arg0: i32) -> (i32, i32, i32) {
    %c0_i32 = arith.constant 0 : i32
    %c0_i32_0 = arith.constant 0 : i32
    %c0_i32_1 = arith.constant 0 : i32
    %c0_i32_2 = arith.constant 0 : i32
    return %c0_i32, %c0_i32_0, %c0_i32_1 : i32, i32, i32
  }
  func.func @transform_9(%arg0: i32) -> (i32, i32, i32) {
    %c0_i32 = arith.constant 0 : i32
    %c0_i32_0 = arith.constant 0 : i32
    %c0_i32_1 = arith.constant 0 : i32
    %c0_i32_2 = arith.constant 0 : i32
    return %c0_i32, %c0_i32_0, %c0_i32_1 : i32, i32, i32
  }
  func.func @transform_10(%arg0: i32) -> (i32, i32) {
    %c0_i32 = arith.constant 0 : i32
    %c0_i32_0 = arith.constant 0 : i32
    %c0_i32_1 = arith.constant 0 : i32
    return %c0_i32, %c0_i32_0 : i32, i32
  }
  func.func @transform_11(%arg0: i32) -> (i32, i32) {
    %c0_i32 = arith.constant 0 : i32
    %c0_i32_0 = arith.constant 0 : i32
    %c0_i32_1 = arith.constant 0 : i32
    return %c0_i32, %c0_i32_0 : i32, i32
  }
  func.func @transform_12(%arg0: i32) -> (i32, i32) {
    %c0_i32 = arith.constant 0 : i32
    %c0_i32_0 = arith.constant 0 : i32
    %c0_i32_1 = arith.constant 0 : i32
    return %c0_i32, %c0_i32_0 : i32, i32
  }
  func.func @transform_13(%arg0: i32) -> (i32, i32) {
    %c0_i32 = arith.constant 0 : i32
    %c0_i32_0 = arith.constant 0 : i32
    %c0_i32_1 = arith.constant 0 : i32
    return %c0_i32, %c0_i32_0 : i32, i32
  }
  func.func @transform_14(%arg0: i32) -> (i32, i32) {
    %c0_i32 = arith.constant 0 : i32
    %c0_i32_0 = arith.constant 0 : i32
    %c0_i32_1 = arith.constant 0 : i32
    return %c0_i32, %c0_i32_0 : i32, i32
  }
  func.func @transform_15(%arg0: i32) -> (i32, i32, i32) {
    %c0_i32 = arith.constant 0 : i32
    %c0_i32_0 = arith.constant 0 : i32
    %c0_i32_1 = arith.constant 0 : i32
    %c0_i32_2 = arith.constant 0 : i32
    return %c0_i32, %c0_i32_0, %c0_i32_1 : i32, i32, i32
  }
  func.func @transform_16(%arg0: i32) -> (i32, i32, i32) {
    %c0_i32 = arith.constant 0 : i32
    %c0_i32_0 = arith.constant 0 : i32
    %c0_i32_1 = arith.constant 0 : i32
    %c0_i32_2 = arith.constant 0 : i32
    return %c0_i32, %c0_i32_0, %c0_i32_1 : i32, i32, i32
  }
  func.func @transform_17(%arg0: i32) -> (i32, i32) {
    %c0_i32 = arith.constant 0 : i32
    %c0_i32_0 = arith.constant 0 : i32
    %c0_i32_1 = arith.constant 0 : i32
    return %c0_i32, %c0_i32_0 : i32, i32
  }
  func.func @transform_18(%arg0: i32) -> (i32, i32, i32) {
    %c0_i32 = arith.constant 0 : i32
    %c0_i32_0 = arith.constant 0 : i32
    %c0_i32_1 = arith.constant 0 : i32
    %c0_i32_2 = arith.constant 0 : i32
    return %c0_i32, %c0_i32_0, %c0_i32_1 : i32, i32, i32
  }
  func.func @transform_19(%arg0: i32) -> (i32, i32, i32) {
    %c0_i32 = arith.constant 0 : i32
    %c0_i32_0 = arith.constant 0 : i32
    %c0_i32_1 = arith.constant 0 : i32
    %c0_i32_2 = arith.constant 0 : i32
    return %c0_i32, %c0_i32_0, %c0_i32_1 : i32, i32, i32
  }
  func.func @transform_20(%arg0: i32) -> (i32, i32) {
    %c0_i32 = arith.constant 0 : i32
    %c0_i32_0 = arith.constant 0 : i32
    %c0_i32_1 = arith.constant 0 : i32
    return %c0_i32, %c0_i32_0 : i32, i32
  }
  func.func @transform_21(%arg0: i32) -> (i32, i32, i32) {
    %c0_i32 = arith.constant 0 : i32
    %c0_i32_0 = arith.constant 0 : i32
    %c0_i32_1 = arith.constant 0 : i32
    return %arg0, %c0_i32, %c0_i32_0 : i32, i32, i32
  }
}

</mosaic_0001>

<llo_original>
// kernel: tile.23
$region0: #{tile.23}
  #allocation0 [shape = 's32[1]{0}', space=sflag, size = 0x4, scoped, tag = 'scoped memory for tile.23']
  %s0 = inlined_call_operand.vmem [shape: f32[16], index: 0, kind: input, shape index: {}]
  %s1 = inlined_call_operand.vmem [shape: f32[16,16], index: 1, kind: output, shape index: {}]
  // Predicated region
  $region2: #{tile.23} parent=0 // pred_check
    _
  $region3: #{tile.23} parent=0 // pred_check_branch
    %3 = sbr.rel (0) target = $region5
  $region4: #{tile.23} parent=0 // pred_region
    _
  $region5: #{tile.23} parent=0 // pred_fallthru
    _
  %v4 = vld [vmem:[%s0] ss:$0 sm:$0xff]
  %5 = vst [vmem:[%s1] sm:$0xff] %v4
  %s6 = scalar_lea.vmem %s1, 8
  %7 = vst [vmem:[%s6] sm:$0xff] %v4

// kernel: tile.24
$region0: #{tile.24}
  %s0 = inlined_call_operand.vmem [shape: f32[16,16], index: 0, kind: input, shape index: {}]
  %s1 = inlined_call_operand.vmem [shape: f32[1,256], index: 1, kind: output, shape index: {}]
  $region1: #{tile.24} parent=0
    #allocation0 [shape = 'u8[8192]{0}', space=vmem, size = 0x2000, scoped, tag = 'scoped mem for output reshape']
    %s2 = smov 3
    %v3 = vld [vmem:[%s0] ss:$8 sm:%s2]
    %vm4 = vcmask 130048
    %5 = vst.msk [vmem:[#allocation0] ss:$8 sm:$0x3] %vm4, %v3
    %s6 = scalar_lea.vmem %s0, 7
    %s7 = smov 3
    %v8 = vld [vmem:[%s6] ss:$8 sm:%s7]
    %9 = vrot.lane.b32.xlu0 %v8, 112
    %v10 = vpop.permute.xlu0 %9
    %vm11 = vcmask 1048448
    %12 = vst.msk [vmem:[#allocation0] ss:$8 sm:$0x3] %vm11, %v10
    %s13 = scalar_lea.vmem %s0, 6
    %s14 = smov 3
    %v15 = vld [vmem:[%s13] ss:$8 sm:%s14]
    %16 = vrot.lane.b32.xlu0 %v15, 96
    %v17 = vpop.permute.xlu0 %16
    %vm18 = vcmask 917248
    %19 = vst.msk [vmem:[#allocation0] ss:$8 sm:$0x3] %vm18, %v17
    %s20 = scalar_lea.vmem %s0, 5
    %s21 = smov 3
    %v22 = vld [vmem:[%s20] ss:$8 sm:%s21]
    %23 = vrot.lane.b32.xlu0 %v22, 80
    %v24 = vpop.permute.xlu0 %23
    %vm25 = vcmask 786048
    %26 = vst.msk [vmem:[#allocation0] ss:$8 sm:$0x3] %vm25, %v24
    %s27 = scalar_lea.vmem %s0, 4
    %s28 = smov 3
    %v29 = vld [vmem:[%s27] ss:$8 sm:%s28]
    %30 = vrot.lane.b32.xlu0 %v29, 64
    %v31 = vpop.permute.xlu0 %30
    %vm32 = vcmask 654848
    %33 = vst.msk [vmem:[#allocation0] ss:$8 sm:$0x3] %vm32, %v31
    %s34 = scalar_lea.vmem %s0, 3
    %s35 = smov 3
    %v36 = vld [vmem:[%s34] ss:$8 sm:%s35]
    %37 = vrot.lane.b32.xlu0 %v36, 48
    %v38 = vpop.permute.xlu0 %37
    %vm39 = vcmask 523648
    %40 = vst.msk [vmem:[#allocation0] ss:$8 sm:$0x3] %vm39, %v38
    %s41 = scalar_lea.vmem %s0, 2
    %s42 = smov 3
    %v43 = vld [vmem:[%s41] ss:$8 sm:%s42]
    %44 = vrot.lane.b32.xlu0 %v43, 32
    %v45 = vpop.permute.xlu0 %44
    %vm46 = vcmask 392448
    %47 = vst.msk [vmem:[#allocation0] ss:$8 sm:$0x3] %vm46, %v45
    %s48 = scalar_lea.vmem %s0, 1
    %s49 = smov 3
    %v50 = vld [vmem:[%s48] ss:$8 sm:%s49]
    %51 = vrot.lane.b32.xlu0 %v50, 16
    %v52 = vpop.permute.xlu0 %51
    %vm53 = vcmask 261248
    %54 = vst.msk [vmem:[#allocation0] ss:$8 sm:$0x3] %vm53, %v52
    %s56 = sshllo.u32 0, 1
    %v58 = vld [vmem:[#allocation0] sm:%s56]
    %s59 = sshllo.u32 0, 1
    %60 = vst [vmem:[%s1] sm:%s59] %v58
    %s61 = scalar_lea.vmem [#allocation0], 8
    %v62 = vld [vmem:[%s61] sm:%s56]
    %s63 = sshllo.u32 0, 1
    %s64 = scalar_lea.vmem %s1, 1
    %65 = vst [vmem:[%s64] sm:%s63] %v62

// kernel: tile.38
$region0: #{tile.38}
  #allocation0 [shape = 's32[1]{0}', space=sflag, size = 0x4, scoped, tag = 'scoped memory for tile.38']
  %s0 = inlined_call_operand.vmem [shape: f32[3], index: 0, kind: input, shape index: {}]
  %s1 = inlined_call_operand.vmem [shape: f32[16,3], index: 1, kind: output, shape index: {}]
  // Predicated region
  $region2: #{tile.38} parent=0 // pred_check
    _
  $region3: #{tile.38} parent=0 // pred_check_branch
    %3 = sbr.rel (0) target = $region5
  $region4: #{tile.38} parent=0 // pred_region
    _
  $region5: #{tile.38} parent=0 // pred_fallthru
    _
  %v4 = vld [vmem:[%s0] ss:$0 sm:$0xff]
  %5 = vst [vmem:[%s1] sm:$0xff] %v4
  %s6 = scalar_lea.vmem %s1, 8
  %7 = vst [vmem:[%s6] sm:$0xff] %v4

// kernel: tile.39
$region0: #{tile.39}
  %s0 = inlined_call_operand.vmem [shape: f32[16,3], index: 0, kind: input, shape index: {}]
  %s1 = inlined_call_operand.vmem [shape: f32[1,48], index: 1, kind: output, shape index: {}]
  $region1: #{tile.39} parent=0
    #allocation0 [shape = 'u8[4096]{0}', space=vmem, size = 0x1000, scoped, tag = 'scoped mem for output reshape']
    %v2 = vld [vmem:[%s0] sm:$0x1]
    %vm3 = vcmask 23552
    %4 = vst.msk [vmem:[#allocation0] sm:$0x1] %vm3, %v2
    %s5 = scalar_lea.vmem %s0, 15
    %v6 = vld [vmem:[%s5] sm:$0x1]
    %7 = vrot.lane.b32.xlu0 %v6, 45
    %v8 = vpop.permute.xlu0 %7
    %vm9 = vcmask 392552
    %10 = vst.msk [vmem:[#allocation0] sm:$0x1] %vm9, %v8
    %s11 = scalar_lea.vmem %s0, 14
    %v12 = vld [vmem:[%s11] sm:$0x1]
    %13 = vrot.lane.b32.xlu0 %v12, 42
    %v14 = vpop.permute.xlu0 %13
    %vm15 = vcmask 367952
    %16 = vst.msk [vmem:[#allocation0] sm:$0x1] %vm15, %v14
    %s17 = scalar_lea.vmem %s0, 13
    %v18 = vld [vmem:[%s17] sm:$0x1]
    %19 = vrot.lane.b32.xlu0 %v18, 39
    %v20 = vpop.permute.xlu0 %19
    %vm21 = vcmask 343352
    %22 = vst.msk [vmem:[#allocation0] sm:$0x1] %vm21, %v20
    %s23 = scalar_lea.vmem %s0, 12
    %v24 = vld [vmem:[%s23] sm:$0x1]
    %25 = vrot.lane.b32.xlu0 %v24, 36
    %v26 = vpop.permute.xlu0 %25
    %vm27 = vcmask 318752
    %28 = vst.msk [vmem:[#allocation0] sm:$0x1] %vm27, %v26
    %s29 = scalar_lea.vmem %s0, 11
    %v30 = vld [vmem:[%s29] sm:$0x1]
    %31 = vrot.lane.b32.xlu0 %v30, 33
    %v32 = vpop.permute.xlu0 %31
    %vm33 = vcmask 294152
    %34 = vst.msk [vmem:[#allocation0] sm:$0x1] %vm33, %v32
    %s35 = scalar_lea.vmem %s0, 10
    %v36 = vld [vmem:[%s35] sm:$0x1]
    %37 = vrot.lane.b32.xlu0 %v36, 30
    %v38 = vpop.permute.xlu0 %37
    %vm39 = vcmask 269552
    %40 = vst.msk [vmem:[#allocation0] sm:$0x1] %vm39, %v38
    %s41 = scalar_lea.vmem %s0, 9
    %v42 = vld [vmem:[%s41] sm:$0x1]
    %43 = vrot.lane.b32.xlu0 %v42, 27
    %v44 = vpop.permute.xlu0 %43
    %vm45 = vcmask 244952
    %46 = vst.msk [vmem:[#allocation0] sm:$0x1] %vm45, %v44
    %s47 = scalar_lea.vmem %s0, 8
    %v48 = vld [vmem:[%s47] sm:$0x1]
    %49 = vrot.lane.b32.xlu0 %v48, 24
    %v50 = vpop.permute.xlu0 %49
    %vm51 = vcmask 220352
    %52 = vst.msk [vmem:[#allocation0] sm:$0x1] %vm51, %v50
    %s53 = scalar_lea.vmem %s0, 7
    %v54 = vld [vmem:[%s53] sm:$0x1]
    %55 = vrot.lane.b32.xlu0 %v54, 21
    %v56 = vpop.permute.xlu0 %55
    %vm57 = vcmask 195752
    %58 = vst.msk [vmem:[#allocation0] sm:$0x1] %vm57, %v56
    %s59 = scalar_lea.vmem %s0, 6
    %v60 = vld [vmem:[%s59] sm:$0x1]
    %61 = vrot.lane.b32.xlu0 %v60, 18
    %v62 = vpop.permute.xlu0 %61
    %vm63 = vcmask 171152
    %64 = vst.msk [vmem:[#allocation0] sm:$0x1] %vm63, %v62
    %s65 = scalar_lea.vmem %s0, 5
    %v66 = vld [vmem:[%s65] sm:$0x1]
    %67 = vrot.lane.b32.xlu0 %v66, 15
    %v68 = vpop.permute.xlu0 %67
    %vm69 = vcmask 146552
    %70 = vst.msk [vmem:[#allocation0] sm:$0x1] %vm69, %v68
    %s71 = scalar_lea.vmem %s0, 4
    %v72 = vld [vmem:[%s71] sm:$0x1]
    %73 = vrot.lane.b32.xlu0 %v72, 12
    %v74 = vpop.permute.xlu0 %73
    %vm75 = vcmask 121952
    %76 = vst.msk [vmem:[#allocation0] sm:$0x1] %vm75, %v74
    %s77 = scalar_lea.vmem %s0, 3
    %v78 = vld [vmem:[%s77] sm:$0x1]
    %79 = vrot.lane.b32.xlu0 %v78, 9
    %v80 = vpop.permute.xlu0 %79
    %vm81 = vcmask 97352
    %82 = vst.msk [vmem:[#allocation0] sm:$0x1] %vm81, %v80
    %s83 = scalar_lea.vmem %s0, 2
    %v84 = vld [vmem:[%s83] sm:$0x1]
    %85 = vrot.lane.b32.xlu0 %v84, 6
    %v86 = vpop.permute.xlu0 %85
    %vm87 = vcmask 72752
    %88 = vst.msk [vmem:[#allocation0] sm:$0x1] %vm87, %v86
    %s89 = scalar_lea.vmem %s0, 1
    %v90 = vld [vmem:[%s89] sm:$0x1]
    %91 = vrot.lane.b32.xlu0 %v90, 3
    %v92 = vpop.permute.xlu0 %91
    %vm93 = vcmask 48152
    %94 = vst.msk [vmem:[#allocation0] sm:$0x1] %vm93, %v92
    %s96 = sshllo.u32 0, 1
    %v98 = vld [vmem:[#allocation0] sm:%s96]
    %s99 = sshllo.u32 0, 1
    %100 = vst [vmem:[%s1] sm:%s99] %v98

// kernel: tile.28
$region0: #{tile.28}
  #allocation0 [shape = 's32[1]{0}', space=sflag, size = 0x4, scoped, tag = 'scoped memory for tile.28']
  %s0 = inlined_call_operand.vmem [shape: f32[8], index: 0, kind: input, shape index: {}]
  %s1 = inlined_call_operand.vmem [shape: f32[8,8], index: 1, kind: output, shape index: {}]
  // Predicated region
  $region2: #{tile.28} parent=0 // pred_check
    _
  $region3: #{tile.28} parent=0 // pred_check_branch
    %3 = sbr.rel (0) target = $region5
  $region4: #{tile.28} parent=0 // pred_region
    _
  $region5: #{tile.28} parent=0 // pred_fallthru
    _
  %v4 = vld [vmem:[%s0] ss:$0 sm:$0xff]
  %5 = vst [vmem:[%s1] sm:$0xff] %v4

// kernel: tile.29
$region0: #{tile.29}
  %s0 = inlined_call_operand.vmem [shape: f32[8,8], index: 0, kind: input, shape index: {}]
  %s1 = inlined_call_operand.vmem [shape: f32[1,64], index: 1, kind: output, shape index: {}]
  $region1: #{tile.29} parent=0
    #allocation0 [shape = 'u8[4096]{0}', space=vmem, size = 0x1000, scoped, tag = 'scoped mem for output reshape']
    %v2 = vld [vmem:[%s0] sm:$0x1]
    %vm3 = vcmask 64512
    %4 = vst.msk [vmem:[#allocation0] sm:$0x1] %vm3, %v2
    %s5 = scalar_lea.vmem %s0, 7
    %v6 = vld [vmem:[%s5] sm:$0x1]
    %7 = vrot.lane.b32.xlu0 %v6, 56
    %v8 = vpop.permute.xlu0 %7
    %vm9 = vcmask 523712
    %10 = vst.msk [vmem:[#allocation0] sm:$0x1] %vm9, %v8
    %s11 = scalar_lea.vmem %s0, 6
    %v12 = vld [vmem:[%s11] sm:$0x1]
    %13 = vrot.lane.b32.xlu0 %v12, 48
    %v14 = vpop.permute.xlu0 %13
    %vm15 = vcmask 458112
    %16 = vst.msk [vmem:[#allocation0] sm:$0x1] %vm15, %v14
    %s17 = scalar_lea.vmem %s0, 5
    %v18 = vld [vmem:[%s17] sm:$0x1]
    %19 = vrot.lane.b32.xlu0 %v18, 40
    %v20 = vpop.permute.xlu0 %19
    %vm21 = vcmask 392512
    %22 = vst.msk [vmem:[#allocation0] sm:$0x1] %vm21, %v20
    %s23 = scalar_lea.vmem %s0, 4
    %v24 = vld [vmem:[%s23] sm:$0x1]
    %25 = vrot.lane.b32.xlu0 %v24, 32
    %v26 = vpop.permute.xlu0 %25
    %vm27 = vcmask 326912
    %28 = vst.msk [vmem:[#allocation0] sm:$0x1] %vm27, %v26
    %s29 = scalar_lea.vmem %s0, 3
    %v30 = vld [vmem:[%s29] sm:$0x1]
    %31 = vrot.lane.b32.xlu0 %v30, 24
    %v32 = vpop.permute.xlu0 %31
    %vm33 = vcmask 261312
    %34 = vst.msk [vmem:[#allocation0] sm:$0x1] %vm33, %v32
    %s35 = scalar_lea.vmem %s0, 2
    %v36 = vld [vmem:[%s35] sm:$0x1]
    %37 = vrot.lane.b32.xlu0 %v36, 16
    %v38 = vpop.permute.xlu0 %37
    %vm39 = vcmask 195712
    %40 = vst.msk [vmem:[#allocation0] sm:$0x1] %vm39, %v38
    %s41 = scalar_lea.vmem %s0, 1
    %v42 = vld [vmem:[%s41] sm:$0x1]
    %43 = vrot.lane.b32.xlu0 %v42, 8
    %v44 = vpop.permute.xlu0 %43
    %vm45 = vcmask 130112
    %46 = vst.msk [vmem:[#allocation0] sm:$0x1] %vm45, %v44
    %s48 = sshllo.u32 0, 1
    %v50 = vld [vmem:[#allocation0] sm:%s48]
    %s51 = sshllo.u32 0, 1
    %52 = vst [vmem:[%s1] sm:%s51] %v50

// kernel: tile.33
$region0: #{tile.33}
  #allocation0 [shape = 's32[1]{0}', space=sflag, size = 0x4, scoped, tag = 'scoped memory for tile.33']
  %s0 = inlined_call_operand.vmem [shape: f32[16], index: 0, kind: input, shape index: {}]
  %s1 = inlined_call_operand.vmem [shape: f32[8,16], index: 1, kind: output, shape index: {}]
  // Predicated region
  $region2: #{tile.33} parent=0 // pred_check
    _
  $region3: #{tile.33} parent=0 // pred_check_branch
    %3 = sbr.rel (0) target = $region5
  $region4: #{tile.33} parent=0 // pred_region
    _
  $region5: #{tile.33} parent=0 // pred_fallthru
    _
  %v4 = vld [vmem:[%s0] ss:$0 sm:$0xff]
  %5 = vst [vmem:[%s1] sm:$0xff] %v4

// kernel: tile.34
$region0: #{tile.34}
  %s0 = inlined_call_operand.vmem [shape: f32[8,16], index: 0, kind: input, shape index: {}]
  %s1 = inlined_call_operand.vmem [shape: f32[1,128], index: 1, kind: output, shape index: {}]
  $region1: #{tile.34} parent=0
    #allocation0 [shape = 'u8[4096]{0}', space=vmem, size = 0x1000, scoped, tag = 'scoped mem for output reshape']
    %v2 = vld [vmem:[%s0] sm:$0x1]
    %vm3 = vcmask 130048
    %4 = vst.msk [vmem:[#allocation0] sm:$0x1] %vm3, %v2
    %s5 = scalar_lea.vmem %s0, 7
    %v6 = vld [vmem:[%s5] sm:$0x1]
    %7 = vrot.lane.b32.xlu0 %v6, 112
    %v8 = vpop.permute.xlu0 %7
    %vm9 = vcmask 1048448
    %10 = vst.msk [vmem:[#allocation0] sm:$0x1] %vm9, %v8
    %s11 = scalar_lea.vmem %s0, 6
    %v12 = vld [vmem:[%s11] sm:$0x1]
    %13 = vrot.lane.b32.xlu0 %v12, 96
    %v14 = vpop.permute.xlu0 %13
    %vm15 = vcmask 917248
    %16 = vst.msk [vmem:[#allocation0] sm:$0x1] %vm15, %v14
    %s17 = scalar_lea.vmem %s0, 5
    %v18 = vld [vmem:[%s17] sm:$0x1]
    %19 = vrot.lane.b32.xlu0 %v18, 80
    %v20 = vpop.permute.xlu0 %19
    %vm21 = vcmask 786048
    %22 = vst.msk [vmem:[#allocation0] sm:$0x1] %vm21, %v20
    %s23 = scalar_lea.vmem %s0, 4
    %v24 = vld [vmem:[%s23] sm:$0x1]
    %25 = vrot.lane.b32.xlu0 %v24, 64
    %v26 = vpop.permute.xlu0 %25
    %vm27 = vcmask 654848
    %28 = vst.msk [vmem:[#allocation0] sm:$0x1] %vm27, %v26
    %s29 = scalar_lea.vmem %s0, 3
    %v30 = vld [vmem:[%s29] sm:$0x1]
    %31 = vrot.lane.b32.xlu0 %v30, 48
    %v32 = vpop.permute.xlu0 %31
    %vm33 = vcmask 523648
    %34 = vst.msk [vmem:[#allocation0] sm:$0x1] %vm33, %v32
    %s35 = scalar_lea.vmem %s0, 2
    %v36 = vld [vmem:[%s35] sm:$0x1]
    %37 = vrot.lane.b32.xlu0 %v36, 32
    %v38 = vpop.permute.xlu0 %37
    %vm39 = vcmask 392448
    %40 = vst.msk [vmem:[#allocation0] sm:$0x1] %vm39, %v38
    %s41 = scalar_lea.vmem %s0, 1
    %v42 = vld [vmem:[%s41] sm:$0x1]
    %43 = vrot.lane.b32.xlu0 %v42, 16
    %v44 = vpop.permute.xlu0 %43
    %vm45 = vcmask 261248
    %46 = vst.msk [vmem:[#allocation0] sm:$0x1] %vm45, %v44
    %s48 = sshllo.u32 0, 1
    %v50 = vld [vmem:[#allocation0] sm:%s48]
    %s51 = sshllo.u32 0, 1
    %52 = vst [vmem:[%s1] sm:%s51] %v50

// kernel: conv_autoencoder_forward.1
$region0: #{conv_autoencoder_forward.1}
  #allocation0 [shape = 'u32[]', space=smem, size = 0x4, offset = 0x4, fixed_abs, tag = 'smem constant byte address 0x4 - core index']
  #allocation1 [shape = 'u32[144,128]{1,0:T(1,128)}', space=vmem, size = 0x12000, scoped, tag = 'internal scratch']
  %s0 = inlined_call_operand.vmem [shape: f32[2,16,48], index: 0, kind: input, shape index: {}]
  %s1 = inlined_call_operand.vmem [shape: f32[3,16,16], index: 1, kind: input, shape index: {}]
  %s2 = inlined_call_operand.vmem [shape: f32[3,48,256], index: 2, kind: input, shape index: {}]
  %s3 = inlined_call_operand.vmem [shape: f32[1,256], index: 3, kind: input, shape index: {}]
  %s4 = inlined_call_operand.vmem [shape: f32[8,16], index: 4, kind: input, shape index: {}]
  %s5 = inlined_call_operand.vmem [shape: f32[8,16], index: 5, kind: input, shape index: {}]
  %s6 = inlined_call_operand.vmem [shape: f32[256,128], index: 6, kind: input, shape index: {}]
  %s7 = inlined_call_operand.vmem [shape: f32[256,128], index: 7, kind: input, shape index: {}]
  %s8 = inlined_call_operand.vmem [shape: f32[3,8,8], index: 8, kind: input, shape index: {}]
  %s9 = inlined_call_operand.vmem [shape: f32[3,128,64], index: 9, kind: input, shape index: {}]
  %s10 = inlined_call_operand.vmem [shape: f32[1,64], index: 10, kind: input, shape index: {}]
  %s11 = inlined_call_operand.vmem [shape: f32[4,8], index: 11, kind: input, shape index: {}]
  %s12 = inlined_call_operand.vmem [shape: f32[4,8], index: 12, kind: input, shape index: {}]
  %s13 = inlined_call_operand.vmem [shape: f32[64,32], index: 13, kind: input, shape index: {}]
  %s14 = inlined_call_operand.vmem [shape: f32[64,32], index: 14, kind: input, shape index: {}]
  %s15 = inlined_call_operand.vmem [shape: f32[3,8,4], index: 15, kind: input, shape index: {}]
  %s16 = inlined_call_operand.vmem [shape: f32[3,32,128], index: 16, kind: input, shape index: {}]
  %s17 = inlined_call_operand.vmem [shape: f32[1,128], index: 17, kind: input, shape index: {}]
  %s18 = inlined_call_operand.vmem [shape: f32[3,16,8], index: 18, kind: input, shape index: {}]
  %s19 = inlined_call_operand.vmem [shape: f32[3,128,48], index: 19, kind: input, shape index: {}]
  %s20 = inlined_call_operand.vmem [shape: f32[1,48], index: 20, kind: input, shape index: {}]
  %s21 = inlined_call_operand.vmem [shape: f32[2,16,48], index: 21, kind: output, shape index: {}]
  %s22 = sld [smem:[#allocation0]]
  $region117: #{conv_autoencoder_forward.1} parent=0
    _
  %s24 = ssub.s32 1, %s22
  %s25 = scalar_select 0, %s24, %s22
  loop: start=0, step=1, limit=4
  $region2: #{conv_autoencoder_forward.1} parent=0 // loop_pre_header
    _
  $region3: #{conv_autoencoder_forward.1} parent=0 // loop_header
    %s27 = sphi 0, %s31
    %p28 = scmp.ge.s32.totalorder %s27, 4
    %s37 = sphi 0, %s39
    %s40 = sphi 0, %s37
    %s41 = sphi 0, %s40
    %s57 = sphi 0, %s41
    %s61 = sphi 0, %s61
    %s63 = sphi 0, %s61
    %s64 = sphi 0, %s63
    %s78 = sphi 0, %s64
    %s82 = sphi 0, %s82
    %s84 = sphi 0, %s82
    %s85 = sphi 0, %s84
    %s99 = sphi 0, %s85
    %s103 = sphi 0, %s103
    %s105 = sphi 0, %s103
    %s106 = sphi 0, %s105
    %s120 = sphi 0, %s106
    %s124 = sphi 0, %s124
    %s126 = sphi 0, %s124
    %s127 = sphi 0, %s126
    %s141 = sphi 0, %s127
    %s145 = sphi 0, %s145
    %s147 = sphi 0, %s145
    %s148 = sphi 0, %s147
    %s162 = sphi 0, %s148
    %s166 = sphi 0, %s166
    %s168 = sphi 0, %s166
    %s169 = sphi 0, %s168
    %s183 = sphi 0, %s169
    %s187 = sphi 0, %s187
    %s189 = sphi 0, %s187
    %s190 = sphi 0, %s189
    %s204 = sphi 0, %s190
    %s208 = sphi 0, %s208
    %s210 = sphi 0, %s208
    %s211 = sphi 0, %s210
    %s225 = sphi 0, %s211
    %s229 = sphi 0, %s229
    %s231 = sphi 0, %s229
    %s232 = sphi 0, %s231
    %s246 = sphi 0, %s232
    %s250 = sphi 0, %s250
    %s252 = sphi 0, %s250
    %s253 = sphi 0, %s252
    %s267 = sphi 0, %s253
    %s271 = sphi 0, %s271
    %s273 = sphi 0, %s271
    %s274 = sphi 0, %s273
    %s288 = sphi 0, %s274
    %s292 = sphi 0, %s292
    %s294 = sphi 0, %s292
    %s295 = sphi 0, %s294
    %s309 = sphi 0, %s295
    %s313 = sphi 0, %s313
    %s315 = sphi 0, %s313
    %s316 = sphi 0, %s315
    %s330 = sphi 0, %s316
    %s334 = sphi 0, %s334
    %s336 = sphi 0, %s334
    %s337 = sphi 0, %s336
    %s351 = sphi 0, %s337
    %s355 = sphi 0, %s355
    %s357 = sphi 0, %s355
    %s358 = sphi 0, %s357
    %s372 = sphi 0, %s358
    %s376 = sphi 0, %s376
    %s378 = sphi 0, %s376
    %s379 = sphi 0, %s378
    %s393 = sphi 0, %s379
    %s397 = sphi 0, %s397
    %s399 = sphi 0, %s397
    %s400 = sphi 0, %s399
    %s414 = sphi 0, %s400
    %s418 = sphi 0, %s418
    %s420 = sphi 0, %s418
    %s421 = sphi 0, %s420
    %s435 = sphi 0, %s421
    %s439 = sphi 0, %s439
    %s441 = sphi 0, %s439
    %s442 = sphi 0, %s441
    %s456 = sphi 0, %s442
    %s460 = sphi 0, %s460
    %s462 = sphi 0, %s460
    %s463 = sphi 0, %s462
    %s477 = sphi 0, %s463
    %s483 = sphi 0, %s485
    %s486 = sphi 0, %s483
    %s487 = sphi 0, %s486
    %s503 = sphi 0, %s487
  $region4: #{conv_autoencoder_forward.1} parent=0 // loop_header_branch
    %30 = sbr.rel (%p28) target = $region8
  $region5: #{conv_autoencoder_forward.1} parent=0 // loop_body
    %s32 = ssub.s32 %s27, 1
    %s33 = ssub.s32 %s27, 2
    %s34 = sadd.s32 %s27, 1
    %s35 = ssub.s32 %s27, %s34
    %p36 = scmp.eq.s32.totalorder %s35, 0
    %s38 = sadd.s32 %s37, 1
    %s39 = scalar_select %p36, %s37, %s38
    %p42 = pneg %p36
    %p43 = scmp.eq.s32.totalorder %s27, 1
    %p44 = por %p42, %p43
    %p45 = scmp.ne.s32.totalorder %s37, %s40
    %p46 = scmp.eq.s32.totalorder %s27, 0
    %p47 = por %p45, %p46
    %p48 = scmp.ne.s32.totalorder %s37, %s40
    %p49 = scmp.eq.s32.totalorder %s32, 1
    %p50 = por %p48, %p49
    %p51 = scmp.ne.s32.totalorder %s40, %s41
    %p52 = scmp.eq.s32.totalorder %s32, 0
    %p53 = por %p51, %p52
    %p54 = scmp.ne.s32.totalorder %s40, %s41
    %p55 = scmp.eq.s32.totalorder %s33, 1
    %p56 = por %p54, %p55
    %p58 = scmp.ne.s32.totalorder %s41, %s57
    %p59 = scmp.eq.s32.totalorder %s33, 0
    %p60 = por %p58, %p59
    %s62 = sadd.s32 %s61, 1
    %p65 = scmp.eq.s32.totalorder %s27, 1
    %p66 = scmp.ne.s32.totalorder %s61, %s63
    %p67 = scmp.eq.s32.totalorder %s27, 0
    %p68 = por %p66, %p67
    %p69 = scmp.ne.s32.totalorder %s61, %s63
    %p70 = scmp.eq.s32.totalorder %s32, 1
    %p71 = por %p69, %p70
    %p72 = scmp.ne.s32.totalorder %s63, %s64
    %p73 = scmp.eq.s32.totalorder %s32, 0
    %p74 = por %p72, %p73
    %p75 = scmp.ne.s32.totalorder %s63, %s64
    %p76 = scmp.eq.s32.totalorder %s33, 1
    %p77 = por %p75, %p76
    %p79 = scmp.ne.s32.totalorder %s64, %s78
    %p80 = scmp.eq.s32.totalorder %s33, 0
    %p81 = por %p79, %p80
    %s83 = sadd.s32 %s82, 1
    %p86 = scmp.eq.s32.totalorder %s27, 1
    %p87 = scmp.ne.s32.totalorder %s82, %s84
    %p88 = scmp.eq.s32.totalorder %s27, 0
    %p89 = por %p87, %p88
    %p90 = scmp.ne.s32.totalorder %s82, %s84
    %p91 = scmp.eq.s32.totalorder %s32, 1
    %p92 = por %p90, %p91
    %p93 = scmp.ne.s32.totalorder %s84, %s85
    %p94 = scmp.eq.s32.totalorder %s32, 0
    %p95 = por %p93, %p94
    %p96 = scmp.ne.s32.totalorder %s84, %s85
    %p97 = scmp.eq.s32.totalorder %s33, 1
    %p98 = por %p96, %p97
    %p100 = scmp.ne.s32.totalorder %s85, %s99
    %p101 = scmp.eq.s32.totalorder %s33, 0
    %p102 = por %p100, %p101
    %s104 = sadd.s32 %s103, 1
    %p107 = scmp.eq.s32.totalorder %s27, 1
    %p108 = scmp.ne.s32.totalorder %s103, %s105
    %p109 = scmp.eq.s32.totalorder %s27, 0
    %p110 = por %p108, %p109
    %p111 = scmp.ne.s32.totalorder %s103, %s105
    %p112 = scmp.eq.s32.totalorder %s32, 1
    %p113 = por %p111, %p112
    %p114 = scmp.ne.s32.totalorder %s105, %s106
    %p115 = scmp.eq.s32.totalorder %s32, 0
    %p116 = por %p114, %p115
    %p117 = scmp.ne.s32.totalorder %s105, %s106
    %p118 = scmp.eq.s32.totalorder %s33, 1
    %p119 = por %p117, %p118
    %p121 = scmp.ne.s32.totalorder %s106, %s120
    %p122 = scmp.eq.s32.totalorder %s33, 0
    %p123 = por %p121, %p122
    %s125 = sadd.s32 %s124, 1
    %p128 = scmp.eq.s32.totalorder %s27, 1
    %p129 = scmp.ne.s32.totalorder %s124, %s126
    %p130 = scmp.eq.s32.totalorder %s27, 0
    %p131 = por %p129, %p130
    %p132 = scmp.ne.s32.totalorder %s124, %s126
    %p133 = scmp.eq.s32.totalorder %s32, 1
    %p134 = por %p132, %p133
    %p135 = scmp.ne.s32.totalorder %s126, %s127
    %p136 = scmp.eq.s32.totalorder %s32, 0
    %p137 = por %p135, %p136
    %p138 = scmp.ne.s32.totalorder %s126, %s127
    %p139 = scmp.eq.s32.totalorder %s33, 1
    %p140 = por %p138, %p139
    %p142 = scmp.ne.s32.totalorder %s127, %s141
    %p143 = scmp.eq.s32.totalorder %s33, 0
    %p144 = por %p142, %p143
    %s146 = sadd.s32 %s145, 1
    %p149 = scmp.eq.s32.totalorder %s27, 1
    %p150 = scmp.ne.s32.totalorder %s145, %s147
    %p151 = scmp.eq.s32.totalorder %s27, 0
    %p152 = por %p150, %p151
    %p153 = scmp.ne.s32.totalorder %s145, %s147
    %p154 = scmp.eq.s32.totalorder %s32, 1
    %p155 = por %p153, %p154
    %p156 = scmp.ne.s32.totalorder %s147, %s148
    %p157 = scmp.eq.s32.totalorder %s32, 0
    %p158 = por %p156, %p157
    %p159 = scmp.ne.s32.totalorder %s147, %s148
    %p160 = scmp.eq.s32.totalorder %s33, 1
    %p161 = por %p159, %p160
    %p163 = scmp.ne.s32.totalorder %s148, %s162
    %p164 = scmp.eq.s32.totalorder %s33, 0
    %p165 = por %p163, %p164
    %s167 = sadd.s32 %s166, 1
    %p170 = scmp.eq.s32.totalorder %s27, 1
    %p171 = scmp.ne.s32.totalorder %s166, %s168
    %p172 = scmp.eq.s32.totalorder %s27, 0
    %p173 = por %p171, %p172
    %p174 = scmp.ne.s32.totalorder %s166, %s168
    %p175 = scmp.eq.s32.totalorder %s32, 1
    %p176 = por %p174, %p175
    %p177 = scmp.ne.s32.totalorder %s168, %s169
    %p178 = scmp.eq.s32.totalorder %s32, 0
    %p179 = por %p177, %p178
    %p180 = scmp.ne.s32.totalorder %s168, %s169
    %p181 = scmp.eq.s32.totalorder %s33, 1
    %p182 = por %p180, %p181
    %p184 = scmp.ne.s32.totalorder %s169, %s183
    %p185 = scmp.eq.s32.totalorder %s33, 0
    %p186 = por %p184, %p185
    %s188 = sadd.s32 %s187, 1
    %p191 = scmp.eq.s32.totalorder %s27, 1
    %p192 = scmp.ne.s32.totalorder %s187, %s189
    %p193 = scmp.eq.s32.totalorder %s27, 0
    %p194 = por %p192, %p193
    %p195 = scmp.ne.s32.totalorder %s187, %s189
    %p196 = scmp.eq.s32.totalorder %s32, 1
    %p197 = por %p195, %p196
    %p198 = scmp.ne.s32.totalorder %s189, %s190
    %p199 = scmp.eq.s32.totalorder %s32, 0
    %p200 = por %p198, %p199
    %p201 = scmp.ne.s32.totalorder %s189, %s190
    %p202 = scmp.eq.s32.totalorder %s33, 1
    %p203 = por %p201, %p202
    %p205 = scmp.ne.s32.totalorder %s190, %s204
    %p206 = scmp.eq.s32.totalorder %s33, 0
    %p207 = por %p205, %p206
    %s209 = sadd.s32 %s208, 1
    %p212 = scmp.eq.s32.totalorder %s27, 1
    %p213 = scmp.ne.s32.totalorder %s208, %s210
    %p214 = scmp.eq.s32.totalorder %s27, 0
    %p215 = por %p213, %p214
    %p216 = scmp.ne.s32.totalorder %s208, %s210
    %p217 = scmp.eq.s32.totalorder %s32, 1
    %p218 = por %p216, %p217
    %p219 = scmp.ne.s32.totalorder %s210, %s211
    %p220 = scmp.eq.s32.totalorder %s32, 0
    %p221 = por %p219, %p220
    %p222 = scmp.ne.s32.totalorder %s210, %s211
    %p223 = scmp.eq.s32.totalorder %s33, 1
    %p224 = por %p222, %p223
    %p226 = scmp.ne.s32.totalorder %s211, %s225
    %p227 = scmp.eq.s32.totalorder %s33, 0
    %p228 = por %p226, %p227
    %s230 = sadd.s32 %s229, 1
    %p233 = scmp.eq.s32.totalorder %s27, 1
    %p234 = scmp.ne.s32.totalorder %s229, %s231
    %p235 = scmp.eq.s32.totalorder %s27, 0
    %p236 = por %p234, %p235
    %p237 = scmp.ne.s32.totalorder %s229, %s231
    %p238 = scmp.eq.s32.totalorder %s32, 1
    %p239 = por %p237, %p238
    %p240 = scmp.ne.s32.totalorder %s231, %s232
    %p241 = scmp.eq.s32.totalorder %s32, 0
    %p242 = por %p240, %p241
    %p243 = scmp.ne.s32.totalorder %s231, %s232
    %p244 = scmp.eq.s32.totalorder %s33, 1
    %p245 = por %p243, %p244
    %p247 = scmp.ne.s32.totalorder %s232, %s246
    %p248 = scmp.eq.s32.totalorder %s33, 0
    %p249 = por %p247, %p248
    %s251 = sadd.s32 %s250, 1
    %p254 = scmp.eq.s32.totalorder %s27, 1
    %p255 = scmp.ne.s32.totalorder %s250, %s252
    %p256 = scmp.eq.s32.totalorder %s27, 0
    %p257 = por %p255, %p256
    %p258 = scmp.ne.s32.totalorder %s250, %s252
    %p259 = scmp.eq.s32.totalorder %s32, 1
    %p260 = por %p258, %p259
    %p261 = scmp.ne.s32.totalorder %s252, %s253
    %p262 = scmp.eq.s32.totalorder %s32, 0
    %p263 = por %p261, %p262
    %p264 = scmp.ne.s32.totalorder %s252, %s253
    %p265 = scmp.eq.s32.totalorder %s33, 1
    %p266 = por %p264, %p265
    %p268 = scmp.ne.s32.totalorder %s253, %s267
    %p269 = scmp.eq.s32.totalorder %s33, 0
    %p270 = por %p268, %p269
    %s272 = sadd.s32 %s271, 1
    %p275 = scmp.eq.s32.totalorder %s27, 1
    %p276 = scmp.ne.s32.totalorder %s271, %s273
    %p277 = scmp.eq.s32.totalorder %s27, 0
    %p278 = por %p276, %p277
    %p279 = scmp.ne.s32.totalorder %s271, %s273
    %p280 = scmp.eq.s32.totalorder %s32, 1
    %p281 = por %p279, %p280
    %p282 = scmp.ne.s32.totalorder %s273, %s274
    %p283 = scmp.eq.s32.totalorder %s32, 0
    %p284 = por %p282, %p283
    %p285 = scmp.ne.s32.totalorder %s273, %s274
    %p286 = scmp.eq.s32.totalorder %s33, 1
    %p287 = por %p285, %p286
    %p289 = scmp.ne.s32.totalorder %s274, %s288
    %p290 = scmp.eq.s32.totalorder %s33, 0
    %p291 = por %p289, %p290
    %s293 = sadd.s32 %s292, 1
    %p296 = scmp.eq.s32.totalorder %s27, 1
    %p297 = scmp.ne.s32.totalorder %s292, %s294
    %p298 = scmp.eq.s32.totalorder %s27, 0
    %p299 = por %p297, %p298
    %p300 = scmp.ne.s32.totalorder %s292, %s294
    %p301 = scmp.eq.s32.totalorder %s32, 1
    %p302 = por %p300, %p301
    %p303 = scmp.ne.s32.totalorder %s294, %s295
    %p304 = scmp.eq.s32.totalorder %s32, 0
    %p305 = por %p303, %p304
    %p306 = scmp.ne.s32.totalorder %s294, %s295
    %p307 = scmp.eq.s32.totalorder %s33, 1
    %p308 = por %p306, %p307
    %p310 = scmp.ne.s32.totalorder %s295, %s309
    %p311 = scmp.eq.s32.totalorder %s33, 0
    %p312 = por %p310, %p311
    %s314 = sadd.s32 %s313, 1
    %p317 = scmp.eq.s32.totalorder %s27, 1
    %p318 = scmp.ne.s32.totalorder %s313, %s315
    %p319 = scmp.eq.s32.totalorder %s27, 0
    %p320 = por %p318, %p319
    %p321 = scmp.ne.s32.totalorder %s313, %s315
    %p322 = scmp.eq.s32.totalorder %s32, 1
    %p323 = por %p321, %p322
    %p324 = scmp.ne.s32.totalorder %s315, %s316
    %p325 = scmp.eq.s32.totalorder %s32, 0
    %p326 = por %p324, %p325
    %p327 = scmp.ne.s32.totalorder %s315, %s316
    %p328 = scmp.eq.s32.totalorder %s33, 1
    %p329 = por %p327, %p328
    %p331 = scmp.ne.s32.totalorder %s316, %s330
    %p332 = scmp.eq.s32.totalorder %s33, 0
    %p333 = por %p331, %p332
    %s335 = sadd.s32 %s334, 1
    %p338 = scmp.eq.s32.totalorder %s27, 1
    %p339 = scmp.ne.s32.totalorder %s334, %s336
    %p340 = scmp.eq.s32.totalorder %s27, 0
    %p341 = por %p339, %p340
    %p342 = scmp.ne.s32.totalorder %s334, %s336
    %p343 = scmp.eq.s32.totalorder %s32, 1
    %p344 = por %p342, %p343
    %p345 = scmp.ne.s32.totalorder %s336, %s337
    %p346 = scmp.eq.s32.totalorder %s32, 0
    %p347 = por %p345, %p346
    %p348 = scmp.ne.s32.totalorder %s336, %s337
    %p349 = scmp.eq.s32.totalorder %s33, 1
    %p350 = por %p348, %p349
    %p352 = scmp.ne.s32.totalorder %s337, %s351
    %p353 = scmp.eq.s32.totalorder %s33, 0
    %p354 = por %p352, %p353
    %s356 = sadd.s32 %s355, 1
    %p359 = scmp.eq.s32.totalorder %s27, 1
    %p360 = scmp.ne.s32.totalorder %s355, %s357
    %p361 = scmp.eq.s32.totalorder %s27, 0
    %p362 = por %p360, %p361
    %p363 = scmp.ne.s32.totalorder %s355, %s357
    %p364 = scmp.eq.s32.totalorder %s32, 1
    %p365 = por %p363, %p364
    %p366 = scmp.ne.s32.totalorder %s357, %s358
    %p367 = scmp.eq.s32.totalorder %s32, 0
    %p368 = por %p366, %p367
    %p369 = scmp.ne.s32.totalorder %s357, %s358
    %p370 = scmp.eq.s32.totalorder %s33, 1
    %p371 = por %p369, %p370
    %p373 = scmp.ne.s32.totalorder %s358, %s372
    %p374 = scmp.eq.s32.totalorder %s33, 0
    %p375 = por %p373, %p374
    %s377 = sadd.s32 %s376, 1
    %p380 = scmp.eq.s32.totalorder %s27, 1
    %p381 = scmp.ne.s32.totalorder %s376, %s378
    %p382 = scmp.eq.s32.totalorder %s27, 0
    %p383 = por %p381, %p382
    %p384 = scmp.ne.s32.totalorder %s376, %s378
    %p385 = scmp.eq.s32.totalorder %s32, 1
    %p386 = por %p384, %p385
    %p387 = scmp.ne.s32.totalorder %s378, %s379
    %p388 = scmp.eq.s32.totalorder %s32, 0
    %p389 = por %p387, %p388
    %p390 = scmp.ne.s32.totalorder %s378, %s379
    %p391 = scmp.eq.s32.totalorder %s33, 1
    %p392 = por %p390, %p391
    %p394 = scmp.ne.s32.totalorder %s379, %s393
    %p395 = scmp.eq.s32.totalorder %s33, 0
    %p396 = por %p394, %p395
    %s398 = sadd.s32 %s397, 1
    %p401 = scmp.eq.s32.totalorder %s27, 1
    %p402 = scmp.ne.s32.totalorder %s397, %s399
    %p403 = scmp.eq.s32.totalorder %s27, 0
    %p404 = por %p402, %p403
    %p405 = scmp.ne.s32.totalorder %s397, %s399
    %p406 = scmp.eq.s32.totalorder %s32, 1
    %p407 = por %p405, %p406
    %p408 = scmp.ne.s32.totalorder %s399, %s400
    %p409 = scmp.eq.s32.totalorder %s32, 0
    %p410 = por %p408, %p409
    %p411 = scmp.ne.s32.totalorder %s399, %s400
    %p412 = scmp.eq.s32.totalorder %s33, 1
    %p413 = por %p411, %p412
    %p415 = scmp.ne.s32.totalorder %s400, %s414
    %p416 = scmp.eq.s32.totalorder %s33, 0
    %p417 = por %p415, %p416
    %s419 = sadd.s32 %s418, 1
    %p422 = scmp.eq.s32.totalorder %s27, 1
    %p423 = scmp.ne.s32.totalorder %s418, %s420
    %p424 = scmp.eq.s32.totalorder %s27, 0
    %p425 = por %p423, %p424
    %p426 = scmp.ne.s32.totalorder %s418, %s420
    %p427 = scmp.eq.s32.totalorder %s32, 1
    %p428 = por %p426, %p427
    %p429 = scmp.ne.s32.totalorder %s420, %s421
    %p430 = scmp.eq.s32.totalorder %s32, 0
    %p431 = por %p429, %p430
    %p432 = scmp.ne.s32.totalorder %s420, %s421
    %p433 = scmp.eq.s32.totalorder %s33, 1
    %p434 = por %p432, %p433
    %p436 = scmp.ne.s32.totalorder %s421, %s435
    %p437 = scmp.eq.s32.totalorder %s33, 0
    %p438 = por %p436, %p437
    %s440 = sadd.s32 %s439, 1
    %p443 = scmp.eq.s32.totalorder %s27, 1
    %p444 = scmp.ne.s32.totalorder %s439, %s441
    %p445 = scmp.eq.s32.totalorder %s27, 0
    %p446 = por %p444, %p445
    %p447 = scmp.ne.s32.totalorder %s439, %s441
    %p448 = scmp.eq.s32.totalorder %s32, 1
    %p449 = por %p447, %p448
    %p450 = scmp.ne.s32.totalorder %s441, %s442
    %p451 = scmp.eq.s32.totalorder %s32, 0
    %p452 = por %p450, %p451
    %p453 = scmp.ne.s32.totalorder %s441, %s442
    %p454 = scmp.eq.s32.totalorder %s33, 1
    %p455 = por %p453, %p454
    %p457 = scmp.ne.s32.totalorder %s442, %s456
    %p458 = scmp.eq.s32.totalorder %s33, 0
    %p459 = por %p457, %p458
    %s461 = sadd.s32 %s460, 1
    %p464 = scmp.eq.s32.totalorder %s27, 1
    %p465 = scmp.ne.s32.totalorder %s460, %s462
    %p466 = scmp.eq.s32.totalorder %s27, 0
    %p467 = por %p465, %p466
    %p468 = scmp.ne.s32.totalorder %s460, %s462
    %p469 = scmp.eq.s32.totalorder %s32, 1
    %p470 = por %p468, %p469
    %p471 = scmp.ne.s32.totalorder %s462, %s463
    %p472 = scmp.eq.s32.totalorder %s32, 0
    %p473 = por %p471, %p472
    %p474 = scmp.ne.s32.totalorder %s462, %s463
    %p475 = scmp.eq.s32.totalorder %s33, 1
    %p476 = por %p474, %p475
    %p478 = scmp.ne.s32.totalorder %s463, %s477
    %p479 = scmp.eq.s32.totalorder %s33, 0
    %p480 = por %p478, %p479
    %s481 = ssub.s32 %s27, %s34
    %p482 = scmp.eq.s32.totalorder %s481, 0
    %s484 = sadd.s32 %s483, 1
    %s485 = scalar_select %p482, %s483, %s484
    %p488 = pneg %p482
    %p489 = scmp.eq.s32.totalorder %s27, 1
    %p490 = por %p488, %p489
    %p491 = scmp.ne.s32.totalorder %s483, %s486
    %p492 = scmp.eq.s32.totalorder %s27, 0
    %p493 = por %p491, %p492
    %p494 = scmp.ne.s32.totalorder %s483, %s486
    %p495 = scmp.eq.s32.totalorder %s32, 1
    %p496 = por %p494, %p495
    %p497 = scmp.ne.s32.totalorder %s486, %s487
    %p498 = scmp.eq.s32.totalorder %s32, 0
    %p499 = por %p497, %p498
    %p500 = scmp.ne.s32.totalorder %s486, %s487
    %p501 = scmp.eq.s32.totalorder %s33, 1
    %p502 = por %p500, %p501
    %p504 = scmp.ne.s32.totalorder %s487, %s503
    %p505 = scmp.eq.s32.totalorder %s33, 0
    %p506 = por %p504, %p505
    %p507 = scmp.le.s32.totalorder 1, %s27
    %p508 = scmp.lt.s32.totalorder %s27, 3
    %p509 = pnand %p507, %p508
    %p510 = pneg %p509
    // Predicated region
    $region9: #{conv_autoencoder_forward.1} parent=5 // pred_check
      _
    $region10: #{conv_autoencoder_forward.1} parent=5 // pred_check_branch
      %512 = sbr.rel (%p509) target = $region12
    $region11: #{conv_autoencoder_forward.1} parent=5 // pred_region
      %s513 = ssub.s32 %s27, 1
      // Predicated region
      $region13: #{conv_autoencoder_forward.1} parent=11 // pred_check
        %p514 = pneg %p74
      $region14: #{conv_autoencoder_forward.1} parent=11 // pred_check_branch
        %516 = sbr.rel (%p514) target = $region16
      $region15: #{conv_autoencoder_forward.1} parent=11 // pred_region
        _
      $region16: #{conv_autoencoder_forward.1} parent=11 // pred_fallthru
        _
      // Predicated region
      $region17: #{conv_autoencoder_forward.1} parent=11 // pred_check
        %p517 = pneg %p95
      $region18: #{conv_autoencoder_forward.1} parent=11 // pred_check_branch
        %519 = sbr.rel (%p517) target = $region20
      $region19: #{conv_autoencoder_forward.1} parent=11 // pred_region
        _
      $region20: #{conv_autoencoder_forward.1} parent=11 // pred_fallthru
        _
      // Predicated region
      $region21: #{conv_autoencoder_forward.1} parent=11 // pred_check
        %p520 = pneg %p116
      $region22: #{conv_autoencoder_forward.1} parent=11 // pred_check_branch
        %522 = sbr.rel (%p520) target = $region24
      $region23: #{conv_autoencoder_forward.1} parent=11 // pred_region
        _
      $region24: #{conv_autoencoder_forward.1} parent=11 // pred_fallthru
        _
      // Predicated region
      $region25: #{conv_autoencoder_forward.1} parent=11 // pred_check
        %p523 = pneg %p137
      $region26: #{conv_autoencoder_forward.1} parent=11 // pred_check_branch
        %525 = sbr.rel (%p523) target = $region28
      $region27: #{conv_autoencoder_forward.1} parent=11 // pred_region
        _
      $region28: #{conv_autoencoder_forward.1} parent=11 // pred_fallthru
        _
      // Predicated region
      $region29: #{conv_autoencoder_forward.1} parent=11 // pred_check
        %p526 = pneg %p158
      $region30: #{conv_autoencoder_forward.1} parent=11 // pred_check_branch
        %528 = sbr.rel (%p526) target = $region32
      $region31: #{conv_autoencoder_forward.1} parent=11 // pred_region
        _
      $region32: #{conv_autoencoder_forward.1} parent=11 // pred_fallthru
        _
      // Predicated region
      $region33: #{conv_autoencoder_forward.1} parent=11 // pred_check
        %p529 = pneg %p179
      $region34: #{conv_autoencoder_forward.1} parent=11 // pred_check_branch
        %531 = sbr.rel (%p529) target = $region36
      $region35: #{conv_autoencoder_forward.1} parent=11 // pred_region
        _
      $region36: #{conv_autoencoder_forward.1} parent=11 // pred_fallthru
        _
      // Predicated region
      $region37: #{conv_autoencoder_forward.1} parent=11 // pred_check
        %p532 = pneg %p200
      $region38: #{conv_autoencoder_forward.1} parent=11 // pred_check_branch
        %534 = sbr.rel (%p532) target = $region40
      $region39: #{conv_autoencoder_forward.1} parent=11 // pred_region
        _
      $region40: #{conv_autoencoder_forward.1} parent=11 // pred_fallthru
        _
      // Predicated region
      $region41: #{conv_autoencoder_forward.1} parent=11 // pred_check
        %p535 = pneg %p221
      $region42: #{conv_autoencoder_forward.1} parent=11 // pred_check_branch
        %537 = sbr.rel (%p535) target = $region44
      $region43: #{conv_autoencoder_forward.1} parent=11 // pred_region
        _
      $region44: #{conv_autoencoder_forward.1} parent=11 // pred_fallthru
        _
      // Predicated region
      $region45: #{conv_autoencoder_forward.1} parent=11 // pred_check
        %p538 = pneg %p242
      $region46: #{conv_autoencoder_forward.1} parent=11 // pred_check_branch
        %540 = sbr.rel (%p538) target = $region48
      $region47: #{conv_autoencoder_forward.1} parent=11 // pred_region
        _
      $region48: #{conv_autoencoder_forward.1} parent=11 // pred_fallthru
        _
      // Predicated region
      $region49: #{conv_autoencoder_forward.1} parent=11 // pred_check
        %p541 = pneg %p263
      $region50: #{conv_autoencoder_forward.1} parent=11 // pred_check_branch
        %543 = sbr.rel (%p541) target = $region52
      $region51: #{conv_autoencoder_forward.1} parent=11 // pred_region
        _
      $region52: #{conv_autoencoder_forward.1} parent=11 // pred_fallthru
        _
      // Predicated region
      $region53: #{conv_autoencoder_forward.1} parent=11 // pred_check
        %p544 = pneg %p284
      $region54: #{conv_autoencoder_forward.1} parent=11 // pred_check_branch
        %546 = sbr.rel (%p544) target = $region56
      $region55: #{conv_autoencoder_forward.1} parent=11 // pred_region
        _
      $region56: #{conv_autoencoder_forward.1} parent=11 // pred_fallthru
        _
      // Predicated region
      $region57: #{conv_autoencoder_forward.1} parent=11 // pred_check
        %p547 = pneg %p305
      $region58: #{conv_autoencoder_forward.1} parent=11 // pred_check_branch
        %549 = sbr.rel (%p547) target = $region60
      $region59: #{conv_autoencoder_forward.1} parent=11 // pred_region
        _
      $region60: #{conv_autoencoder_forward.1} parent=11 // pred_fallthru
        _
      // Predicated region
      $region61: #{conv_autoencoder_forward.1} parent=11 // pred_check
        %p550 = pneg %p326
      $region62: #{conv_autoencoder_forward.1} parent=11 // pred_check_branch
        %552 = sbr.rel (%p550) target = $region64
      $region63: #{conv_autoencoder_forward.1} parent=11 // pred_region
        _
      $region64: #{conv_autoencoder_forward.1} parent=11 // pred_fallthru
        _
      // Predicated region
      $region65: #{conv_autoencoder_forward.1} parent=11 // pred_check
        %p553 = pneg %p347
      $region66: #{conv_autoencoder_forward.1} parent=11 // pred_check_branch
        %555 = sbr.rel (%p553) target = $region68
      $region67: #{conv_autoencoder_forward.1} parent=11 // pred_region
        _
      $region68: #{conv_autoencoder_forward.1} parent=11 // pred_fallthru
        _
      // Predicated region
      $region69: #{conv_autoencoder_forward.1} parent=11 // pred_check
        %p556 = pneg %p368
      $region70: #{conv_autoencoder_forward.1} parent=11 // pred_check_branch
        %558 = sbr.rel (%p556) target = $region72
      $region71: #{conv_autoencoder_forward.1} parent=11 // pred_region
        _
      $region72: #{conv_autoencoder_forward.1} parent=11 // pred_fallthru
        _
      // Predicated region
      $region73: #{conv_autoencoder_forward.1} parent=11 // pred_check
        %p559 = pneg %p389
      $region74: #{conv_autoencoder_forward.1} parent=11 // pred_check_branch
        %561 = sbr.rel (%p559) target = $region76
      $region75: #{conv_autoencoder_forward.1} parent=11 // pred_region
        _
      $region76: #{conv_autoencoder_forward.1} parent=11 // pred_fallthru
        _
      // Predicated region
      $region77: #{conv_autoencoder_forward.1} parent=11 // pred_check
        %p562 = pneg %p410
      $region78: #{conv_autoencoder_forward.1} parent=11 // pred_check_branch
        %564 = sbr.rel (%p562) target = $region80
      $region79: #{conv_autoencoder_forward.1} parent=11 // pred_region
        _
      $region80: #{conv_autoencoder_forward.1} parent=11 // pred_fallthru
        _
      // Predicated region
      $region81: #{conv_autoencoder_forward.1} parent=11 // pred_check
        %p565 = pneg %p431
      $region82: #{conv_autoencoder_forward.1} parent=11 // pred_check_branch
        %567 = sbr.rel (%p565) target = $region84
      $region83: #{conv_autoencoder_forward.1} parent=11 // pred_region
        _
      $region84: #{conv_autoencoder_forward.1} parent=11 // pred_fallthru
        _
      // Predicated region
      $region85: #{conv_autoencoder_forward.1} parent=11 // pred_check
        %p568 = pneg %p452
      $region86: #{conv_autoencoder_forward.1} parent=11 // pred_check_branch
        %570 = sbr.rel (%p568) target = $region88
      $region87: #{conv_autoencoder_forward.1} parent=11 // pred_region
        _
      $region88: #{conv_autoencoder_forward.1} parent=11 // pred_fallthru
        _
      // Predicated region
      $region89: #{conv_autoencoder_forward.1} parent=11 // pred_check
        %p571 = pneg %p473
      $region90: #{conv_autoencoder_forward.1} parent=11 // pred_check_branch
        %573 = sbr.rel (%p571) target = $region92
      $region91: #{conv_autoencoder_forward.1} parent=11 // pred_region
        _
      $region92: #{conv_autoencoder_forward.1} parent=11 // pred_fallthru
        _
    $region12: #{conv_autoencoder_forward.1} parent=5 // pred_fallthru
      _
    %p574 = scmp.lt.s32.totalorder %s27, 2
    // Predicated region
    $region93: #{conv_autoencoder_forward.1} parent=5 // pred_check
      %p575 = pneg %p574
    $region94: #{conv_autoencoder_forward.1} parent=5 // pred_check_branch
      %577 = sbr.rel (%p575) target = $region96
    $region95: #{conv_autoencoder_forward.1} parent=5 // pred_region
      // Predicated region
      $region97: #{conv_autoencoder_forward.1} parent=95 // pred_check
        %p578 = pneg %p47
      $region98: #{conv_autoencoder_forward.1} parent=95 // pred_check_branch
        %580 = sbr.rel (%p578) target = $region100
      $region99: #{conv_autoencoder_forward.1} parent=95 // pred_region
        %p581 = scmp.lt.s32.totalorder %s27, 1
        %s582 = scalar_select %p581, %s27, 1
        %s583 = smul.addr %s582, 2
        %s584 = smul.addr %s583, 8
        %s585 = scalar_lea.vmem %s0, %s584
      $region100: #{conv_autoencoder_forward.1} parent=95 // pred_fallthru
        _
    $region96: #{conv_autoencoder_forward.1} parent=5 // pred_fallthru
      _
    %p586 = scmp.le.s32.totalorder 1, %s27
    %p587 = scmp.lt.s32.totalorder %s27, 3
    %p588 = pnand %p586, %p587
    %p589 = pneg %p588
    // Predicated region
    $region101: #{conv_autoencoder_forward.1} parent=5 // pred_check
      _
    $region102: #{conv_autoencoder_forward.1} parent=5 // pred_check_branch
      %591 = sbr.rel (%p588) target = $region104
    $region103: #{conv_autoencoder_forward.1} parent=5 // pred_region
      %s592 = ssub.s32 %s27, 1
      %p593 = scmp.lt.s32.totalorder %s32, 1
      %s594 = scalar_select %p593, %s32, 1
      %s595 = smul.addr %s594, 2
      %s596 = smul.addr %s595, 8
      %s597 = scalar_lea.vmem %s0, %s596
      %p598 = pneg %p53
      %p599 = pneg %p50
      %p600 = pneg %p74
      %p601 = pneg %p71
      %p602 = pneg %p95
      %p603 = pneg %p92
      %p604 = pneg %p116
      %p605 = pneg %p113
      %p606 = pneg %p137
      %p607 = pneg %p134
      %p608 = pneg %p158
      %p609 = pneg %p155
      %p610 = pneg %p179
      %p611 = pneg %p176
      %p612 = pneg %p200
      %p613 = pneg %p197
      %p614 = pneg %p221
      %p615 = pneg %p218
      %p616 = pneg %p242
      %p617 = pneg %p239
      %p618 = pneg %p263
      %p619 = pneg %p260
      %p620 = pneg %p284
      %p621 = pneg %p281
      %p622 = pneg %p305
      %p623 = pneg %p302
      %p624 = pneg %p326
      %p625 = pneg %p323
      %p626 = pneg %p347
      %p627 = pneg %p344
      %p628 = pneg %p368
      %p629 = pneg %p365
      %p630 = pneg %p389
      %p631 = pneg %p386
      %p632 = pneg %p410
      %p633 = pneg %p407
      %p634 = pneg %p431
      %p635 = pneg %p428
      %p636 = pneg %p452
      %p637 = pneg %p449
      %p638 = pneg %p473
      %p639 = pneg %p470
      %p640 = pneg %p499
      %p641 = pneg %p496
      %p642 = scmp.lt.s32.totalorder %s32, 1
      %s643 = scalar_select %p642, %s32, 1
      %s644 = smul.addr %s643, 2
      %s645 = smul.addr %s644, 8
      %s646 = scalar_lea.vmem %s21, %s645
      %p647 = scmp.lt.s32.totalorder %s32, 1
      %s648 = scalar_select %p647, %s32, 1
      %s649 = smul.addr %s648, 2
      %s650 = smul.addr %s649, 8
      %s651 = scalar_lea.vmem %s0, %s650
      %p652 = scmp.lt.s32.totalorder %s32, 1
      %s653 = scalar_select %p652, %s32, 1
      %s654 = smul.addr %s653, 2
      %s655 = smul.addr %s654, 8
      %s656 = scalar_lea.vmem %s21, %s655
      %v657 = vld [vmem:[%s651] sm:$0xff]
      %v658 = vld [vmem:[%s651 + $0x8] sm:$0xff]
      %v659 = vld [vmem:[%s1] sm:$0xff]
      %v660 = vld [vmem:[%s1 + $0x8] sm:$0xff]
      %vm661 = vcmask 130048
      %v663 = vsel %vm661, %v659, 0
      %v666 = vsel %vm661, %v660, 0
      %668 = vmatprep.subr.mxu0 0.0
      %669 = vmatpush1.msra.mxu0 %v657
      %670 = vmatprep.subr.mxu0 0.0
      %671 = vmatpush1.msra.mxu0 %v658
      %672 = vmatprep.subr.mxu0 0.0
      %673 = vmatpush1.msra.mxu0 0.0
      %674 = vmatprep.subr.mxu0 0.0
      %675 = vmatpush1.msra.mxu0 0.0
      %676 = vmatprep.subr.mxu0 0.0
      %677 = vmatpush1.msra.mxu0 0.0
      %678 = vmatprep.subr.mxu0 0.0
      %679 = vmatpush1.msra.mxu0 0.0
      %680 = vmatprep.subr.mxu0 0.0
      %681 = vmatpush1.msra.mxu0 0.0
      %682 = vmatprep.subr.mxu0 0.0
      %683 = vmatpush1.msra.mxu0 0.0
      %684 = vmatprep.subr.mxu0 0.0
      %685 = vmatpush1.msra.mxu0 0.0
      %686 = vmatprep.subr.mxu0 0.0
      %687 = vmatpush1.msra.mxu0 0.0
      %688 = vmatprep.subr.mxu0 0.0
      %689 = vmatpush1.msra.mxu0 0.0
      %690 = vmatprep.subr.mxu0 0.0
      %691 = vmatpush1.msra.mxu0 0.0
      %692 = vmatprep.subr.mxu0 0.0
      %693 = vmatpush1.msra.mxu0 0.0
      %694 = vmatprep.subr.mxu0 0.0
      %695 = vmatpush1.msra.mxu0 0.0
      %696 = vmatprep.subr.mxu0 0.0
      %697 = vmatpush1.msra.mxu0 0.0
      %698 = vmatprep.subr.mxu0 0.0
      %699 = vmatpush1.msra.mxu0 0.0
      %700 = vmatprep.subr.mxu0 0.0
      %701 = vmatpush1.msra.mxu0 0.0
      %702 = vmatprep.subr.mxu0 0.0
      %703 = vmatpush1.msra.mxu0 0.0
      %704 = vmatprep.subr.mxu0 0.0
      %705 = vmatpush1.msra.mxu0 0.0
      %706 = vmatprep.subr.mxu0 0.0
      %707 = vmatpush1.msra.mxu0 0.0
      %708 = vmatprep.subr.mxu0 0.0
      %709 = vmatpush1.msra.mxu0 0.0
      %710 = vmatprep.subr.mxu0 0.0
      %711 = vmatpush1.msra.mxu0 0.0
      %712 = vmatprep.subr.mxu0 0.0
      %713 = vmatpush1.msra.mxu0 0.0
      %714 = vmatprep.subr.mxu0 0.0
      %715 = vmatpush1.msra.mxu0 0.0
      %716 = vmatprep.subr.mxu0 0.0
      %717 = vmatpush1.msra.mxu0 0.0
      %718 = vmatprep.subr.mxu0 0.0
      %719 = vmatpush1.msra.mxu0 0.0
      %720 = vmatprep.subr.mxu0 0.0
      %721 = vmatpush1.msra.mxu0 0.0
      %722 = vmatprep.subr.mxu0 0.0
      %723 = vmatpush1.msra.mxu0 0.0
      %724 = vmatprep.subr.mxu0 0.0
      %725 = vmatpush1.msra.mxu0 0.0
      %726 = vmatprep.subr.mxu0 0.0
      %727 = vmatpush1.msra.mxu0 0.0
      %728 = vmatprep.subr.mxu0 0.0
      %729 = vmatpush1.msra.mxu0 0.0
      %730 = vmatprep.subr.mxu0 0.0
      %731 = vmatpush1.msra.mxu0 0.0
      %732 = vmatprep.mubr.f32.mxu0 0.0
      %733 = vmatmul.mubr.f32.gmra.mrb[0].mxu0 %v663
      %v734 = vpop.f32.mrb[0].mxu0
      %v735 = vadd.f32 0.0, %v734
      %v736 = vpop.f32.mrb[0].mxu0
      %737 = vmatprep.mubr.f32.mxu0 0.0
      %738 = vmatmul.mubr.f32.gmra.mrb[0].mxu0 %v666
      %v739 = vpop.f32.mrb[0].mxu0
      %v740 = vadd.f32 0.0, %v739
      %v741 = vpop.f32.mrb[0].mxu0
      %742 = vdwg.mxu0
      %v743 = vld [vmem:[%s2] sm:$0xff]
      %v744 = vld [vmem:[%s2 + $0x8] sm:$0xff]
      %v745 = vld [vmem:[%s2 + $0x10] sm:$0xff]
      %v746 = vld [vmem:[%s2 + $0x18] sm:$0xff]
      %v747 = vld [vmem:[%s2 + $0x20] sm:$0xff]
      %v748 = vld [vmem:[%s2 + $0x28] sm:$0xff]
      %v749 = vld [vmem:[%s2 + $0x30] sm:$0xff]
      %v750 = vld [vmem:[%s2 + $0x38] sm:$0xff]
      %v751 = vld [vmem:[%s2 + $0x40] sm:$0xff]
      %v752 = vld [vmem:[%s2 + $0x48] sm:$0xff]
      %v753 = vld [vmem:[%s2 + $0x50] sm:$0xff]
      %v754 = vld [vmem:[%s2 + $0x58] sm:$0xff]
      %s755 = scalar_lea.vmem %s1, 16
      %v756 = vld [vmem:[%s755] sm:$0xff]
      %v757 = vld [vmem:[%s755 + $0x8] sm:$0xff]
      %v759 = vsel %vm661, %v756, 0
      %v762 = vsel %vm661, %v757, 0
      %764 = vmatprep.subr.mxu0 0.0
      %765 = vmatpush1.msra.mxu0 %v657
      %766 = vmatprep.subr.mxu0 0.0
      %767 = vmatpush1.msra.mxu0 %v658
      %768 = vmatprep.subr.mxu0 0.0
      %769 = vmatpush1.msra.mxu0 0.0
      %770 = vmatprep.subr.mxu0 0.0
      %771 = vmatpush1.msra.mxu0 0.0
      %772 = vmatprep.subr.mxu0 0.0
      %773 = vmatpush1.msra.mxu0 0.0
      %774 = vmatprep.subr.mxu0 0.0
      %775 = vmatpush1.msra.mxu0 0.0
      %776 = vmatprep.subr.mxu0 0.0
      %777 = vmatpush1.msra.mxu0 0.0
      %778 = vmatprep.subr.mxu0 0.0
      %779 = vmatpush1.msra.mxu0 0.0
      %780 = vmatprep.subr.mxu0 0.0
      %781 = vmatpush1.msra.mxu0 0.0
      %782 = vmatprep.subr.mxu0 0.0
      %783 = vmatpush1.msra.mxu0 0.0
      %784 = vmatprep.subr.mxu0 0.0
      %785 = vmatpush1.msra.mxu0 0.0
      %786 = vmatprep.subr.mxu0 0.0
      %787 = vmatpush1.msra.mxu0 0.0
      %788 = vmatprep.subr.mxu0 0.0
      %789 = vmatpush1.msra.mxu0 0.0
      %790 = vmatprep.subr.mxu0 0.0
      %791 = vmatpush1.msra.mxu0 0.0
      %792 = vmatprep.subr.mxu0 0.0
      %793 = vmatpush1.msra.mxu0 0.0
      %794 = vmatprep.subr.mxu0 0.0
      %795 = vmatpush1.msra.mxu0 0.0
      %796 = vmatprep.subr.mxu0 0.0
      %797 = vmatpush1.msra.mxu0 0.0
      %798 = vmatprep.subr.mxu0 0.0
      %799 = vmatpush1.msra.mxu0 0.0
      %800 = vmatprep.subr.mxu0 0.0
      %801 = vmatpush1.msra.mxu0 0.0
      %802 = vmatprep.subr.mxu0 0.0
      %803 = vmatpush1.msra.mxu0 0.0
      %804 = vmatprep.subr.mxu0 0.0
      %805 = vmatpush1.msra.mxu0 0.0
      %806 = vmatprep.subr.mxu0 0.0
      %807 = vmatpush1.msra.mxu0 0.0
      %808 = vmatprep.subr.mxu0 0.0
      %809 = vmatpush1.msra.mxu0 0.0
      %810 = vmatprep.subr.mxu0 0.0
      %811 = vmatpush1.msra.mxu0 0.0
      %812 = vmatprep.subr.mxu0 0.0
      %813 = vmatpush1.msra.mxu0 0.0
      %814 = vmatprep.subr.mxu0 0.0
      %815 = vmatpush1.msra.mxu0 0.0
      %816 = vmatprep.subr.mxu0 0.0
      %817 = vmatpush1.msra.mxu0 0.0
      %818 = vmatprep.subr.mxu0 0.0
      %819 = vmatpush1.msra.mxu0 0.0
      %820 = vmatprep.subr.mxu0 0.0
      %821 = vmatpush1.msra.mxu0 0.0
      %822 = vmatprep.subr.mxu0 0.0
      %823 = vmatpush1.msra.mxu0 0.0
      %824 = vmatprep.subr.mxu0 0.0
      %825 = vmatpush1.msra.mxu0 0.0
      %826 = vmatprep.subr.mxu0 0.0
      %827 = vmatpush1.msra.mxu0 0.0
      %828 = vmatprep.mubr.f32.mxu0 0.0
      %829 = vmatmul.mubr.f32.gmra.mrb[0].mxu0 %v759
      %v830 = vpop.f32.mrb[0].mxu0
      %v831 = vadd.f32 0.0, %v830
      %v832 = vpop.f32.mrb[0].mxu0
      %833 = vmatprep.mubr.f32.mxu0 0.0
      %834 = vmatmul.mubr.f32.gmra.mrb[0].mxu0 %v762
      %v835 = vpop.f32.mrb[0].mxu0
      %v836 = vadd.f32 0.0, %v835
      %v837 = vpop.f32.mrb[0].mxu0
      %838 = vdwg.mxu0
      %s839 = scalar_lea.vmem %s2, 96
      %v840 = vld [vmem:[%s839] sm:$0xff]
      %v841 = vld [vmem:[%s839 + $0x8] sm:$0xff]
      %v842 = vld [vmem:[%s839 + $0x10] sm:$0xff]
      %v843 = vld [vmem:[%s839 + $0x18] sm:$0xff]
      %v844 = vld [vmem:[%s839 + $0x20] sm:$0xff]
      %v845 = vld [vmem:[%s839 + $0x28] sm:$0xff]
      %v846 = vld [vmem:[%s839 + $0x30] sm:$0xff]
      %v847 = vld [vmem:[%s839 + $0x38] sm:$0xff]
      %v848 = vld [vmem:[%s839 + $0x40] sm:$0xff]
      %v849 = vld [vmem:[%s839 + $0x48] sm:$0xff]
      %v850 = vld [vmem:[%s839 + $0x50] sm:$0xff]
      %v851 = vld [vmem:[%s839 + $0x58] sm:$0xff]
      %vm852 = vcmask 392192
      %v854 = vsel %vm852, %v831, 0
      %v857 = vsel %vm852, %v836, 0
      %859 = vmatprep.subr.mxu0 %v841
      %860 = vmatpush1.msra.mxu0 %v840
      %861 = vmatprep.subr.mxu0 %v843
      %862 = vmatpush1.msra.mxu0 %v842
      %863 = vmatprep.subr.mxu0 %v845
      %864 = vmatpush1.msra.mxu0 %v844
      %865 = vmatprep.subr.mxu0 %v847
      %866 = vmatpush1.msra.mxu0 %v846
      %867 = vmatprep.subr.mxu0 %v849
      %868 = vmatpush1.msra.mxu0 %v848
      %869 = vmatprep.subr.mxu0 %v851
      %870 = vmatpush1.msra.mxu0 %v850
      %871 = vmatprep.subr.mxu0 0.0
      %872 = vmatpush1.msra.mxu0 0.0
      %873 = vmatprep.subr.mxu0 0.0
      %874 = vmatpush1.msra.mxu0 0.0
      %875 = vmatprep.subr.mxu0 0.0
      %876 = vmatpush1.msra.mxu0 0.0
      %877 = vmatprep.subr.mxu0 0.0
      %878 = vmatpush1.msra.mxu0 0.0
      %879 = vmatprep.subr.mxu0 0.0
      %880 = vmatpush1.msra.mxu0 0.0
      %881 = vmatprep.subr.mxu0 0.0
      %882 = vmatpush1.msra.mxu0 0.0
      %883 = vmatprep.subr.mxu0 0.0
      %884 = vmatpush1.msra.mxu0 0.0
      %885 = vmatprep.subr.mxu0 0.0
      %886 = vmatpush1.msra.mxu0 0.0
      %887 = vmatprep.subr.mxu0 0.0
      %888 = vmatpush1.msra.mxu0 0.0
      %889 = vmatprep.subr.mxu0 0.0
      %890 = vmatpush1.msra.mxu0 0.0
      %891 = vmatprep.subr.mxu0 0.0
      %892 = vmatpush1.msra.mxu0 0.0
      %893 = vmatprep.subr.mxu0 0.0
      %894 = vmatpush1.msra.mxu0 0.0
      %895 = vmatprep.subr.mxu0 0.0
      %896 = vmatpush1.msra.mxu0 0.0
      %897 = vmatprep.subr.mxu0 0.0
      %898 = vmatpush1.msra.mxu0 0.0
      %899 = vmatprep.subr.mxu0 0.0
      %900 = vmatpush1.msra.mxu0 0.0
      %901 = vmatprep.subr.mxu0 0.0
      %902 = vmatpush1.msra.mxu0 0.0
      %903 = vmatprep.subr.mxu0 0.0
      %904 = vmatpush1.msra.mxu0 0.0
      %905 = vmatprep.subr.mxu0 0.0
      %906 = vmatpush1.msra.mxu0 0.0
      %907 = vmatprep.subr.mxu0 0.0
      %908 = vmatpush1.msra.mxu0 0.0
      %909 = vmatprep.subr.mxu0 0.0
      %910 = vmatpush1.msra.mxu0 0.0
      %911 = vmatprep.subr.mxu0 0.0
      %912 = vmatpush1.msra.mxu0 0.0
      %913 = vmatprep.subr.mxu0 0.0
      %914 = vmatpush1.msra.mxu0 0.0
      %915 = vmatprep.subr.mxu0 0.0
      %916 = vmatpush1.msra.mxu0 0.0
      %917 = vmatprep.subr.mxu0 0.0
      %918 = vmatpush1.msra.mxu0 0.0
      %919 = vmatprep.subr.mxu0 0.0
      %920 = vmatpush1.msra.mxu0 0.0
      %921 = vmatprep.subr.mxu0 0.0
      %922 = vmatpush1.msra.mxu0 0.0
      %923 = vmatprep.mubr.f32.mxu0 0.0
      %924 = vmatmul.mubr.f32.gmra.mrb[0].mxu0 %v854
      %v925 = vpop.f32.mrb[0].mxu0
      %v926 = vadd.f32 0.0, %v925
      %v927 = vpop.f32.mrb[0].mxu0
      %v928 = vadd.f32 0.0, %v927
      %929 = vmatprep.mubr.f32.mxu0 0.0
      %930 = vmatmul.mubr.f32.gmra.mrb[0].mxu0 %v857
      %v931 = vpop.f32.mrb[0].mxu0
      %v932 = vadd.f32 0.0, %v931
      %v933 = vpop.f32.mrb[0].mxu0
      %v934 = vadd.f32 0.0, %v933
      %935 = vdwg.mxu0
      %v937 = vsel %vm852, %v735, 0
      %v940 = vsel %vm852, %v740, 0
      %942 = vmatprep.subr.mxu0 %v744
      %943 = vmatpush1.msra.mxu0 %v743
      %944 = vmatprep.subr.mxu0 %v746
      %945 = vmatpush1.msra.mxu0 %v745
      %946 = vmatprep.subr.mxu0 %v748
      %947 = vmatpush1.msra.mxu0 %v747
      %948 = vmatprep.subr.mxu0 %v750
      %949 = vmatpush1.msra.mxu0 %v749
      %950 = vmatprep.subr.mxu0 %v752
      %951 = vmatpush1.msra.mxu0 %v751
      %952 = vmatprep.subr.mxu0 %v754
      %953 = vmatpush1.msra.mxu0 %v753
      %954 = vmatprep.subr.mxu0 0.0
      %955 = vmatpush1.msra.mxu0 0.0
      %956 = vmatprep.subr.mxu0 0.0
      %957 = vmatpush1.msra.mxu0 0.0
      %958 = vmatprep.subr.mxu0 0.0
      %959 = vmatpush1.msra.mxu0 0.0
      %960 = vmatprep.subr.mxu0 0.0
      %961 = vmatpush1.msra.mxu0 0.0
      %962 = vmatprep.subr.mxu0 0.0
      %963 = vmatpush1.msra.mxu0 0.0
      %964 = vmatprep.subr.mxu0 0.0
      %965 = vmatpush1.msra.mxu0 0.0
      %966 = vmatprep.subr.mxu0 0.0
      %967 = vmatpush1.msra.mxu0 0.0
      %968 = vmatprep.subr.mxu0 0.0
      %969 = vmatpush1.msra.mxu0 0.0
      %970 = vmatprep.subr.mxu0 0.0
      %971 = vmatpush1.msra.mxu0 0.0
      %972 = vmatprep.subr.mxu0 0.0
      %973 = vmatpush1.msra.mxu0 0.0
      %974 = vmatprep.subr.mxu0 0.0
      %975 = vmatpush1.msra.mxu0 0.0
      %976 = vmatprep.subr.mxu0 0.0
      %977 = vmatpush1.msra.mxu0 0.0
      %978 = vmatprep.subr.mxu0 0.0
      %979 = vmatpush1.msra.mxu0 0.0
      %980 = vmatprep.subr.mxu0 0.0
      %981 = vmatpush1.msra.mxu0 0.0
      %982 = vmatprep.subr.mxu0 0.0
      %983 = vmatpush1.msra.mxu0 0.0
      %984 = vmatprep.subr.mxu0 0.0
      %985 = vmatpush1.msra.mxu0 0.0
      %986 = vmatprep.subr.mxu0 0.0
      %987 = vmatpush1.msra.mxu0 0.0
      %988 = vmatprep.subr.mxu0 0.0
      %989 = vmatpush1.msra.mxu0 0.0
      %990 = vmatprep.subr.mxu0 0.0
      %991 = vmatpush1.msra.mxu0 0.0
      %992 = vmatprep.subr.mxu0 0.0
      %993 = vmatpush1.msra.mxu0 0.0
      %994 = vmatprep.subr.mxu0 0.0
      %995 = vmatpush1.msra.mxu0 0.0
      %996 = vmatprep.subr.mxu0 0.0
      %997 = vmatpush1.msra.mxu0 0.0
      %998 = vmatprep.subr.mxu0 0.0
      %999 = vmatpush1.msra.mxu0 0.0
      %1000 = vmatprep.subr.mxu0 0.0
      %1001 = vmatpush1.msra.mxu0 0.0
      %1002 = vmatprep.subr.mxu0 0.0
      %1003 = vmatpush1.msra.mxu0 0.0
      %1004 = vmatprep.subr.mxu0 0.0
      %1005 = vmatpush1.msra.mxu0 0.0
      %1006 = vmatprep.mubr.f32.mxu0 0.0
      %1007 = vmatmul.mubr.f32.gmra.mrb[0].mxu0 %v937
      %v1008 = vpop.f32.mrb[0].mxu0
      %v1009 = vadd.f32 %v926, %v1008
      %v1010 = vpop.f32.mrb[0].mxu0
      %v1011 = vadd.f32 %v928, %v1010
      %1012 = vmatprep.mubr.f32.mxu0 0.0
      %1013 = vmatmul.mubr.f32.gmra.mrb[0].mxu0 %v940
      %v1014 = vpop.f32.mrb[0].mxu0
      %v1015 = vadd.f32 %v932, %v1014
      %v1016 = vpop.f32.mrb[0].mxu0
      %v1017 = vadd.f32 %v934, %v1016
      %1018 = vdwg.mxu0
      %s1019 = scalar_lea.vmem %s1, 32
      %v1020 = vld [vmem:[%s1019] sm:$0xff]
      %v1021 = vld [vmem:[%s1019 + $0x8] sm:$0xff]
      %v1023 = vsel %vm661, %v1020, 0
      %v1026 = vsel %vm661, %v1021, 0
      %1028 = vmatprep.subr.mxu0 0.0
      %1029 = vmatpush1.msra.mxu0 %v657
      %1030 = vmatprep.subr.mxu0 0.0
      %1031 = vmatpush1.msra.mxu0 %v658
      %1032 = vmatprep.subr.mxu0 0.0
      %1033 = vmatpush1.msra.mxu0 0.0
      %1034 = vmatprep.subr.mxu0 0.0
      %1035 = vmatpush1.msra.mxu0 0.0
      %1036 = vmatprep.subr.mxu0 0.0
      %1037 = vmatpush1.msra.mxu0 0.0
      %1038 = vmatprep.subr.mxu0 0.0
      %1039 = vmatpush1.msra.mxu0 0.0
      %1040 = vmatprep.subr.mxu0 0.0
      %1041 = vmatpush1.msra.mxu0 0.0
      %1042 = vmatprep.subr.mxu0 0.0
      %1043 = vmatpush1.msra.mxu0 0.0
      %1044 = vmatprep.subr.mxu0 0.0
      %1045 = vmatpush1.msra.mxu0 0.0
      %1046 = vmatprep.subr.mxu0 0.0
      %1047 = vmatpush1.msra.mxu0 0.0
      %1048 = vmatprep.subr.mxu0 0.0
      %1049 = vmatpush1.msra.mxu0 0.0
      %1050 = vmatprep.subr.mxu0 0.0
      %1051 = vmatpush1.msra.mxu0 0.0
      %1052 = vmatprep.subr.mxu0 0.0
      %1053 = vmatpush1.msra.mxu0 0.0
      %1054 = vmatprep.subr.mxu0 0.0
      %1055 = vmatpush1.msra.mxu0 0.0
      %1056 = vmatprep.subr.mxu0 0.0
      %1057 = vmatpush1.msra.mxu0 0.0
      %1058 = vmatprep.subr.mxu0 0.0
      %1059 = vmatpush1.msra.mxu0 0.0
      %1060 = vmatprep.subr.mxu0 0.0
      %1061 = vmatpush1.msra.mxu0 0.0
      %1062 = vmatprep.subr.mxu0 0.0
      %1063 = vmatpush1.msra.mxu0 0.0
      %1064 = vmatprep.subr.mxu0 0.0
      %1065 = vmatpush1.msra.mxu0 0.0
      %1066 = vmatprep.subr.mxu0 0.0
      %1067 = vmatpush1.msra.mxu0 0.0
      %1068 = vmatprep.subr.mxu0 0.0
      %1069 = vmatpush1.msra.mxu0 0.0
      %1070 = vmatprep.subr.mxu0 0.0
      %1071 = vmatpush1.msra.mxu0 0.0
      %1072 = vmatprep.subr.mxu0 0.0
      %1073 = vmatpush1.msra.mxu0 0.0
      %1074 = vmatprep.subr.mxu0 0.0
      %1075 = vmatpush1.msra.mxu0 0.0
      %1076 = vmatprep.subr.mxu0 0.0
      %1077 = vmatpush1.msra.mxu0 0.0
      %1078 = vmatprep.subr.mxu0 0.0
      %1079 = vmatpush1.msra.mxu0 0.0
      %1080 = vmatprep.subr.mxu0 0.0
      %1081 = vmatpush1.msra.mxu0 0.0
      %1082 = vmatprep.subr.mxu0 0.0
      %1083 = vmatpush1.msra.mxu0 0.0
      %1084 = vmatprep.subr.mxu0 0.0
      %1085 = vmatpush1.msra.mxu0 0.0
      %1086 = vmatprep.subr.mxu0 0.0
      %1087 = vmatpush1.msra.mxu0 0.0
      %1088 = vmatprep.subr.mxu0 0.0
      %1089 = vmatpush1.msra.mxu0 0.0
      %1090 = vmatprep.subr.mxu0 0.0
      %1091 = vmatpush1.msra.mxu0 0.0
      %1092 = vmatprep.mubr.f32.mxu0 0.0
      %1093 = vmatmul.mubr.f32.gmra.mrb[0].mxu0 %v1023
      %v1094 = vpop.f32.mrb[0].mxu0
      %v1095 = vadd.f32 0.0, %v1094
      %v1096 = vpop.f32.mrb[0].mxu0
      %1097 = vmatprep.mubr.f32.mxu0 0.0
      %1098 = vmatmul.mubr.f32.gmra.mrb[0].mxu0 %v1026
      %v1099 = vpop.f32.mrb[0].mxu0
      %v1100 = vadd.f32 0.0, %v1099
      %v1101 = vpop.f32.mrb[0].mxu0
      %1102 = vdwg.mxu0
      %s1103 = scalar_lea.vmem %s2, 192
      %v1104 = vld [vmem:[%s1103] sm:$0xff]
      %v1105 = vld [vmem:[%s1103 + $0x8] sm:$0xff]
      %v1106 = vld [vmem:[%s1103 + $0x10] sm:$0xff]
      %v1107 = vld [vmem:[%s1103 + $0x18] sm:$0xff]
      %v1108 = vld [vmem:[%s1103 + $0x20] sm:$0xff]
      %v1109 = vld [vmem:[%s1103 + $0x28] sm:$0xff]
      %v1110 = vld [vmem:[%s1103 + $0x30] sm:$0xff]
      %v1111 = vld [vmem:[%s1103 + $0x38] sm:$0xff]
      %v1112 = vld [vmem:[%s1103 + $0x40] sm:$0xff]
      %v1113 = vld [vmem:[%s1103 + $0x48] sm:$0xff]
      %v1114 = vld [vmem:[%s1103 + $0x50] sm:$0xff]
      %v1115 = vld [vmem:[%s1103 + $0x58] sm:$0xff]
      %v1117 = vsel %vm852, %v1095, 0
      %v1120 = vsel %vm852, %v1100, 0
      %1122 = vmatprep.subr.mxu0 %v1105
      %1123 = vmatpush1.msra.mxu0 %v1104
      %1124 = vmatprep.subr.mxu0 %v1107
      %1125 = vmatpush1.msra.mxu0 %v1106
      %1126 = vmatprep.subr.mxu0 %v1109
      %1127 = vmatpush1.msra.mxu0 %v1108
      %1128 = vmatprep.subr.mxu0 %v1111
      %1129 = vmatpush1.msra.mxu0 %v1110
      %1130 = vmatprep.subr.mxu0 %v1113
      %1131 = vmatpush1.msra.mxu0 %v1112
      %1132 = vmatprep.subr.mxu0 %v1115
      %1133 = vmatpush1.msra.mxu0 %v1114
      %1134 = vmatprep.subr.mxu0 0.0
      %1135 = vmatpush1.msra.mxu0 0.0
      %1136 = vmatprep.subr.mxu0 0.0
      %1137 = vmatpush1.msra.mxu0 0.0
      %1138 = vmatprep.subr.mxu0 0.0
      %1139 = vmatpush1.msra.mxu0 0.0
      %1140 = vmatprep.subr.mxu0 0.0
      %1141 = vmatpush1.msra.mxu0 0.0
      %1142 = vmatprep.subr.mxu0 0.0
      %1143 = vmatpush1.msra.mxu0 0.0
      %1144 = vmatprep.subr.mxu0 0.0
      %1145 = vmatpush1.msra.mxu0 0.0
      %1146 = vmatprep.subr.mxu0 0.0
      %1147 = vmatpush1.msra.mxu0 0.0
      %1148 = vmatprep.subr.mxu0 0.0
      %1149 = vmatpush1.msra.mxu0 0.0
      %1150 = vmatprep.subr.mxu0 0.0
      %1151 = vmatpush1.msra.mxu0 0.0
      %1152 = vmatprep.subr.mxu0 0.0
      %1153 = vmatpush1.msra.mxu0 0.0
      %1154 = vmatprep.subr.mxu0 0.0
      %1155 = vmatpush1.msra.mxu0 0.0
      %1156 = vmatprep.subr.mxu0 0.0
      %1157 = vmatpush1.msra.mxu0 0.0
      %1158 = vmatprep.subr.mxu0 0.0
      %1159 = vmatpush1.msra.mxu0 0.0
      %1160 = vmatprep.subr.mxu0 0.0
      %1161 = vmatpush1.msra.mxu0 0.0
      %1162 = vmatprep.subr.mxu0 0.0
      %1163 = vmatpush1.msra.mxu0 0.0
      %1164 = vmatprep.subr.mxu0 0.0
      %1165 = vmatpush1.msra.mxu0 0.0
      %1166 = vmatprep.subr.mxu0 0.0
      %1167 = vmatpush1.msra.mxu0 0.0
      %1168 = vmatprep.subr.mxu0 0.0
      %1169 = vmatpush1.msra.mxu0 0.0
      %1170 = vmatprep.subr.mxu0 0.0
      %1171 = vmatpush1.msra.mxu0 0.0
      %1172 = vmatprep.subr.mxu0 0.0
      %1173 = vmatpush1.msra.mxu0 0.0
      %1174 = vmatprep.subr.mxu0 0.0
      %1175 = vmatpush1.msra.mxu0 0.0
      %1176 = vmatprep.subr.mxu0 0.0
      %1177 = vmatpush1.msra.mxu0 0.0
      %1178 = vmatprep.subr.mxu0 0.0
      %1179 = vmatpush1.msra.mxu0 0.0
      %1180 = vmatprep.subr.mxu0 0.0
      %1181 = vmatpush1.msra.mxu0 0.0
      %1182 = vmatprep.subr.mxu0 0.0
      %1183 = vmatpush1.msra.mxu0 0.0
      %1184 = vmatprep.subr.mxu0 0.0
      %1185 = vmatpush1.msra.mxu0 0.0
      %1186 = vmatprep.mubr.f32.mxu0 0.0
      %1187 = vmatmul.mubr.f32.gmra.mrb[0].mxu0 %v1117
      %v1188 = vpop.f32.mrb[0].mxu0
      %v1189 = vadd.f32 0.0, %v1188
      %v1190 = vpop.f32.mrb[0].mxu0
      %v1191 = vadd.f32 0.0, %v1190
      %1192 = vmatprep.mubr.f32.mxu0 0.0
      %1193 = vmatmul.mubr.f32.gmra.mrb[0].mxu0 %v1120
      %v1194 = vpop.f32.mrb[0].mxu0
      %v1195 = vadd.f32 0.0, %v1194
      %v1196 = vpop.f32.mrb[0].mxu0
      %v1197 = vadd.f32 0.0, %v1196
      %1198 = vdwg.mxu0
      %v1199 = vadd.f32 %v1009, %v1189
      %v1200 = vadd.f32 %v1011, %v1191
      %v1201 = vadd.f32 %v1015, %v1195
      %v1202 = vadd.f32 %v1017, %v1197
      %v1203 = vld [vmem:[%s3] sm:$0x3]
      %v1205 = vlaneseq
      %v1206 = vshrl.u32 %v1205, 7
      %v1207 = vsub.s32 0, %v1206
      %v1208 = vrot.slane %v1203, %v1207
      %v1209 = vlaneseq
      %v1210 = vshrl.u32 %v1209, 7
      %v1211 = vsub.s32 1, %v1210
      %v1212 = vrot.slane %v1203, %v1211
      %v1215 = vadd.f32 %v1199, %v1208
      %v1216 = vadd.f32 %v1200, %v1212
      %v1217 = vadd.f32 %v1201, %v1208
      %v1218 = vadd.f32 %v1202, %v1212
      %v1219 = vmax.f32 %v1215, 0.0
      %v1220 = vmax.f32 %v1216, 0.0
      %v1221 = vmax.f32 %v1217, 0.0
      %v1222 = vmax.f32 %v1218, 0.0
      %v1223 = vld [vmem:[%s4] sm:$0xff]
      %v1225 = vsel %vm661, %v1223, 0
      %1227 = vmatprep.subr.mxu0 %v1220
      %1228 = vmatpush1.msra.mxu0 %v1219
      %1229 = vmatprep.subr.mxu0 %v1222
      %1230 = vmatpush1.msra.mxu0 %v1221
      %1231 = vmatprep.subr.mxu0 0.0
      %1232 = vmatpush1.msra.mxu0 0.0
      %1233 = vmatprep.subr.mxu0 0.0
      %1234 = vmatpush1.msra.mxu0 0.0
      %1235 = vmatprep.subr.mxu0 0.0
      %1236 = vmatpush1.msra.mxu0 0.0
      %1237 = vmatprep.subr.mxu0 0.0
      %1238 = vmatpush1.msra.mxu0 0.0
      %1239 = vmatprep.subr.mxu0 0.0
      %1240 = vmatpush1.msra.mxu0 0.0
      %1241 = vmatprep.subr.mxu0 0.0
      %1242 = vmatpush1.msra.mxu0 0.0
      %1243 = vmatprep.subr.mxu0 0.0
      %1244 = vmatpush1.msra.mxu0 0.0
      %1245 = vmatprep.subr.mxu0 0.0
      %1246 = vmatpush1.msra.mxu0 0.0
      %1247 = vmatprep.subr.mxu0 0.0
      %1248 = vmatpush1.msra.mxu0 0.0
      %1249 = vmatprep.subr.mxu0 0.0
      %1250 = vmatpush1.msra.mxu0 0.0
      %1251 = vmatprep.subr.mxu0 0.0
      %1252 = vmatpush1.msra.mxu0 0.0
      %1253 = vmatprep.subr.mxu0 0.0
      %1254 = vmatpush1.msra.mxu0 0.0
      %1255 = vmatprep.subr.mxu0 0.0
      %1256 = vmatpush1.msra.mxu0 0.0
      %1257 = vmatprep.subr.mxu0 0.0
      %1258 = vmatpush1.msra.mxu0 0.0
      %1259 = vmatprep.subr.mxu0 0.0
      %1260 = vmatpush1.msra.mxu0 0.0
      %1261 = vmatprep.subr.mxu0 0.0
      %1262 = vmatpush1.msra.mxu0 0.0
      %1263 = vmatprep.subr.mxu0 0.0
      %1264 = vmatpush1.msra.mxu0 0.0
      %1265 = vmatprep.subr.mxu0 0.0
      %1266 = vmatpush1.msra.mxu0 0.0
      %1267 = vmatprep.subr.mxu0 0.0
      %1268 = vmatpush1.msra.mxu0 0.0
      %1269 = vmatprep.subr.mxu0 0.0
      %1270 = vmatpush1.msra.mxu0 0.0
      %1271 = vmatprep.subr.mxu0 0.0
      %1272 = vmatpush1.msra.mxu0 0.0
      %1273 = vmatprep.subr.mxu0 0.0
      %1274 = vmatpush1.msra.mxu0 0.0
      %1275 = vmatprep.subr.mxu0 0.0
      %1276 = vmatpush1.msra.mxu0 0.0
      %1277 = vmatprep.subr.mxu0 0.0
      %1278 = vmatpush1.msra.mxu0 0.0
      %1279 = vmatprep.subr.mxu0 0.0
      %1280 = vmatpush1.msra.mxu0 0.0
      %1281 = vmatprep.subr.mxu0 0.0
      %1282 = vmatpush1.msra.mxu0 0.0
      %1283 = vmatprep.subr.mxu0 0.0
      %1284 = vmatpush1.msra.mxu0 0.0
      %1285 = vmatprep.subr.mxu0 0.0
      %1286 = vmatpush1.msra.mxu0 0.0
      %1287 = vmatprep.subr.mxu0 0.0
      %1288 = vmatpush1.msra.mxu0 0.0
      %1289 = vmatprep.subr.mxu0 0.0
      %1290 = vmatpush1.msra.mxu0 0.0
      %1291 = vmatprep.mubr.f32.mxu0 0.0
      %1292 = vmatmul.mubr.f32.gmra.mrb[0].mxu0 %v1225
      %v1293 = vpop.f32.mrb[0].mxu0
      %v1294 = vadd.f32 0.0, %v1293
      %v1295 = vpop.f32.mrb[0].mxu0
      %v1296 = vadd.f32 0.0, %v1295
      %1297 = vdwg.mxu0
      %v1298 = vld [vmem:[%s5] sm:$0xff]
      %v1300 = vsel %vm661, %v1298, 0
      %1302 = vmatprep.subr.mxu0 %v1220
      %1303 = vmatpush1.msra.mxu0 %v1219
      %1304 = vmatprep.subr.mxu0 %v1222
      %1305 = vmatpush1.msra.mxu0 %v1221
      %1306 = vmatprep.subr.mxu0 0.0
      %1307 = vmatpush1.msra.mxu0 0.0
      %1308 = vmatprep.subr.mxu0 0.0
      %1309 = vmatpush1.msra.mxu0 0.0
      %1310 = vmatprep.subr.mxu0 0.0
      %1311 = vmatpush1.msra.mxu0 0.0
      %1312 = vmatprep.subr.mxu0 0.0
      %1313 = vmatpush1.msra.mxu0 0.0
      %1314 = vmatprep.subr.mxu0 0.0
      %1315 = vmatpush1.msra.mxu0 0.0
      %1316 = vmatprep.subr.mxu0 0.0
      %1317 = vmatpush1.msra.mxu0 0.0
      %1318 = vmatprep.subr.mxu0 0.0
      %1319 = vmatpush1.msra.mxu0 0.0
      %1320 = vmatprep.subr.mxu0 0.0
      %1321 = vmatpush1.msra.mxu0 0.0
      %1322 = vmatprep.subr.mxu0 0.0
      %1323 = vmatpush1.msra.mxu0 0.0
      %1324 = vmatprep.subr.mxu0 0.0
      %1325 = vmatpush1.msra.mxu0 0.0
      %1326 = vmatprep.subr.mxu0 0.0
      %1327 = vmatpush1.msra.mxu0 0.0
      %1328 = vmatprep.subr.mxu0 0.0
      %1329 = vmatpush1.msra.mxu0 0.0
      %1330 = vmatprep.subr.mxu0 0.0
      %1331 = vmatpush1.msra.mxu0 0.0
      %1332 = vmatprep.subr.mxu0 0.0
      %1333 = vmatpush1.msra.mxu0 0.0
      %1334 = vmatprep.subr.mxu0 0.0
      %1335 = vmatpush1.msra.mxu0 0.0
      %1336 = vmatprep.subr.mxu0 0.0
      %1337 = vmatpush1.msra.mxu0 0.0
      %1338 = vmatprep.subr.mxu0 0.0
      %1339 = vmatpush1.msra.mxu0 0.0
      %1340 = vmatprep.subr.mxu0 0.0
      %1341 = vmatpush1.msra.mxu0 0.0
      %1342 = vmatprep.subr.mxu0 0.0
      %1343 = vmatpush1.msra.mxu0 0.0
      %1344 = vmatprep.subr.mxu0 0.0
      %1345 = vmatpush1.msra.mxu0 0.0
      %1346 = vmatprep.subr.mxu0 0.0
      %1347 = vmatpush1.msra.mxu0 0.0
      %1348 = vmatprep.subr.mxu0 0.0
      %1349 = vmatpush1.msra.mxu0 0.0
      %1350 = vmatprep.subr.mxu0 0.0
      %1351 = vmatpush1.msra.mxu0 0.0
      %1352 = vmatprep.subr.mxu0 0.0
      %1353 = vmatpush1.msra.mxu0 0.0
      %1354 = vmatprep.subr.mxu0 0.0
      %1355 = vmatpush1.msra.mxu0 0.0
      %1356 = vmatprep.subr.mxu0 0.0
      %1357 = vmatpush1.msra.mxu0 0.0
      %1358 = vmatprep.subr.mxu0 0.0
      %1359 = vmatpush1.msra.mxu0 0.0
      %1360 = vmatprep.subr.mxu0 0.0
      %1361 = vmatpush1.msra.mxu0 0.0
      %1362 = vmatprep.subr.mxu0 0.0
      %1363 = vmatpush1.msra.mxu0 0.0
      %1364 = vmatprep.subr.mxu0 0.0
      %1365 = vmatpush1.msra.mxu0 0.0
      %1366 = vmatprep.mubr.f32.mxu0 0.0
      %1367 = vmatmul.mubr.f32.gmra.mrb[0].mxu0 %v1300
      %v1368 = vpop.f32.mrb[0].mxu0
      %v1369 = vadd.f32 0.0, %v1368
      %v1370 = vpop.f32.mrb[0].mxu0
      %v1371 = vadd.f32 0.0, %v1370
      %1372 = vdwg.mxu0
      %v1373 = vmax.f32 %v1294, %v1369
      %v1374 = vmax.f32 %v1296, %v1371
      %v1375 = vld [vmem:[%s6] sm:$0xff]
      %v1376 = vld [vmem:[%s6 + $0x8] sm:$0xff]
      %v1377 = vld [vmem:[%s6 + $0x10] sm:$0xff]
      %v1378 = vld [vmem:[%s6 + $0x18] sm:$0xff]
      %v1379 = vld [vmem:[%s6 + $0x20] sm:$0xff]
      %v1380 = vld [vmem:[%s6 + $0x28] sm:$0xff]
      %v1381 = vld [vmem:[%s6 + $0x30] sm:$0xff]
      %v1382 = vld [vmem:[%s6 + $0x38] sm:$0xff]
      %v1383 = vld [vmem:[%s6 + $0x40] sm:$0xff]
      %v1384 = vld [vmem:[%s6 + $0x48] sm:$0xff]
      %v1385 = vld [vmem:[%s6 + $0x50] sm:$0xff]
      %v1386 = vld [vmem:[%s6 + $0x58] sm:$0xff]
      %v1387 = vld [vmem:[%s6 + $0x60] sm:$0xff]
      %v1388 = vld [vmem:[%s6 + $0x68] sm:$0xff]
      %v1389 = vld [vmem:[%s6 + $0x70] sm:$0xff]
      %v1390 = vld [vmem:[%s6 + $0x78] sm:$0xff]
      %v1391 = vld [vmem:[%s6 + $0x80] sm:$0xff]
      %v1392 = vld [vmem:[%s6 + $0x88] sm:$0xff]
      %v1393 = vld [vmem:[%s6 + $0x90] sm:$0xff]
      %v1394 = vld [vmem:[%s6 + $0x98] sm:$0xff]
      %v1395 = vld [vmem:[%s6 + $0xa0] sm:$0xff]
      %v1396 = vld [vmem:[%s6 + $0xa8] sm:$0xff]
      %v1397 = vld [vmem:[%s6 + $0xb0] sm:$0xff]
      %v1398 = vld [vmem:[%s6 + $0xb8] sm:$0xff]
      %v1399 = vld [vmem:[%s6 + $0xc0] sm:$0xff]
      %v1400 = vld [vmem:[%s6 + $0xc8] sm:$0xff]
      %v1401 = vld [vmem:[%s6 + $0xd0] sm:$0xff]
      %v1402 = vld [vmem:[%s6 + $0xd8] sm:$0xff]
      %v1403 = vld [vmem:[%s6 + $0xe0] sm:$0xff]
      %v1404 = vld [vmem:[%s6 + $0xe8] sm:$0xff]
      %v1405 = vld [vmem:[%s6 + $0xf0] sm:$0xff]
      %v1406 = vld [vmem:[%s6 + $0xf8] sm:$0xff]
      %1407 = vmatprep.subr.mxu0 0.0
      %1408 = vmatpush1.msra.mxu0 %v1375
      %1409 = vmatprep.subr.mxu0 0.0
      %1410 = vmatpush1.msra.mxu0 %v1376
      %1411 = vmatprep.subr.mxu0 0.0
      %1412 = vmatpush1.msra.mxu0 %v1377
      %1413 = vmatprep.subr.mxu0 0.0
      %1414 = vmatpush1.msra.mxu0 %v1378
      %1415 = vmatprep.subr.mxu0 0.0
      %1416 = vmatpush1.msra.mxu0 %v1379
      %1417 = vmatprep.subr.mxu0 0.0
      %1418 = vmatpush1.msra.mxu0 %v1380
      %1419 = vmatprep.subr.mxu0 0.0
      %1420 = vmatpush1.msra.mxu0 %v1381
      %1421 = vmatprep.subr.mxu0 0.0
      %1422 = vmatpush1.msra.mxu0 %v1382
      %1423 = vmatprep.subr.mxu0 0.0
      %1424 = vmatpush1.msra.mxu0 %v1383
      %1425 = vmatprep.subr.mxu0 0.0
      %1426 = vmatpush1.msra.mxu0 %v1384
      %1427 = vmatprep.subr.mxu0 0.0
      %1428 = vmatpush1.msra.mxu0 %v1385
      %1429 = vmatprep.subr.mxu0 0.0
      %1430 = vmatpush1.msra.mxu0 %v1386
      %1431 = vmatprep.subr.mxu0 0.0
      %1432 = vmatpush1.msra.mxu0 %v1387
      %1433 = vmatprep.subr.mxu0 0.0
      %1434 = vmatpush1.msra.mxu0 %v1388
      %1435 = vmatprep.subr.mxu0 0.0
      %1436 = vmatpush1.msra.mxu0 %v1389
      %1437 = vmatprep.subr.mxu0 0.0
      %1438 = vmatpush1.msra.mxu0 %v1390
      %1439 = vmatprep.subr.mxu0 0.0
      %1440 = vmatpush1.msra.mxu0 %v1391
      %1441 = vmatprep.subr.mxu0 0.0
      %1442 = vmatpush1.msra.mxu0 %v1392
      %1443 = vmatprep.subr.mxu0 0.0
      %1444 = vmatpush1.msra.mxu0 %v1393
      %1445 = vmatprep.subr.mxu0 0.0
      %1446 = vmatpush1.msra.mxu0 %v1394
      %1447 = vmatprep.subr.mxu0 0.0
      %1448 = vmatpush1.msra.mxu0 %v1395
      %1449 = vmatprep.subr.mxu0 0.0
      %1450 = vmatpush1.msra.mxu0 %v1396
      %1451 = vmatprep.subr.mxu0 0.0
      %1452 = vmatpush1.msra.mxu0 %v1397
      %1453 = vmatprep.subr.mxu0 0.0
      %1454 = vmatpush1.msra.mxu0 %v1398
      %1455 = vmatprep.subr.mxu0 0.0
      %1456 = vmatpush1.msra.mxu0 %v1399
      %1457 = vmatprep.subr.mxu0 0.0
      %1458 = vmatpush1.msra.mxu0 %v1400
      %1459 = vmatprep.subr.mxu0 0.0
      %1460 = vmatpush1.msra.mxu0 %v1401
      %1461 = vmatprep.subr.mxu0 0.0
      %1462 = vmatpush1.msra.mxu0 %v1402
      %1463 = vmatprep.subr.mxu0 0.0
      %1464 = vmatpush1.msra.mxu0 %v1403
      %1465 = vmatprep.subr.mxu0 0.0
      %1466 = vmatpush1.msra.mxu0 %v1404
      %1467 = vmatprep.subr.mxu0 0.0
      %1468 = vmatpush1.msra.mxu0 %v1405
      %1469 = vmatprep.subr.mxu0 0.0
      %1470 = vmatpush1.msra.mxu0 %v1406
      %1471 = vmatprep.mubr.f32.mxu0 %v1374
      %1472 = vmatmul.mubr.f32.gmra.mrb[0].mxu0 %v1373
      %v1473 = vpop.f32.mrb[0].mxu0
      %v1474 = vadd.f32 0.0, %v1473
      %v1475 = vpop.f32.mrb[0].mxu0
      %1476 = vdwg.mxu0
      %v1477 = vld [vmem:[%s7] sm:$0xff]
      %v1478 = vld [vmem:[%s7 + $0x8] sm:$0xff]
      %v1479 = vld [vmem:[%s7 + $0x10] sm:$0xff]
      %v1480 = vld [vmem:[%s7 + $0x18] sm:$0xff]
      %v1481 = vld [vmem:[%s7 + $0x20] sm:$0xff]
      %v1482 = vld [vmem:[%s7 + $0x28] sm:$0xff]
      %v1483 = vld [vmem:[%s7 + $0x30] sm:$0xff]
      %v1484 = vld [vmem:[%s7 + $0x38] sm:$0xff]
      %v1485 = vld [vmem:[%s7 + $0x40] sm:$0xff]
      %v1486 = vld [vmem:[%s7 + $0x48] sm:$0xff]
      %v1487 = vld [vmem:[%s7 + $0x50] sm:$0xff]
      %v1488 = vld [vmem:[%s7 + $0x58] sm:$0xff]
      %v1489 = vld [vmem:[%s7 + $0x60] sm:$0xff]
      %v1490 = vld [vmem:[%s7 + $0x68] sm:$0xff]
      %v1491 = vld [vmem:[%s7 + $0x70] sm:$0xff]
      %v1492 = vld [vmem:[%s7 + $0x78] sm:$0xff]
      %v1493 = vld [vmem:[%s7 + $0x80] sm:$0xff]
      %v1494 = vld [vmem:[%s7 + $0x88] sm:$0xff]
      %v1495 = vld [vmem:[%s7 + $0x90] sm:$0xff]
      %v1496 = vld [vmem:[%s7 + $0x98] sm:$0xff]
      %v1497 = vld [vmem:[%s7 + $0xa0] sm:$0xff]
      %v1498 = vld [vmem:[%s7 + $0xa8] sm:$0xff]
      %v1499 = vld [vmem:[%s7 + $0xb0] sm:$0xff]
      %v1500 = vld [vmem:[%s7 + $0xb8] sm:$0xff]
      %v1501 = vld [vmem:[%s7 + $0xc0] sm:$0xff]
      %v1502 = vld [vmem:[%s7 + $0xc8] sm:$0xff]
      %v1503 = vld [vmem:[%s7 + $0xd0] sm:$0xff]
      %v1504 = vld [vmem:[%s7 + $0xd8] sm:$0xff]
      %v1505 = vld [vmem:[%s7 + $0xe0] sm:$0xff]
      %v1506 = vld [vmem:[%s7 + $0xe8] sm:$0xff]
      %v1507 = vld [vmem:[%s7 + $0xf0] sm:$0xff]
      %v1508 = vld [vmem:[%s7 + $0xf8] sm:$0xff]
      %1509 = vmatprep.subr.mxu0 0.0
      %1510 = vmatpush1.msra.mxu0 %v1477
      %1511 = vmatprep.subr.mxu0 0.0
      %1512 = vmatpush1.msra.mxu0 %v1478
      %1513 = vmatprep.subr.mxu0 0.0
      %1514 = vmatpush1.msra.mxu0 %v1479
      %1515 = vmatprep.subr.mxu0 0.0
      %1516 = vmatpush1.msra.mxu0 %v1480
      %1517 = vmatprep.subr.mxu0 0.0
      %1518 = vmatpush1.msra.mxu0 %v1481
      %1519 = vmatprep.subr.mxu0 0.0
      %1520 = vmatpush1.msra.mxu0 %v1482
      %1521 = vmatprep.subr.mxu0 0.0
      %1522 = vmatpush1.msra.mxu0 %v1483
      %1523 = vmatprep.subr.mxu0 0.0
      %1524 = vmatpush1.msra.mxu0 %v1484
      %1525 = vmatprep.subr.mxu0 0.0
      %1526 = vmatpush1.msra.mxu0 %v1485
      %1527 = vmatprep.subr.mxu0 0.0
      %1528 = vmatpush1.msra.mxu0 %v1486
      %1529 = vmatprep.subr.mxu0 0.0
      %1530 = vmatpush1.msra.mxu0 %v1487
      %1531 = vmatprep.subr.mxu0 0.0
      %1532 = vmatpush1.msra.mxu0 %v1488
      %1533 = vmatprep.subr.mxu0 0.0
      %1534 = vmatpush1.msra.mxu0 %v1489
      %1535 = vmatprep.subr.mxu0 0.0
      %1536 = vmatpush1.msra.mxu0 %v1490
      %1537 = vmatprep.subr.mxu0 0.0
      %1538 = vmatpush1.msra.mxu0 %v1491
      %1539 = vmatprep.subr.mxu0 0.0
      %1540 = vmatpush1.msra.mxu0 %v1492
      %1541 = vmatprep.subr.mxu0 0.0
      %1542 = vmatpush1.msra.mxu0 %v1493
      %1543 = vmatprep.subr.mxu0 0.0
      %1544 = vmatpush1.msra.mxu0 %v1494
      %1545 = vmatprep.subr.mxu0 0.0
      %1546 = vmatpush1.msra.mxu0 %v1495
      %1547 = vmatprep.subr.mxu0 0.0
      %1548 = vmatpush1.msra.mxu0 %v1496
      %1549 = vmatprep.subr.mxu0 0.0
      %1550 = vmatpush1.msra.mxu0 %v1497
      %1551 = vmatprep.subr.mxu0 0.0
      %1552 = vmatpush1.msra.mxu0 %v1498
      %1553 = vmatprep.subr.mxu0 0.0
      %1554 = vmatpush1.msra.mxu0 %v1499
      %1555 = vmatprep.subr.mxu0 0.0
      %1556 = vmatpush1.msra.mxu0 %v1500
      %1557 = vmatprep.subr.mxu0 0.0
      %1558 = vmatpush1.msra.mxu0 %v1501
      %1559 = vmatprep.subr.mxu0 0.0
      %1560 = vmatpush1.msra.mxu0 %v1502
      %1561 = vmatprep.subr.mxu0 0.0
      %1562 = vmatpush1.msra.mxu0 %v1503
      %1563 = vmatprep.subr.mxu0 0.0
      %1564 = vmatpush1.msra.mxu0 %v1504
      %1565 = vmatprep.subr.mxu0 0.0
      %1566 = vmatpush1.msra.mxu0 %v1505
      %1567 = vmatprep.subr.mxu0 0.0
      %1568 = vmatpush1.msra.mxu0 %v1506
      %1569 = vmatprep.subr.mxu0 0.0
      %1570 = vmatpush1.msra.mxu0 %v1507
      %1571 = vmatprep.subr.mxu0 0.0
      %1572 = vmatpush1.msra.mxu0 %v1508
      %1573 = vmatprep.mubr.f32.mxu0 %v1374
      %1574 = vmatmul.mubr.f32.gmra.mrb[0].mxu0 %v1373
      %v1575 = vpop.f32.mrb[0].mxu0
      %v1576 = vadd.f32 0.0, %v1575
      %v1577 = vpop.f32.mrb[0].mxu0
      %1578 = vdwg.mxu0
      %v1579 = vmax.f32 %v1474, %v1576
      %v1580 = vld [vmem:[%s8] sm:$0xff]
      %vm1581 = vcmask 64512
      %v1583 = vsel %vm1581, %v1580, 0
      %1585 = vmatprep.subr.mxu0 0.0
      %1586 = vmatpush1.msra.mxu0 %v1579
      %1587 = vmatprep.subr.mxu0 0.0
      %1588 = vmatpush1.msra.mxu0 0.0
      %1589 = vmatprep.subr.mxu0 0.0
      %1590 = vmatpush1.msra.mxu0 0.0
      %1591 = vmatprep.subr.mxu0 0.0
      %1592 = vmatpush1.msra.mxu0 0.0
      %1593 = vmatprep.subr.mxu0 0.0
      %1594 = vmatpush1.msra.mxu0 0.0
      %1595 = vmatprep.subr.mxu0 0.0
      %1596 = vmatpush1.msra.mxu0 0.0
      %1597 = vmatprep.subr.mxu0 0.0
      %1598 = vmatpush1.msra.mxu0 0.0
      %1599 = vmatprep.subr.mxu0 0.0
      %1600 = vmatpush1.msra.mxu0 0.0
      %1601 = vmatprep.subr.mxu0 0.0
      %1602 = vmatpush1.msra.mxu0 0.0
      %1603 = vmatprep.subr.mxu0 0.0
      %1604 = vmatpush1.msra.mxu0 0.0
      %1605 = vmatprep.subr.mxu0 0.0
      %1606 = vmatpush1.msra.mxu0 0.0
      %1607 = vmatprep.subr.mxu0 0.0
      %1608 = vmatpush1.msra.mxu0 0.0
      %1609 = vmatprep.subr.mxu0 0.0
      %1610 = vmatpush1.msra.mxu0 0.0
      %1611 = vmatprep.subr.mxu0 0.0
      %1612 = vmatpush1.msra.mxu0 0.0
      %1613 = vmatprep.subr.mxu0 0.0
      %1614 = vmatpush1.msra.mxu0 0.0
      %1615 = vmatprep.subr.mxu0 0.0
      %1616 = vmatpush1.msra.mxu0 0.0
      %1617 = vmatprep.subr.mxu0 0.0
      %1618 = vmatpush1.msra.mxu0 0.0
      %1619 = vmatprep.subr.mxu0 0.0
      %1620 = vmatpush1.msra.mxu0 0.0
      %1621 = vmatprep.subr.mxu0 0.0
      %1622 = vmatpush1.msra.mxu0 0.0
      %1623 = vmatprep.subr.mxu0 0.0
      %1624 = vmatpush1.msra.mxu0 0.0
      %1625 = vmatprep.subr.mxu0 0.0
      %1626 = vmatpush1.msra.mxu0 0.0
      %1627 = vmatprep.subr.mxu0 0.0
      %1628 = vmatpush1.msra.mxu0 0.0
      %1629 = vmatprep.subr.mxu0 0.0
      %1630 = vmatpush1.msra.mxu0 0.0
      %1631 = vmatprep.subr.mxu0 0.0
      %1632 = vmatpush1.msra.mxu0 0.0
      %1633 = vmatprep.subr.mxu0 0.0
      %1634 = vmatpush1.msra.mxu0 0.0
      %1635 = vmatprep.subr.mxu0 0.0
      %1636 = vmatpush1.msra.mxu0 0.0
      %1637 = vmatprep.subr.mxu0 0.0
      %1638 = vmatpush1.msra.mxu0 0.0
      %1639 = vmatprep.subr.mxu0 0.0
      %1640 = vmatpush1.msra.mxu0 0.0
      %1641 = vmatprep.subr.mxu0 0.0
      %1642 = vmatpush1.msra.mxu0 0.0
      %1643 = vmatprep.subr.mxu0 0.0
      %1644 = vmatpush1.msra.mxu0 0.0
      %1645 = vmatprep.subr.mxu0 0.0
      %1646 = vmatpush1.msra.mxu0 0.0
      %1647 = vmatprep.subr.mxu0 0.0
      %1648 = vmatpush1.msra.mxu0 0.0
      %1649 = vmatprep.mubr.f32.mxu0 0.0
      %1650 = vmatmul.mubr.f32.gmra.mrb[0].mxu0 %v1583
      %v1651 = vpop.f32.mrb[0].mxu0
      %v1652 = vadd.f32 0.0, %v1651
      %v1653 = vpop.f32.mrb[0].mxu0
      %1654 = vdwg.mxu0
      %v1655 = vld [vmem:[%s9] sm:$0xff]
      %v1656 = vld [vmem:[%s9 + $0x8] sm:$0xff]
      %v1657 = vld [vmem:[%s9 + $0x10] sm:$0xff]
      %v1658 = vld [vmem:[%s9 + $0x18] sm:$0xff]
      %v1659 = vld [vmem:[%s9 + $0x20] sm:$0xff]
      %v1660 = vld [vmem:[%s9 + $0x28] sm:$0xff]
      %v1661 = vld [vmem:[%s9 + $0x30] sm:$0xff]
      %v1662 = vld [vmem:[%s9 + $0x38] sm:$0xff]
      %v1663 = vld [vmem:[%s9 + $0x40] sm:$0xff]
      %v1664 = vld [vmem:[%s9 + $0x48] sm:$0xff]
      %v1665 = vld [vmem:[%s9 + $0x50] sm:$0xff]
      %v1666 = vld [vmem:[%s9 + $0x58] sm:$0xff]
      %v1667 = vld [vmem:[%s9 + $0x60] sm:$0xff]
      %v1668 = vld [vmem:[%s9 + $0x68] sm:$0xff]
      %v1669 = vld [vmem:[%s9 + $0x70] sm:$0xff]
      %v1670 = vld [vmem:[%s9 + $0x78] sm:$0xff]
      %s1671 = scalar_lea.vmem %s8, 8
      %v1672 = vld [vmem:[%s1671] sm:$0xff]
      %v1674 = vsel %vm1581, %v1672, 0
      %1676 = vmatprep.subr.mxu0 0.0
      %1677 = vmatpush1.msra.mxu0 %v1579
      %1678 = vmatprep.subr.mxu0 0.0
      %1679 = vmatpush1.msra.mxu0 0.0
      %1680 = vmatprep.subr.mxu0 0.0
      %1681 = vmatpush1.msra.mxu0 0.0
      %1682 = vmatprep.subr.mxu0 0.0
      %1683 = vmatpush1.msra.mxu0 0.0
      %1684 = vmatprep.subr.mxu0 0.0
      %1685 = vmatpush1.msra.mxu0 0.0
      %1686 = vmatprep.subr.mxu0 0.0
      %1687 = vmatpush1.msra.mxu0 0.0
      %1688 = vmatprep.subr.mxu0 0.0
      %1689 = vmatpush1.msra.mxu0 0.0
      %1690 = vmatprep.subr.mxu0 0.0
      %1691 = vmatpush1.msra.mxu0 0.0
      %1692 = vmatprep.subr.mxu0 0.0
      %1693 = vmatpush1.msra.mxu0 0.0
      %1694 = vmatprep.subr.mxu0 0.0
      %1695 = vmatpush1.msra.mxu0 0.0
      %1696 = vmatprep.subr.mxu0 0.0
      %1697 = vmatpush1.msra.mxu0 0.0
      %1698 = vmatprep.subr.mxu0 0.0
      %1699 = vmatpush1.msra.mxu0 0.0
      %1700 = vmatprep.subr.mxu0 0.0
      %1701 = vmatpush1.msra.mxu0 0.0
      %1702 = vmatprep.subr.mxu0 0.0
      %1703 = vmatpush1.msra.mxu0 0.0
      %1704 = vmatprep.subr.mxu0 0.0
      %1705 = vmatpush1.msra.mxu0 0.0
      %1706 = vmatprep.subr.mxu0 0.0
      %1707 = vmatpush1.msra.mxu0 0.0
      %1708 = vmatprep.subr.mxu0 0.0
      %1709 = vmatpush1.msra.mxu0 0.0
      %1710 = vmatprep.subr.mxu0 0.0
      %1711 = vmatpush1.msra.mxu0 0.0
      %1712 = vmatprep.subr.mxu0 0.0
      %1713 = vmatpush1.msra.mxu0 0.0
      %1714 = vmatprep.subr.mxu0 0.0
      %1715 = vmatpush1.msra.mxu0 0.0
      %1716 = vmatprep.subr.mxu0 0.0
      %1717 = vmatpush1.msra.mxu0 0.0
      %1718 = vmatprep.subr.mxu0 0.0
      %1719 = vmatpush1.msra.mxu0 0.0
      %1720 = vmatprep.subr.mxu0 0.0
      %1721 = vmatpush1.msra.mxu0 0.0
      %1722 = vmatprep.subr.mxu0 0.0
      %1723 = vmatpush1.msra.mxu0 0.0
      %1724 = vmatprep.subr.mxu0 0.0
      %1725 = vmatpush1.msra.mxu0 0.0
      %1726 = vmatprep.subr.mxu0 0.0
      %1727 = vmatpush1.msra.mxu0 0.0
      %1728 = vmatprep.subr.mxu0 0.0
      %1729 = vmatpush1.msra.mxu0 0.0
      %1730 = vmatprep.subr.mxu0 0.0
      %1731 = vmatpush1.msra.mxu0 0.0
      %1732 = vmatprep.subr.mxu0 0.0
      %1733 = vmatpush1.msra.mxu0 0.0
      %1734 = vmatprep.subr.mxu0 0.0
      %1735 = vmatpush1.msra.mxu0 0.0
      %1736 = vmatprep.subr.mxu0 0.0
      %1737 = vmatpush1.msra.mxu0 0.0
      %1738 = vmatprep.subr.mxu0 0.0
      %1739 = vmatpush1.msra.mxu0 0.0
      %1740 = vmatprep.mubr.f32.mxu0 0.0
      %1741 = vmatmul.mubr.f32.gmra.mrb[0].mxu0 %v1674
      %v1742 = vpop.f32.mrb[0].mxu0
      %v1743 = vadd.f32 0.0, %v1742
      %v1744 = vpop.f32.mrb[0].mxu0
      %1745 = vdwg.mxu0
      %s1746 = scalar_lea.vmem %s9, 128
      %v1747 = vld [vmem:[%s1746] sm:$0xff]
      %v1748 = vld [vmem:[%s1746 + $0x8] sm:$0xff]
      %v1749 = vld [vmem:[%s1746 + $0x10] sm:$0xff]
      %v1750 = vld [vmem:[%s1746 + $0x18] sm:$0xff]
      %v1751 = vld [vmem:[%s1746 + $0x20] sm:$0xff]
      %v1752 = vld [vmem:[%s1746 + $0x28] sm:$0xff]
      %v1753 = vld [vmem:[%s1746 + $0x30] sm:$0xff]
      %v1754 = vld [vmem:[%s1746 + $0x38] sm:$0xff]
      %v1755 = vld [vmem:[%s1746 + $0x40] sm:$0xff]
      %v1756 = vld [vmem:[%s1746 + $0x48] sm:$0xff]
      %v1757 = vld [vmem:[%s1746 + $0x50] sm:$0xff]
      %v1758 = vld [vmem:[%s1746 + $0x58] sm:$0xff]
      %v1759 = vld [vmem:[%s1746 + $0x60] sm:$0xff]
      %v1760 = vld [vmem:[%s1746 + $0x68] sm:$0xff]
      %v1761 = vld [vmem:[%s1746 + $0x70] sm:$0xff]
      %v1762 = vld [vmem:[%s1746 + $0x78] sm:$0xff]
      %1763 = vmatprep.subr.mxu0 0.0
      %1764 = vmatpush1.msra.mxu0 %v1747
      %1765 = vmatprep.subr.mxu0 0.0
      %1766 = vmatpush1.msra.mxu0 %v1748
      %1767 = vmatprep.subr.mxu0 0.0
      %1768 = vmatpush1.msra.mxu0 %v1749
      %1769 = vmatprep.subr.mxu0 0.0
      %1770 = vmatpush1.msra.mxu0 %v1750
      %1771 = vmatprep.subr.mxu0 0.0
      %1772 = vmatpush1.msra.mxu0 %v1751
      %1773 = vmatprep.subr.mxu0 0.0
      %1774 = vmatpush1.msra.mxu0 %v1752
      %1775 = vmatprep.subr.mxu0 0.0
      %1776 = vmatpush1.msra.mxu0 %v1753
      %1777 = vmatprep.subr.mxu0 0.0
      %1778 = vmatpush1.msra.mxu0 %v1754
      %1779 = vmatprep.subr.mxu0 0.0
      %1780 = vmatpush1.msra.mxu0 %v1755
      %1781 = vmatprep.subr.mxu0 0.0
      %1782 = vmatpush1.msra.mxu0 %v1756
      %1783 = vmatprep.subr.mxu0 0.0
      %1784 = vmatpush1.msra.mxu0 %v1757
      %1785 = vmatprep.subr.mxu0 0.0
      %1786 = vmatpush1.msra.mxu0 %v1758
      %1787 = vmatprep.subr.mxu0 0.0
      %1788 = vmatpush1.msra.mxu0 %v1759
      %1789 = vmatprep.subr.mxu0 0.0
      %1790 = vmatpush1.msra.mxu0 %v1760
      %1791 = vmatprep.subr.mxu0 0.0
      %1792 = vmatpush1.msra.mxu0 %v1761
      %1793 = vmatprep.subr.mxu0 0.0
      %1794 = vmatpush1.msra.mxu0 %v1762
      %1795 = vmatprep.subr.mxu0 0.0
      %1796 = vmatpush1.msra.mxu0 0.0
      %1797 = vmatprep.subr.mxu0 0.0
      %1798 = vmatpush1.msra.mxu0 0.0
      %1799 = vmatprep.subr.mxu0 0.0
      %1800 = vmatpush1.msra.mxu0 0.0
      %1801 = vmatprep.subr.mxu0 0.0
      %1802 = vmatpush1.msra.mxu0 0.0
      %1803 = vmatprep.subr.mxu0 0.0
      %1804 = vmatpush1.msra.mxu0 0.0
      %1805 = vmatprep.subr.mxu0 0.0
      %1806 = vmatpush1.msra.mxu0 0.0
      %1807 = vmatprep.subr.mxu0 0.0
      %1808 = vmatpush1.msra.mxu0 0.0
      %1809 = vmatprep.subr.mxu0 0.0
      %1810 = vmatpush1.msra.mxu0 0.0
      %1811 = vmatprep.subr.mxu0 0.0
      %1812 = vmatpush1.msra.mxu0 0.0
      %1813 = vmatprep.subr.mxu0 0.0
      %1814 = vmatpush1.msra.mxu0 0.0
      %1815 = vmatprep.subr.mxu0 0.0
      %1816 = vmatpush1.msra.mxu0 0.0
      %1817 = vmatprep.subr.mxu0 0.0
      %1818 = vmatpush1.msra.mxu0 0.0
      %1819 = vmatprep.subr.mxu0 0.0
      %1820 = vmatpush1.msra.mxu0 0.0
      %1821 = vmatprep.subr.mxu0 0.0
      %1822 = vmatpush1.msra.mxu0 0.0
      %1823 = vmatprep.subr.mxu0 0.0
      %1824 = vmatpush1.msra.mxu0 0.0
      %1825 = vmatprep.subr.mxu0 0.0
      %1826 = vmatpush1.msra.mxu0 0.0
      %1827 = vmatprep.mubr.f32.mxu0 0.0
      %1828 = vmatmul.mubr.f32.gmra.mrb[0].mxu0 %v1743
      %v1829 = vpop.f32.mrb[0].mxu0
      %v1830 = vadd.f32 0.0, %v1829
      %v1831 = vpop.f32.mrb[0].mxu0
      %1832 = vdwg.mxu0
      %1833 = vmatprep.subr.mxu0 0.0
      %1834 = vmatpush1.msra.mxu0 %v1655
      %1835 = vmatprep.subr.mxu0 0.0
      %1836 = vmatpush1.msra.mxu0 %v1656
      %1837 = vmatprep.subr.mxu0 0.0
      %1838 = vmatpush1.msra.mxu0 %v1657
      %1839 = vmatprep.subr.mxu0 0.0
      %1840 = vmatpush1.msra.mxu0 %v1658
      %1841 = vmatprep.subr.mxu0 0.0
      %1842 = vmatpush1.msra.mxu0 %v1659
      %1843 = vmatprep.subr.mxu0 0.0
      %1844 = vmatpush1.msra.mxu0 %v1660
      %1845 = vmatprep.subr.mxu0 0.0
      %1846 = vmatpush1.msra.mxu0 %v1661
      %1847 = vmatprep.subr.mxu0 0.0
      %1848 = vmatpush1.msra.mxu0 %v1662
      %1849 = vmatprep.subr.mxu0 0.0
      %1850 = vmatpush1.msra.mxu0 %v1663
      %1851 = vmatprep.subr.mxu0 0.0
      %1852 = vmatpush1.msra.mxu0 %v1664
      %1853 = vmatprep.subr.mxu0 0.0
      %1854 = vmatpush1.msra.mxu0 %v1665
      %1855 = vmatprep.subr.mxu0 0.0
      %1856 = vmatpush1.msra.mxu0 %v1666
      %1857 = vmatprep.subr.mxu0 0.0
      %1858 = vmatpush1.msra.mxu0 %v1667
      %1859 = vmatprep.subr.mxu0 0.0
      %1860 = vmatpush1.msra.mxu0 %v1668
      %1861 = vmatprep.subr.mxu0 0.0
      %1862 = vmatpush1.msra.mxu0 %v1669
      %1863 = vmatprep.subr.mxu0 0.0
      %1864 = vmatpush1.msra.mxu0 %v1670
      %1865 = vmatprep.subr.mxu0 0.0
      %1866 = vmatpush1.msra.mxu0 0.0
      %1867 = vmatprep.subr.mxu0 0.0
      %1868 = vmatpush1.msra.mxu0 0.0
      %1869 = vmatprep.subr.mxu0 0.0
      %1870 = vmatpush1.msra.mxu0 0.0
      %1871 = vmatprep.subr.mxu0 0.0
      %1872 = vmatpush1.msra.mxu0 0.0
      %1873 = vmatprep.subr.mxu0 0.0
      %1874 = vmatpush1.msra.mxu0 0.0
      %1875 = vmatprep.subr.mxu0 0.0
      %1876 = vmatpush1.msra.mxu0 0.0
      %1877 = vmatprep.subr.mxu0 0.0
      %1878 = vmatpush1.msra.mxu0 0.0
      %1879 = vmatprep.subr.mxu0 0.0
      %1880 = vmatpush1.msra.mxu0 0.0
      %1881 = vmatprep.subr.mxu0 0.0
      %1882 = vmatpush1.msra.mxu0 0.0
      %1883 = vmatprep.subr.mxu0 0.0
      %1884 = vmatpush1.msra.mxu0 0.0
      %1885 = vmatprep.subr.mxu0 0.0
      %1886 = vmatpush1.msra.mxu0 0.0
      %1887 = vmatprep.subr.mxu0 0.0
      %1888 = vmatpush1.msra.mxu0 0.0
      %1889 = vmatprep.subr.mxu0 0.0
      %1890 = vmatpush1.msra.mxu0 0.0
      %1891 = vmatprep.subr.mxu0 0.0
      %1892 = vmatpush1.msra.mxu0 0.0
      %1893 = vmatprep.subr.mxu0 0.0
      %1894 = vmatpush1.msra.mxu0 0.0
      %1895 = vmatprep.subr.mxu0 0.0
      %1896 = vmatpush1.msra.mxu0 0.0
      %1897 = vmatprep.mubr.f32.mxu0 0.0
      %1898 = vmatmul.mubr.f32.gmra.mrb[0].mxu0 %v1652
      %v1899 = vpop.f32.mrb[0].mxu0
      %v1900 = vadd.f32 %v1830, %v1899
      %v1901 = vpop.f32.mrb[0].mxu0
      %1902 = vdwg.mxu0
      %s1903 = scalar_lea.vmem %s8, 16
      %v1904 = vld [vmem:[%s1903] sm:$0xff]
      %v1906 = vsel %vm1581, %v1904, 0
      %1908 = vmatprep.subr.mxu0 0.0
      %1909 = vmatpush1.msra.mxu0 %v1579
      %1910 = vmatprep.subr.mxu0 0.0
      %1911 = vmatpush1.msra.mxu0 0.0
      %1912 = vmatprep.subr.mxu0 0.0
      %1913 = vmatpush1.msra.mxu0 0.0
      %1914 = vmatprep.subr.mxu0 0.0
      %1915 = vmatpush1.msra.mxu0 0.0
      %1916 = vmatprep.subr.mxu0 0.0
      %1917 = vmatpush1.msra.mxu0 0.0
      %1918 = vmatprep.subr.mxu0 0.0
      %1919 = vmatpush1.msra.mxu0 0.0
      %1920 = vmatprep.subr.mxu0 0.0
      %1921 = vmatpush1.msra.mxu0 0.0
      %1922 = vmatprep.subr.mxu0 0.0
      %1923 = vmatpush1.msra.mxu0 0.0
      %1924 = vmatprep.subr.mxu0 0.0
      %1925 = vmatpush1.msra.mxu0 0.0
      %1926 = vmatprep.subr.mxu0 0.0
      %1927 = vmatpush1.msra.mxu0 0.0
      %1928 = vmatprep.subr.mxu0 0.0
      %1929 = vmatpush1.msra.mxu0 0.0
      %1930 = vmatprep.subr.mxu0 0.0
      %1931 = vmatpush1.msra.mxu0 0.0
      %1932 = vmatprep.subr.mxu0 0.0
      %1933 = vmatpush1.msra.mxu0 0.0
      %1934 = vmatprep.subr.mxu0 0.0
      %1935 = vmatpush1.msra.mxu0 0.0
      %1936 = vmatprep.subr.mxu0 0.0
      %1937 = vmatpush1.msra.mxu0 0.0
      %1938 = vmatprep.subr.mxu0 0.0
      %1939 = vmatpush1.msra.mxu0 0.0
      %1940 = vmatprep.subr.mxu0 0.0
      %1941 = vmatpush1.msra.mxu0 0.0
      %1942 = vmatprep.subr.mxu0 0.0
      %1943 = vmatpush1.msra.mxu0 0.0
      %1944 = vmatprep.subr.mxu0 0.0
      %1945 = vmatpush1.msra.mxu0 0.0
      %1946 = vmatprep.subr.mxu0 0.0
      %1947 = vmatpush1.msra.mxu0 0.0
      %1948 = vmatprep.subr.mxu0 0.0
      %1949 = vmatpush1.msra.mxu0 0.0
      %1950 = vmatprep.subr.mxu0 0.0
      %1951 = vmatpush1.msra.mxu0 0.0
      %1952 = vmatprep.subr.mxu0 0.0
      %1953 = vmatpush1.msra.mxu0 0.0
      %1954 = vmatprep.subr.mxu0 0.0
      %1955 = vmatpush1.msra.mxu0 0.0
      %1956 = vmatprep.subr.mxu0 0.0
      %1957 = vmatpush1.msra.mxu0 0.0
      %1958 = vmatprep.subr.mxu0 0.0
      %1959 = vmatpush1.msra.mxu0 0.0
      %1960 = vmatprep.subr.mxu0 0.0
      %1961 = vmatpush1.msra.mxu0 0.0
      %1962 = vmatprep.subr.mxu0 0.0
      %1963 = vmatpush1.msra.mxu0 0.0
      %1964 = vmatprep.subr.mxu0 0.0
      %1965 = vmatpush1.msra.mxu0 0.0
      %1966 = vmatprep.subr.mxu0 0.0
      %1967 = vmatpush1.msra.mxu0 0.0
      %1968 = vmatprep.subr.mxu0 0.0
      %1969 = vmatpush1.msra.mxu0 0.0
      %1970 = vmatprep.subr.mxu0 0.0
      %1971 = vmatpush1.msra.mxu0 0.0
      %1972 = vmatprep.mubr.f32.mxu0 0.0
      %1973 = vmatmul.mubr.f32.gmra.mrb[0].mxu0 %v1906
      %v1974 = vpop.f32.mrb[0].mxu0
      %v1975 = vadd.f32 0.0, %v1974
      %v1976 = vpop.f32.mrb[0].mxu0
      %1977 = vdwg.mxu0
      %s1978 = scalar_lea.vmem %s9, 256
      %v1979 = vld [vmem:[%s1978] sm:$0xff]
      %v1980 = vld [vmem:[%s1978 + $0x8] sm:$0xff]
      %v1981 = vld [vmem:[%s1978 + $0x10] sm:$0xff]
      %v1982 = vld [vmem:[%s1978 + $0x18] sm:$0xff]
      %v1983 = vld [vmem:[%s1978 + $0x20] sm:$0xff]
      %v1984 = vld [vmem:[%s1978 + $0x28] sm:$0xff]
      %v1985 = vld [vmem:[%s1978 + $0x30] sm:$0xff]
      %v1986 = vld [vmem:[%s1978 + $0x38] sm:$0xff]
      %v1987 = vld [vmem:[%s1978 + $0x40] sm:$0xff]
      %v1988 = vld [vmem:[%s1978 + $0x48] sm:$0xff]
      %v1989 = vld [vmem:[%s1978 + $0x50] sm:$0xff]
      %v1990 = vld [vmem:[%s1978 + $0x58] sm:$0xff]
      %v1991 = vld [vmem:[%s1978 + $0x60] sm:$0xff]
      %v1992 = vld [vmem:[%s1978 + $0x68] sm:$0xff]
      %v1993 = vld [vmem:[%s1978 + $0x70] sm:$0xff]
      %v1994 = vld [vmem:[%s1978 + $0x78] sm:$0xff]
      %1995 = vmatprep.subr.mxu0 0.0
      %1996 = vmatpush1.msra.mxu0 %v1979
      %1997 = vmatprep.subr.mxu0 0.0
      %1998 = vmatpush1.msra.mxu0 %v1980
      %1999 = vmatprep.subr.mxu0 0.0
      %2000 = vmatpush1.msra.mxu0 %v1981
      %2001 = vmatprep.subr.mxu0 0.0
      %2002 = vmatpush1.msra.mxu0 %v1982
      %2003 = vmatprep.subr.mxu0 0.0
      %2004 = vmatpush1.msra.mxu0 %v1983
      %2005 = vmatprep.subr.mxu0 0.0
      %2006 = vmatpush1.msra.mxu0 %v1984
      %2007 = vmatprep.subr.mxu0 0.0
      %2008 = vmatpush1.msra.mxu0 %v1985
      %2009 = vmatprep.subr.mxu0 0.0
      %2010 = vmatpush1.msra.mxu0 %v1986
      %2011 = vmatprep.subr.mxu0 0.0
      %2012 = vmatpush1.msra.mxu0 %v1987
      %2013 = vmatprep.subr.mxu0 0.0
      %2014 = vmatpush1.msra.mxu0 %v1988
      %2015 = vmatprep.subr.mxu0 0.0
      %2016 = vmatpush1.msra.mxu0 %v1989
      %2017 = vmatprep.subr.mxu0 0.0
      %2018 = vmatpush1.msra.mxu0 %v1990
      %2019 = vmatprep.subr.mxu0 0.0
      %2020 = vmatpush1.msra.mxu0 %v1991
      %2021 = vmatprep.subr.mxu0 0.0
      %2022 = vmatpush1.msra.mxu0 %v1992
      %2023 = vmatprep.subr.mxu0 0.0
      %2024 = vmatpush1.msra.mxu0 %v1993
      %2025 = vmatprep.subr.mxu0 0.0
      %2026 = vmatpush1.msra.mxu0 %v1994
      %2027 = vmatprep.subr.mxu0 0.0
      %2028 = vmatpush1.msra.mxu0 0.0
      %2029 = vmatprep.subr.mxu0 0.0
      %2030 = vmatpush1.msra.mxu0 0.0
      %2031 = vmatprep.subr.mxu0 0.0
      %2032 = vmatpush1.msra.mxu0 0.0
      %2033 = vmatprep.subr.mxu0 0.0
      %2034 = vmatpush1.msra.mxu0 0.0
      %2035 = vmatprep.subr.mxu0 0.0
      %2036 = vmatpush1.msra.mxu0 0.0
      %2037 = vmatprep.subr.mxu0 0.0
      %2038 = vmatpush1.msra.mxu0 0.0
      %2039 = vmatprep.subr.mxu0 0.0
      %2040 = vmatpush1.msra.mxu0 0.0
      %2041 = vmatprep.subr.mxu0 0.0
      %2042 = vmatpush1.msra.mxu0 0.0
      %2043 = vmatprep.subr.mxu0 0.0
      %2044 = vmatpush1.msra.mxu0 0.0
      %2045 = vmatprep.subr.mxu0 0.0
      %2046 = vmatpush1.msra.mxu0 0.0
      %2047 = vmatprep.subr.mxu0 0.0
      %2048 = vmatpush1.msra.mxu0 0.0
      %2049 = vmatprep.subr.mxu0 0.0
      %2050 = vmatpush1.msra.mxu0 0.0
      %2051 = vmatprep.subr.mxu0 0.0
      %2052 = vmatpush1.msra.mxu0 0.0
      %2053 = vmatprep.subr.mxu0 0.0
      %2054 = vmatpush1.msra.mxu0 0.0
      %2055 = vmatprep.subr.mxu0 0.0
      %2056 = vmatpush1.msra.mxu0 0.0
      %2057 = vmatprep.subr.mxu0 0.0
      %2058 = vmatpush1.msra.mxu0 0.0
      %2059 = vmatprep.mubr.f32.mxu0 0.0
      %2060 = vmatmul.mubr.f32.gmra.mrb[0].mxu0 %v1975
      %v2061 = vpop.f32.mrb[0].mxu0
      %v2062 = vadd.f32 0.0, %v2061
      %v2063 = vpop.f32.mrb[0].mxu0
      %2064 = vdwg.mxu0
      %v2065 = vadd.f32 %v1900, %v2062
      %v2066 = vld [vmem:[%s10] sm:$0x1]
      %v2068 = vlaneseq
      %v2069 = vshrl.u32 %v2068, 7
      %v2070 = vsub.s32 0, %v2069
      %v2071 = vrot.slane %v2066, %v2070
      %v2073 = vadd.f32 %v2065, %v2071
      %v2074 = vmax.f32 %v2073, 0.0
      %v2075 = vld [vmem:[%s11] sm:$0xf]
      %v2077 = vsel %vm1581, %v2075, 0
      %2079 = vmatprep.subr.mxu0 0.0
      %2080 = vmatpush1.msra.mxu0 %v2074
      %2081 = vmatprep.subr.mxu0 0.0
      %2082 = vmatpush1.msra.mxu0 0.0
      %2083 = vmatprep.subr.mxu0 0.0
      %2084 = vmatpush1.msra.mxu0 0.0
      %2085 = vmatprep.subr.mxu0 0.0
      %2086 = vmatpush1.msra.mxu0 0.0
      %2087 = vmatprep.subr.mxu0 0.0
      %2088 = vmatpush1.msra.mxu0 0.0
      %2089 = vmatprep.subr.mxu0 0.0
      %2090 = vmatpush1.msra.mxu0 0.0
      %2091 = vmatprep.subr.mxu0 0.0
      %2092 = vmatpush1.msra.mxu0 0.0
      %2093 = vmatprep.subr.mxu0 0.0
      %2094 = vmatpush1.msra.mxu0 0.0
      %2095 = vmatprep.subr.mxu0 0.0
      %2096 = vmatpush1.msra.mxu0 0.0
      %2097 = vmatprep.subr.mxu0 0.0
      %2098 = vmatpush1.msra.mxu0 0.0
      %2099 = vmatprep.subr.mxu0 0.0
      %2100 = vmatpush1.msra.mxu0 0.0
      %2101 = vmatprep.subr.mxu0 0.0
      %2102 = vmatpush1.msra.mxu0 0.0
      %2103 = vmatprep.subr.mxu0 0.0
      %2104 = vmatpush1.msra.mxu0 0.0
      %2105 = vmatprep.subr.mxu0 0.0
      %2106 = vmatpush1.msra.mxu0 0.0
      %2107 = vmatprep.subr.mxu0 0.0
      %2108 = vmatpush1.msra.mxu0 0.0
      %2109 = vmatprep.subr.mxu0 0.0
      %2110 = vmatpush1.msra.mxu0 0.0
      %2111 = vmatprep.subr.mxu0 0.0
      %2112 = vmatpush1.msra.mxu0 0.0
      %2113 = vmatprep.subr.mxu0 0.0
      %2114 = vmatpush1.msra.mxu0 0.0
      %2115 = vmatprep.subr.mxu0 0.0
      %2116 = vmatpush1.msra.mxu0 0.0
      %2117 = vmatprep.subr.mxu0 0.0
      %2118 = vmatpush1.msra.mxu0 0.0
      %2119 = vmatprep.subr.mxu0 0.0
      %2120 = vmatpush1.msra.mxu0 0.0
      %2121 = vmatprep.subr.mxu0 0.0
      %2122 = vmatpush1.msra.mxu0 0.0
      %2123 = vmatprep.subr.mxu0 0.0
      %2124 = vmatpush1.msra.mxu0 0.0
      %2125 = vmatprep.subr.mxu0 0.0
      %2126 = vmatpush1.msra.mxu0 0.0
      %2127 = vmatprep.subr.mxu0 0.0
      %2128 = vmatpush1.msra.mxu0 0.0
      %2129 = vmatprep.subr.mxu0 0.0
      %2130 = vmatpush1.msra.mxu0 0.0
      %2131 = vmatprep.subr.mxu0 0.0
      %2132 = vmatpush1.msra.mxu0 0.0
      %2133 = vmatprep.subr.mxu0 0.0
      %2134 = vmatpush1.msra.mxu0 0.0
      %2135 = vmatprep.subr.mxu0 0.0
      %2136 = vmatpush1.msra.mxu0 0.0
      %2137 = vmatprep.subr.mxu0 0.0
      %2138 = vmatpush1.msra.mxu0 0.0
      %2139 = vmatprep.subr.mxu0 0.0
      %2140 = vmatpush1.msra.mxu0 0.0
      %2141 = vmatprep.subr.mxu0 0.0
      %2142 = vmatpush1.msra.mxu0 0.0
      %2143 = vmatprep.mubr.f32.mxu0 0.0
      %2144 = vmatmul.mubr.f32.gmra.mrb[0].mxu0 %v2077
      %v2145 = vpop.f32.mrb[0].mxu0
      %v2146 = vadd.f32 0.0, %v2145
      %v2147 = vpop.f32.mrb[0].mxu0
      %2148 = vdwg.mxu0
      %v2149 = vld [vmem:[%s12] sm:$0xf]
      %v2151 = vsel %vm1581, %v2149, 0
      %2153 = vmatprep.subr.mxu0 0.0
      %2154 = vmatpush1.msra.mxu0 %v2074
      %2155 = vmatprep.subr.mxu0 0.0
      %2156 = vmatpush1.msra.mxu0 0.0
      %2157 = vmatprep.subr.mxu0 0.0
      %2158 = vmatpush1.msra.mxu0 0.0
      %2159 = vmatprep.subr.mxu0 0.0
      %2160 = vmatpush1.msra.mxu0 0.0
      %2161 = vmatprep.subr.mxu0 0.0
      %2162 = vmatpush1.msra.mxu0 0.0
      %2163 = vmatprep.subr.mxu0 0.0
      %2164 = vmatpush1.msra.mxu0 0.0
      %2165 = vmatprep.subr.mxu0 0.0
      %2166 = vmatpush1.msra.mxu0 0.0
      %2167 = vmatprep.subr.mxu0 0.0
      %2168 = vmatpush1.msra.mxu0 0.0
      %2169 = vmatprep.subr.mxu0 0.0
      %2170 = vmatpush1.msra.mxu0 0.0
      %2171 = vmatprep.subr.mxu0 0.0
      %2172 = vmatpush1.msra.mxu0 0.0
      %2173 = vmatprep.subr.mxu0 0.0
      %2174 = vmatpush1.msra.mxu0 0.0
      %2175 = vmatprep.subr.mxu0 0.0
      %2176 = vmatpush1.msra.mxu0 0.0
      %2177 = vmatprep.subr.mxu0 0.0
      %2178 = vmatpush1.msra.mxu0 0.0
      %2179 = vmatprep.subr.mxu0 0.0
      %2180 = vmatpush1.msra.mxu0 0.0
      %2181 = vmatprep.subr.mxu0 0.0
      %2182 = vmatpush1.msra.mxu0 0.0
      %2183 = vmatprep.subr.mxu0 0.0
      %2184 = vmatpush1.msra.mxu0 0.0
      %2185 = vmatprep.subr.mxu0 0.0
      %2186 = vmatpush1.msra.mxu0 0.0
      %2187 = vmatprep.subr.mxu0 0.0
      %2188 = vmatpush1.msra.mxu0 0.0
      %2189 = vmatprep.subr.mxu0 0.0
      %2190 = vmatpush1.msra.mxu0 0.0
      %2191 = vmatprep.subr.mxu0 0.0
      %2192 = vmatpush1.msra.mxu0 0.0
      %2193 = vmatprep.subr.mxu0 0.0
      %2194 = vmatpush1.msra.mxu0 0.0
      %2195 = vmatprep.subr.mxu0 0.0
      %2196 = vmatpush1.msra.mxu0 0.0
      %2197 = vmatprep.subr.mxu0 0.0
      %2198 = vmatpush1.msra.mxu0 0.0
      %2199 = vmatprep.subr.mxu0 0.0
      %2200 = vmatpush1.msra.mxu0 0.0
      %2201 = vmatprep.subr.mxu0 0.0
      %2202 = vmatpush1.msra.mxu0 0.0
      %2203 = vmatprep.subr.mxu0 0.0
      %2204 = vmatpush1.msra.mxu0 0.0
      %2205 = vmatprep.subr.mxu0 0.0
      %2206 = vmatpush1.msra.mxu0 0.0
      %2207 = vmatprep.subr.mxu0 0.0
      %2208 = vmatpush1.msra.mxu0 0.0
      %2209 = vmatprep.subr.mxu0 0.0
      %2210 = vmatpush1.msra.mxu0 0.0
      %2211 = vmatprep.subr.mxu0 0.0
      %2212 = vmatpush1.msra.mxu0 0.0
      %2213 = vmatprep.subr.mxu0 0.0
      %2214 = vmatpush1.msra.mxu0 0.0
      %2215 = vmatprep.subr.mxu0 0.0
      %2216 = vmatpush1.msra.mxu0 0.0
      %2217 = vmatprep.mubr.f32.mxu0 0.0
      %2218 = vmatmul.mubr.f32.gmra.mrb[0].mxu0 %v2151
      %v2219 = vpop.f32.mrb[0].mxu0
      %v2220 = vadd.f32 0.0, %v2219
      %v2221 = vpop.f32.mrb[0].mxu0
      %2222 = vdwg.mxu0
      %v2223 = vmax.f32 %v2146, %v2220
      %v2224 = vld [vmem:[%s13] sm:$0xff]
      %v2225 = vld [vmem:[%s13 + $0x8] sm:$0xff]
      %v2226 = vld [vmem:[%s13 + $0x10] sm:$0xff]
      %v2227 = vld [vmem:[%s13 + $0x18] sm:$0xff]
      %v2228 = vld [vmem:[%s13 + $0x20] sm:$0xff]
      %v2229 = vld [vmem:[%s13 + $0x28] sm:$0xff]
      %v2230 = vld [vmem:[%s13 + $0x30] sm:$0xff]
      %v2231 = vld [vmem:[%s13 + $0x38] sm:$0xff]
      %vm2232 = vcmask 523264
      %v2234 = vsel %vm2232, %v2223, 0
      %2236 = vmatprep.subr.mxu0 0.0
      %2237 = vmatpush1.msra.mxu0 %v2224
      %2238 = vmatprep.subr.mxu0 0.0
      %2239 = vmatpush1.msra.mxu0 %v2225
      %2240 = vmatprep.subr.mxu0 0.0
      %2241 = vmatpush1.msra.mxu0 %v2226
      %2242 = vmatprep.subr.mxu0 0.0
      %2243 = vmatpush1.msra.mxu0 %v2227
      %2244 = vmatprep.subr.mxu0 0.0
      %2245 = vmatpush1.msra.mxu0 %v2228
      %2246 = vmatprep.subr.mxu0 0.0
      %2247 = vmatpush1.msra.mxu0 %v2229
      %2248 = vmatprep.subr.mxu0 0.0
      %2249 = vmatpush1.msra.mxu0 %v2230
      %2250 = vmatprep.subr.mxu0 0.0
      %2251 = vmatpush1.msra.mxu0 %v2231
      %2252 = vmatprep.subr.mxu0 0.0
      %2253 = vmatpush1.msra.mxu0 0.0
      %2254 = vmatprep.subr.mxu0 0.0
      %2255 = vmatpush1.msra.mxu0 0.0
      %2256 = vmatprep.subr.mxu0 0.0
      %2257 = vmatpush1.msra.mxu0 0.0
      %2258 = vmatprep.subr.mxu0 0.0
      %2259 = vmatpush1.msra.mxu0 0.0
      %2260 = vmatprep.subr.mxu0 0.0
      %2261 = vmatpush1.msra.mxu0 0.0
      %2262 = vmatprep.subr.mxu0 0.0
      %2263 = vmatpush1.msra.mxu0 0.0
      %2264 = vmatprep.subr.mxu0 0.0
      %2265 = vmatpush1.msra.mxu0 0.0
      %2266 = vmatprep.subr.mxu0 0.0
      %2267 = vmatpush1.msra.mxu0 0.0
      %2268 = vmatprep.subr.mxu0 0.0
      %2269 = vmatpush1.msra.mxu0 0.0
      %2270 = vmatprep.subr.mxu0 0.0
      %2271 = vmatpush1.msra.mxu0 0.0
      %2272 = vmatprep.subr.mxu0 0.0
      %2273 = vmatpush1.msra.mxu0 0.0
      %2274 = vmatprep.subr.mxu0 0.0
      %2275 = vmatpush1.msra.mxu0 0.0
      %2276 = vmatprep.subr.mxu0 0.0
      %2277 = vmatpush1.msra.mxu0 0.0
      %2278 = vmatprep.subr.mxu0 0.0
      %2279 = vmatpush1.msra.mxu0 0.0
      %2280 = vmatprep.subr.mxu0 0.0
      %2281 = vmatpush1.msra.mxu0 0.0
      %2282 = vmatprep.subr.mxu0 0.0
      %2283 = vmatpush1.msra.mxu0 0.0
      %2284 = vmatprep.subr.mxu0 0.0
      %2285 = vmatpush1.msra.mxu0 0.0
      %2286 = vmatprep.subr.mxu0 0.0
      %2287 = vmatpush1.msra.mxu0 0.0
      %2288 = vmatprep.subr.mxu0 0.0
      %2289 = vmatpush1.msra.mxu0 0.0
      %2290 = vmatprep.subr.mxu0 0.0
      %2291 = vmatpush1.msra.mxu0 0.0
      %2292 = vmatprep.subr.mxu0 0.0
      %2293 = vmatpush1.msra.mxu0 0.0
      %2294 = vmatprep.subr.mxu0 0.0
      %2295 = vmatpush1.msra.mxu0 0.0
      %2296 = vmatprep.subr.mxu0 0.0
      %2297 = vmatpush1.msra.mxu0 0.0
      %2298 = vmatprep.subr.mxu0 0.0
      %2299 = vmatpush1.msra.mxu0 0.0
      %2300 = vmatprep.mubr.f32.mxu0 0.0
      %2301 = vmatmul.mubr.f32.gmra.mrb[0].mxu0 %v2234
      %v2302 = vpop.f32.mrb[0].mxu0
      %v2303 = vadd.f32 0.0, %v2302
      %v2304 = vpop.f32.mrb[0].mxu0
      %2305 = vdwg.mxu0
      %v2306 = vld [vmem:[%s14] sm:$0xff]
      %v2307 = vld [vmem:[%s14 + $0x8] sm:$0xff]
      %v2308 = vld [vmem:[%s14 + $0x10] sm:$0xff]
      %v2309 = vld [vmem:[%s14 + $0x18] sm:$0xff]
      %v2310 = vld [vmem:[%s14 + $0x20] sm:$0xff]
      %v2311 = vld [vmem:[%s14 + $0x28] sm:$0xff]
      %v2312 = vld [vmem:[%s14 + $0x30] sm:$0xff]
      %v2313 = vld [vmem:[%s14 + $0x38] sm:$0xff]
      %2314 = vmatprep.subr.mxu0 0.0
      %2315 = vmatpush1.msra.mxu0 %v2306
      %2316 = vmatprep.subr.mxu0 0.0
      %2317 = vmatpush1.msra.mxu0 %v2307
      %2318 = vmatprep.subr.mxu0 0.0
      %2319 = vmatpush1.msra.mxu0 %v2308
      %2320 = vmatprep.subr.mxu0 0.0
      %2321 = vmatpush1.msra.mxu0 %v2309
      %2322 = vmatprep.subr.mxu0 0.0
      %2323 = vmatpush1.msra.mxu0 %v2310
      %2324 = vmatprep.subr.mxu0 0.0
      %2325 = vmatpush1.msra.mxu0 %v2311
      %2326 = vmatprep.subr.mxu0 0.0
      %2327 = vmatpush1.msra.mxu0 %v2312
      %2328 = vmatprep.subr.mxu0 0.0
      %2329 = vmatpush1.msra.mxu0 %v2313
      %2330 = vmatprep.subr.mxu0 0.0
      %2331 = vmatpush1.msra.mxu0 0.0
      %2332 = vmatprep.subr.mxu0 0.0
      %2333 = vmatpush1.msra.mxu0 0.0
      %2334 = vmatprep.subr.mxu0 0.0
      %2335 = vmatpush1.msra.mxu0 0.0
      %2336 = vmatprep.subr.mxu0 0.0
      %2337 = vmatpush1.msra.mxu0 0.0
      %2338 = vmatprep.subr.mxu0 0.0
      %2339 = vmatpush1.msra.mxu0 0.0
      %2340 = vmatprep.subr.mxu0 0.0
      %2341 = vmatpush1.msra.mxu0 0.0
      %2342 = vmatprep.subr.mxu0 0.0
      %2343 = vmatpush1.msra.mxu0 0.0
      %2344 = vmatprep.subr.mxu0 0.0
      %2345 = vmatpush1.msra.mxu0 0.0
      %2346 = vmatprep.subr.mxu0 0.0
      %2347 = vmatpush1.msra.mxu0 0.0
      %2348 = vmatprep.subr.mxu0 0.0
      %2349 = vmatpush1.msra.mxu0 0.0
      %2350 = vmatprep.subr.mxu0 0.0
      %2351 = vmatpush1.msra.mxu0 0.0
      %2352 = vmatprep.subr.mxu0 0.0
      %2353 = vmatpush1.msra.mxu0 0.0
      %2354 = vmatprep.subr.mxu0 0.0
      %2355 = vmatpush1.msra.mxu0 0.0
      %2356 = vmatprep.subr.mxu0 0.0
      %2357 = vmatpush1.msra.mxu0 0.0
      %2358 = vmatprep.subr.mxu0 0.0
      %2359 = vmatpush1.msra.mxu0 0.0
      %2360 = vmatprep.subr.mxu0 0.0
      %2361 = vmatpush1.msra.mxu0 0.0
      %2362 = vmatprep.subr.mxu0 0.0
      %2363 = vmatpush1.msra.mxu0 0.0
      %2364 = vmatprep.subr.mxu0 0.0
      %2365 = vmatpush1.msra.mxu0 0.0
      %2366 = vmatprep.subr.mxu0 0.0
      %2367 = vmatpush1.msra.mxu0 0.0
      %2368 = vmatprep.subr.mxu0 0.0
      %2369 = vmatpush1.msra.mxu0 0.0
      %2370 = vmatprep.subr.mxu0 0.0
      %2371 = vmatpush1.msra.mxu0 0.0
      %2372 = vmatprep.subr.mxu0 0.0
      %2373 = vmatpush1.msra.mxu0 0.0
      %2374 = vmatprep.subr.mxu0 0.0
      %2375 = vmatpush1.msra.mxu0 0.0
      %2376 = vmatprep.subr.mxu0 0.0
      %2377 = vmatpush1.msra.mxu0 0.0
      %2378 = vmatprep.mubr.f32.mxu0 0.0
      %2379 = vmatmul.mubr.f32.gmra.mrb[0].mxu0 %v2234
      %v2380 = vpop.f32.mrb[0].mxu0
      %v2381 = vadd.f32 0.0, %v2380
      %v2382 = vpop.f32.mrb[0].mxu0
      %2383 = vdwg.mxu0
      %v2384 = vmax.f32 %v2303, %v2381
      %v2385 = vld [vmem:[%s15] sm:$0xff]
      %vm2386 = vcmask 31744
      %v2388 = vsel %vm2386, %v2385, 0
      %vm2390 = vcmask 1043456
      %v2392 = vsel %vm2390, %v2384, 0
      %2394 = vmatprep.subr.mxu0 0.0
      %2395 = vmatpush1.msra.mxu0 %v2392
      %2396 = vmatprep.subr.mxu0 0.0
      %2397 = vmatpush1.msra.mxu0 0.0
      %2398 = vmatprep.subr.mxu0 0.0
      %2399 = vmatpush1.msra.mxu0 0.0
      %2400 = vmatprep.subr.mxu0 0.0
      %2401 = vmatpush1.msra.mxu0 0.0
      %2402 = vmatprep.subr.mxu0 0.0
      %2403 = vmatpush1.msra.mxu0 0.0
      %2404 = vmatprep.subr.mxu0 0.0
      %2405 = vmatpush1.msra.mxu0 0.0
      %2406 = vmatprep.subr.mxu0 0.0
      %2407 = vmatpush1.msra.mxu0 0.0
      %2408 = vmatprep.subr.mxu0 0.0
      %2409 = vmatpush1.msra.mxu0 0.0
      %2410 = vmatprep.subr.mxu0 0.0
      %2411 = vmatpush1.msra.mxu0 0.0
      %2412 = vmatprep.subr.mxu0 0.0
      %2413 = vmatpush1.msra.mxu0 0.0
      %2414 = vmatprep.subr.mxu0 0.0
      %2415 = vmatpush1.msra.mxu0 0.0
      %2416 = vmatprep.subr.mxu0 0.0
      %2417 = vmatpush1.msra.mxu0 0.0
      %2418 = vmatprep.subr.mxu0 0.0
      %2419 = vmatpush1.msra.mxu0 0.0
      %2420 = vmatprep.subr.mxu0 0.0
      %2421 = vmatpush1.msra.mxu0 0.0
      %2422 = vmatprep.subr.mxu0 0.0
      %2423 = vmatpush1.msra.mxu0 0.0
      %2424 = vmatprep.subr.mxu0 0.0
      %2425 = vmatpush1.msra.mxu0 0.0
      %2426 = vmatprep.subr.mxu0 0.0
      %2427 = vmatpush1.msra.mxu0 0.0
      %2428 = vmatprep.subr.mxu0 0.0
      %2429 = vmatpush1.msra.mxu0 0.0
      %2430 = vmatprep.subr.mxu0 0.0
      %2431 = vmatpush1.msra.mxu0 0.0
      %2432 = vmatprep.subr.mxu0 0.0
      %2433 = vmatpush1.msra.mxu0 0.0
      %2434 = vmatprep.subr.mxu0 0.0
      %2435 = vmatpush1.msra.mxu0 0.0
      %2436 = vmatprep.subr.mxu0 0.0
      %2437 = vmatpush1.msra.mxu0 0.0
      %2438 = vmatprep.subr.mxu0 0.0
      %2439 = vmatpush1.msra.mxu0 0.0
      %2440 = vmatprep.subr.mxu0 0.0
      %2441 = vmatpush1.msra.mxu0 0.0
      %2442 = vmatprep.subr.mxu0 0.0
      %2443 = vmatpush1.msra.mxu0 0.0
      %2444 = vmatprep.subr.mxu0 0.0
      %2445 = vmatpush1.msra.mxu0 0.0
      %2446 = vmatprep.subr.mxu0 0.0
      %2447 = vmatpush1.msra.mxu0 0.0
      %2448 = vmatprep.subr.mxu0 0.0
      %2449 = vmatpush1.msra.mxu0 0.0
      %2450 = vmatprep.subr.mxu0 0.0
      %2451 = vmatpush1.msra.mxu0 0.0
      %2452 = vmatprep.subr.mxu0 0.0
      %2453 = vmatpush1.msra.mxu0 0.0
      %2454 = vmatprep.subr.mxu0 0.0
      %2455 = vmatpush1.msra.mxu0 0.0
      %2456 = vmatprep.subr.mxu0 0.0
      %2457 = vmatpush1.msra.mxu0 0.0
      %2458 = vmatprep.mubr.f32.mxu0 0.0
      %2459 = vmatmul.mubr.f32.gmra.mrb[0].mxu0 %v2388
      %v2460 = vpop.f32.mrb[0].mxu0
      %v2461 = vadd.f32 0.0, %v2460
      %v2462 = vpop.f32.mrb[0].mxu0
      %2463 = vdwg.mxu0
      %v2464 = vld [vmem:[%s16] sm:$0xff]
      %v2465 = vld [vmem:[%s16 + $0x8] sm:$0xff]
      %v2466 = vld [vmem:[%s16 + $0x10] sm:$0xff]
      %v2467 = vld [vmem:[%s16 + $0x18] sm:$0xff]
      %s2468 = scalar_lea.vmem %s15, 8
      %v2469 = vld [vmem:[%s2468] sm:$0xff]
      %v2471 = vsel %vm2386, %v2469, 0
      %2473 = vmatprep.subr.mxu0 0.0
      %2474 = vmatpush1.msra.mxu0 %v2392
      %2475 = vmatprep.subr.mxu0 0.0
      %2476 = vmatpush1.msra.mxu0 0.0
      %2477 = vmatprep.subr.mxu0 0.0
      %2478 = vmatpush1.msra.mxu0 0.0
      %2479 = vmatprep.subr.mxu0 0.0
      %2480 = vmatpush1.msra.mxu0 0.0
      %2481 = vmatprep.subr.mxu0 0.0
      %2482 = vmatpush1.msra.mxu0 0.0
      %2483 = vmatprep.subr.mxu0 0.0
      %2484 = vmatpush1.msra.mxu0 0.0
      %2485 = vmatprep.subr.mxu0 0.0
      %2486 = vmatpush1.msra.mxu0 0.0
      %2487 = vmatprep.subr.mxu0 0.0
      %2488 = vmatpush1.msra.mxu0 0.0
      %2489 = vmatprep.subr.mxu0 0.0
      %2490 = vmatpush1.msra.mxu0 0.0
      %2491 = vmatprep.subr.mxu0 0.0
      %2492 = vmatpush1.msra.mxu0 0.0
      %2493 = vmatprep.subr.mxu0 0.0
      %2494 = vmatpush1.msra.mxu0 0.0
      %2495 = vmatprep.subr.mxu0 0.0
      %2496 = vmatpush1.msra.mxu0 0.0
      %2497 = vmatprep.subr.mxu0 0.0
      %2498 = vmatpush1.msra.mxu0 0.0
      %2499 = vmatprep.subr.mxu0 0.0
      %2500 = vmatpush1.msra.mxu0 0.0
      %2501 = vmatprep.subr.mxu0 0.0
      %2502 = vmatpush1.msra.mxu0 0.0
      %2503 = vmatprep.subr.mxu0 0.0
      %2504 = vmatpush1.msra.mxu0 0.0
      %2505 = vmatprep.subr.mxu0 0.0
      %2506 = vmatpush1.msra.mxu0 0.0
      %2507 = vmatprep.subr.mxu0 0.0
      %2508 = vmatpush1.msra.mxu0 0.0
      %2509 = vmatprep.subr.mxu0 0.0
      %2510 = vmatpush1.msra.mxu0 0.0
      %2511 = vmatprep.subr.mxu0 0.0
      %2512 = vmatpush1.msra.mxu0 0.0
      %2513 = vmatprep.subr.mxu0 0.0
      %2514 = vmatpush1.msra.mxu0 0.0
      %2515 = vmatprep.subr.mxu0 0.0
      %2516 = vmatpush1.msra.mxu0 0.0
      %2517 = vmatprep.subr.mxu0 0.0
      %2518 = vmatpush1.msra.mxu0 0.0
      %2519 = vmatprep.subr.mxu0 0.0
      %2520 = vmatpush1.msra.mxu0 0.0
      %2521 = vmatprep.subr.mxu0 0.0
      %2522 = vmatpush1.msra.mxu0 0.0
      %2523 = vmatprep.subr.mxu0 0.0
      %2524 = vmatpush1.msra.mxu0 0.0
      %2525 = vmatprep.subr.mxu0 0.0
      %2526 = vmatpush1.msra.mxu0 0.0
      %2527 = vmatprep.subr.mxu0 0.0
      %2528 = vmatpush1.msra.mxu0 0.0
      %2529 = vmatprep.subr.mxu0 0.0
      %2530 = vmatpush1.msra.mxu0 0.0
      %2531 = vmatprep.subr.mxu0 0.0
      %2532 = vmatpush1.msra.mxu0 0.0
      %2533 = vmatprep.subr.mxu0 0.0
      %2534 = vmatpush1.msra.mxu0 0.0
      %2535 = vmatprep.subr.mxu0 0.0
      %2536 = vmatpush1.msra.mxu0 0.0
      %2537 = vmatprep.mubr.f32.mxu0 0.0
      %2538 = vmatmul.mubr.f32.gmra.mrb[0].mxu0 %v2471
      %v2539 = vpop.f32.mrb[0].mxu0
      %v2540 = vadd.f32 0.0, %v2539
      %v2541 = vpop.f32.mrb[0].mxu0
      %2542 = vdwg.mxu0
      %s2543 = scalar_lea.vmem %s16, 32
      %v2544 = vld [vmem:[%s2543] sm:$0xff]
      %v2545 = vld [vmem:[%s2543 + $0x8] sm:$0xff]
      %v2546 = vld [vmem:[%s2543 + $0x10] sm:$0xff]
      %v2547 = vld [vmem:[%s2543 + $0x18] sm:$0xff]
      %vm2548 = vcmask 261120
      %v2550 = vsel %vm2548, %v2540, 0
      %2552 = vmatprep.subr.mxu0 0.0
      %2553 = vmatpush1.msra.mxu0 %v2544
      %2554 = vmatprep.subr.mxu0 0.0
      %2555 = vmatpush1.msra.mxu0 %v2545
      %2556 = vmatprep.subr.mxu0 0.0
      %2557 = vmatpush1.msra.mxu0 %v2546
      %2558 = vmatprep.subr.mxu0 0.0
      %2559 = vmatpush1.msra.mxu0 %v2547
      %2560 = vmatprep.subr.mxu0 0.0
      %2561 = vmatpush1.msra.mxu0 0.0
      %2562 = vmatprep.subr.mxu0 0.0
      %2563 = vmatpush1.msra.mxu0 0.0
      %2564 = vmatprep.subr.mxu0 0.0
      %2565 = vmatpush1.msra.mxu0 0.0
      %2566 = vmatprep.subr.mxu0 0.0
      %2567 = vmatpush1.msra.mxu0 0.0
      %2568 = vmatprep.subr.mxu0 0.0
      %2569 = vmatpush1.msra.mxu0 0.0
      %2570 = vmatprep.subr.mxu0 0.0
      %2571 = vmatpush1.msra.mxu0 0.0
      %2572 = vmatprep.subr.mxu0 0.0
      %2573 = vmatpush1.msra.mxu0 0.0
      %2574 = vmatprep.subr.mxu0 0.0
      %2575 = vmatpush1.msra.mxu0 0.0
      %2576 = vmatprep.subr.mxu0 0.0
      %2577 = vmatpush1.msra.mxu0 0.0
      %2578 = vmatprep.subr.mxu0 0.0
      %2579 = vmatpush1.msra.mxu0 0.0
      %2580 = vmatprep.subr.mxu0 0.0
      %2581 = vmatpush1.msra.mxu0 0.0
      %2582 = vmatprep.subr.mxu0 0.0
      %2583 = vmatpush1.msra.mxu0 0.0
      %2584 = vmatprep.subr.mxu0 0.0
      %2585 = vmatpush1.msra.mxu0 0.0
      %2586 = vmatprep.subr.mxu0 0.0
      %2587 = vmatpush1.msra.mxu0 0.0
      %2588 = vmatprep.subr.mxu0 0.0
      %2589 = vmatpush1.msra.mxu0 0.0
      %2590 = vmatprep.subr.mxu0 0.0
      %2591 = vmatpush1.msra.mxu0 0.0
      %2592 = vmatprep.subr.mxu0 0.0
      %2593 = vmatpush1.msra.mxu0 0.0
      %2594 = vmatprep.subr.mxu0 0.0
      %2595 = vmatpush1.msra.mxu0 0.0
      %2596 = vmatprep.subr.mxu0 0.0
      %2597 = vmatpush1.msra.mxu0 0.0
      %2598 = vmatprep.subr.mxu0 0.0
      %2599 = vmatpush1.msra.mxu0 0.0
      %2600 = vmatprep.subr.mxu0 0.0
      %2601 = vmatpush1.msra.mxu0 0.0
      %2602 = vmatprep.subr.mxu0 0.0
      %2603 = vmatpush1.msra.mxu0 0.0
      %2604 = vmatprep.subr.mxu0 0.0
      %2605 = vmatpush1.msra.mxu0 0.0
      %2606 = vmatprep.subr.mxu0 0.0
      %2607 = vmatpush1.msra.mxu0 0.0
      %2608 = vmatprep.subr.mxu0 0.0
      %2609 = vmatpush1.msra.mxu0 0.0
      %2610 = vmatprep.subr.mxu0 0.0
      %2611 = vmatpush1.msra.mxu0 0.0
      %2612 = vmatprep.subr.mxu0 0.0
      %2613 = vmatpush1.msra.mxu0 0.0
      %2614 = vmatprep.subr.mxu0 0.0
      %2615 = vmatpush1.msra.mxu0 0.0
      %2616 = vmatprep.mubr.f32.mxu0 0.0
      %2617 = vmatmul.mubr.f32.gmra.mrb[0].mxu0 %v2550
      %v2618 = vpop.f32.mrb[0].mxu0
      %v2619 = vadd.f32 0.0, %v2618
      %v2620 = vpop.f32.mrb[0].mxu0
      %2621 = vdwg.mxu0
      %v2623 = vsel %vm2548, %v2461, 0
      %2625 = vmatprep.subr.mxu0 0.0
      %2626 = vmatpush1.msra.mxu0 %v2464
      %2627 = vmatprep.subr.mxu0 0.0
      %2628 = vmatpush1.msra.mxu0 %v2465
      %2629 = vmatprep.subr.mxu0 0.0
      %2630 = vmatpush1.msra.mxu0 %v2466
      %2631 = vmatprep.subr.mxu0 0.0
      %2632 = vmatpush1.msra.mxu0 %v2467
      %2633 = vmatprep.subr.mxu0 0.0
      %2634 = vmatpush1.msra.mxu0 0.0
      %2635 = vmatprep.subr.mxu0 0.0
      %2636 = vmatpush1.msra.mxu0 0.0
      %2637 = vmatprep.subr.mxu0 0.0
      %2638 = vmatpush1.msra.mxu0 0.0
      %2639 = vmatprep.subr.mxu0 0.0
      %2640 = vmatpush1.msra.mxu0 0.0
      %2641 = vmatprep.subr.mxu0 0.0
      %2642 = vmatpush1.msra.mxu0 0.0
      %2643 = vmatprep.subr.mxu0 0.0
      %2644 = vmatpush1.msra.mxu0 0.0
      %2645 = vmatprep.subr.mxu0 0.0
      %2646 = vmatpush1.msra.mxu0 0.0
      %2647 = vmatprep.subr.mxu0 0.0
      %2648 = vmatpush1.msra.mxu0 0.0
      %2649 = vmatprep.subr.mxu0 0.0
      %2650 = vmatpush1.msra.mxu0 0.0
      %2651 = vmatprep.subr.mxu0 0.0
      %2652 = vmatpush1.msra.mxu0 0.0
      %2653 = vmatprep.subr.mxu0 0.0
      %2654 = vmatpush1.msra.mxu0 0.0
      %2655 = vmatprep.subr.mxu0 0.0
      %2656 = vmatpush1.msra.mxu0 0.0
      %2657 = vmatprep.subr.mxu0 0.0
      %2658 = vmatpush1.msra.mxu0 0.0
      %2659 = vmatprep.subr.mxu0 0.0
      %2660 = vmatpush1.msra.mxu0 0.0
      %2661 = vmatprep.subr.mxu0 0.0
      %2662 = vmatpush1.msra.mxu0 0.0
      %2663 = vmatprep.subr.mxu0 0.0
      %2664 = vmatpush1.msra.mxu0 0.0
      %2665 = vmatprep.subr.mxu0 0.0
      %2666 = vmatpush1.msra.mxu0 0.0
      %2667 = vmatprep.subr.mxu0 0.0
      %2668 = vmatpush1.msra.mxu0 0.0
      %2669 = vmatprep.subr.mxu0 0.0
      %2670 = vmatpush1.msra.mxu0 0.0
      %2671 = vmatprep.subr.mxu0 0.0
      %2672 = vmatpush1.msra.mxu0 0.0
      %2673 = vmatprep.subr.mxu0 0.0
      %2674 = vmatpush1.msra.mxu0 0.0
      %2675 = vmatprep.subr.mxu0 0.0
      %2676 = vmatpush1.msra.mxu0 0.0
      %2677 = vmatprep.subr.mxu0 0.0
      %2678 = vmatpush1.msra.mxu0 0.0
      %2679 = vmatprep.subr.mxu0 0.0
      %2680 = vmatpush1.msra.mxu0 0.0
      %2681 = vmatprep.subr.mxu0 0.0
      %2682 = vmatpush1.msra.mxu0 0.0
      %2683 = vmatprep.subr.mxu0 0.0
      %2684 = vmatpush1.msra.mxu0 0.0
      %2685 = vmatprep.subr.mxu0 0.0
      %2686 = vmatpush1.msra.mxu0 0.0
      %2687 = vmatprep.subr.mxu0 0.0
      %2688 = vmatpush1.msra.mxu0 0.0
      %2689 = vmatprep.mubr.f32.mxu0 0.0
      %2690 = vmatmul.mubr.f32.gmra.mrb[0].mxu0 %v2623
      %v2691 = vpop.f32.mrb[0].mxu0
      %v2692 = vadd.f32 %v2619, %v2691
      %v2693 = vpop.f32.mrb[0].mxu0
      %2694 = vdwg.mxu0
      %s2695 = scalar_lea.vmem %s15, 16
      %v2696 = vld [vmem:[%s2695] sm:$0xff]
      %v2698 = vsel %vm2386, %v2696, 0
      %2700 = vmatprep.subr.mxu0 0.0
      %2701 = vmatpush1.msra.mxu0 %v2392
      %2702 = vmatprep.subr.mxu0 0.0
      %2703 = vmatpush1.msra.mxu0 0.0
      %2704 = vmatprep.subr.mxu0 0.0
      %2705 = vmatpush1.msra.mxu0 0.0
      %2706 = vmatprep.subr.mxu0 0.0
      %2707 = vmatpush1.msra.mxu0 0.0
      %2708 = vmatprep.subr.mxu0 0.0
      %2709 = vmatpush1.msra.mxu0 0.0
      %2710 = vmatprep.subr.mxu0 0.0
      %2711 = vmatpush1.msra.mxu0 0.0
      %2712 = vmatprep.subr.mxu0 0.0
      %2713 = vmatpush1.msra.mxu0 0.0
      %2714 = vmatprep.subr.mxu0 0.0
      %2715 = vmatpush1.msra.mxu0 0.0
      %2716 = vmatprep.subr.mxu0 0.0
      %2717 = vmatpush1.msra.mxu0 0.0
      %2718 = vmatprep.subr.mxu0 0.0
      %2719 = vmatpush1.msra.mxu0 0.0
      %2720 = vmatprep.subr.mxu0 0.0
      %2721 = vmatpush1.msra.mxu0 0.0
      %2722 = vmatprep.subr.mxu0 0.0
      %2723 = vmatpush1.msra.mxu0 0.0
      %2724 = vmatprep.subr.mxu0 0.0
      %2725 = vmatpush1.msra.mxu0 0.0
      %2726 = vmatprep.subr.mxu0 0.0
      %2727 = vmatpush1.msra.mxu0 0.0
      %2728 = vmatprep.subr.mxu0 0.0
      %2729 = vmatpush1.msra.mxu0 0.0
      %2730 = vmatprep.subr.mxu0 0.0
      %2731 = vmatpush1.msra.mxu0 0.0
      %2732 = vmatprep.subr.mxu0 0.0
      %2733 = vmatpush1.msra.mxu0 0.0
      %2734 = vmatprep.subr.mxu0 0.0
      %2735 = vmatpush1.msra.mxu0 0.0
      %2736 = vmatprep.subr.mxu0 0.0
      %2737 = vmatpush1.msra.mxu0 0.0
      %2738 = vmatprep.subr.mxu0 0.0
      %2739 = vmatpush1.msra.mxu0 0.0
      %2740 = vmatprep.subr.mxu0 0.0
      %2741 = vmatpush1.msra.mxu0 0.0
      %2742 = vmatprep.subr.mxu0 0.0
      %2743 = vmatpush1.msra.mxu0 0.0
      %2744 = vmatprep.subr.mxu0 0.0
      %2745 = vmatpush1.msra.mxu0 0.0
      %2746 = vmatprep.subr.mxu0 0.0
      %2747 = vmatpush1.msra.mxu0 0.0
      %2748 = vmatprep.subr.mxu0 0.0
      %2749 = vmatpush1.msra.mxu0 0.0
      %2750 = vmatprep.subr.mxu0 0.0
      %2751 = vmatpush1.msra.mxu0 0.0
      %2752 = vmatprep.subr.mxu0 0.0
      %2753 = vmatpush1.msra.mxu0 0.0
      %2754 = vmatprep.subr.mxu0 0.0
      %2755 = vmatpush1.msra.mxu0 0.0
      %2756 = vmatprep.subr.mxu0 0.0
      %2757 = vmatpush1.msra.mxu0 0.0
      %2758 = vmatprep.subr.mxu0 0.0
      %2759 = vmatpush1.msra.mxu0 0.0
      %2760 = vmatprep.subr.mxu0 0.0
      %2761 = vmatpush1.msra.mxu0 0.0
      %2762 = vmatprep.subr.mxu0 0.0
      %2763 = vmatpush1.msra.mxu0 0.0
      %2764 = vmatprep.mubr.f32.mxu0 0.0
      %2765 = vmatmul.mubr.f32.gmra.mrb[0].mxu0 %v2698
      %v2766 = vpop.f32.mrb[0].mxu0
      %v2767 = vadd.f32 0.0, %v2766
      %v2768 = vpop.f32.mrb[0].mxu0
      %2769 = vdwg.mxu0
      %s2770 = scalar_lea.vmem %s16, 64
      %v2771 = vld [vmem:[%s2770] sm:$0xff]
      %v2772 = vld [vmem:[%s2770 + $0x8] sm:$0xff]
      %v2773 = vld [vmem:[%s2770 + $0x10] sm:$0xff]
      %v2774 = vld [vmem:[%s2770 + $0x18] sm:$0xff]
      %v2776 = vsel %vm2548, %v2767, 0
      %2778 = vmatprep.subr.mxu0 0.0
      %2779 = vmatpush1.msra.mxu0 %v2771
      %2780 = vmatprep.subr.mxu0 0.0
      %2781 = vmatpush1.msra.mxu0 %v2772
      %2782 = vmatprep.subr.mxu0 0.0
      %2783 = vmatpush1.msra.mxu0 %v2773
      %2784 = vmatprep.subr.mxu0 0.0
      %2785 = vmatpush1.msra.mxu0 %v2774
      %2786 = vmatprep.subr.mxu0 0.0
      %2787 = vmatpush1.msra.mxu0 0.0
      %2788 = vmatprep.subr.mxu0 0.0
      %2789 = vmatpush1.msra.mxu0 0.0
      %2790 = vmatprep.subr.mxu0 0.0
      %2791 = vmatpush1.msra.mxu0 0.0
      %2792 = vmatprep.subr.mxu0 0.0
      %2793 = vmatpush1.msra.mxu0 0.0
      %2794 = vmatprep.subr.mxu0 0.0
      %2795 = vmatpush1.msra.mxu0 0.0
      %2796 = vmatprep.subr.mxu0 0.0
      %2797 = vmatpush1.msra.mxu0 0.0
      %2798 = vmatprep.subr.mxu0 0.0
      %2799 = vmatpush1.msra.mxu0 0.0
      %2800 = vmatprep.subr.mxu0 0.0
      %2801 = vmatpush1.msra.mxu0 0.0
      %2802 = vmatprep.subr.mxu0 0.0
      %2803 = vmatpush1.msra.mxu0 0.0
      %2804 = vmatprep.subr.mxu0 0.0
      %2805 = vmatpush1.msra.mxu0 0.0
      %2806 = vmatprep.subr.mxu0 0.0
      %2807 = vmatpush1.msra.mxu0 0.0
      %2808 = vmatprep.subr.mxu0 0.0
      %2809 = vmatpush1.msra.mxu0 0.0
      %2810 = vmatprep.subr.mxu0 0.0
      %2811 = vmatpush1.msra.mxu0 0.0
      %2812 = vmatprep.subr.mxu0 0.0
      %2813 = vmatpush1.msra.mxu0 0.0
      %2814 = vmatprep.subr.mxu0 0.0
      %2815 = vmatpush1.msra.mxu0 0.0
      %2816 = vmatprep.subr.mxu0 0.0
      %2817 = vmatpush1.msra.mxu0 0.0
      %2818 = vmatprep.subr.mxu0 0.0
      %2819 = vmatpush1.msra.mxu0 0.0
      %2820 = vmatprep.subr.mxu0 0.0
      %2821 = vmatpush1.msra.mxu0 0.0
      %2822 = vmatprep.subr.mxu0 0.0
      %2823 = vmatpush1.msra.mxu0 0.0
      %2824 = vmatprep.subr.mxu0 0.0
      %2825 = vmatpush1.msra.mxu0 0.0
      %2826 = vmatprep.subr.mxu0 0.0
      %2827 = vmatpush1.msra.mxu0 0.0
      %2828 = vmatprep.subr.mxu0 0.0
      %2829 = vmatpush1.msra.mxu0 0.0
      %2830 = vmatprep.subr.mxu0 0.0
      %2831 = vmatpush1.msra.mxu0 0.0
      %2832 = vmatprep.subr.mxu0 0.0
      %2833 = vmatpush1.msra.mxu0 0.0
      %2834 = vmatprep.subr.mxu0 0.0
      %2835 = vmatpush1.msra.mxu0 0.0
      %2836 = vmatprep.subr.mxu0 0.0
      %2837 = vmatpush1.msra.mxu0 0.0
      %2838 = vmatprep.subr.mxu0 0.0
      %2839 = vmatpush1.msra.mxu0 0.0
      %2840 = vmatprep.subr.mxu0 0.0
      %2841 = vmatpush1.msra.mxu0 0.0
      %2842 = vmatprep.mubr.f32.mxu0 0.0
      %2843 = vmatmul.mubr.f32.gmra.mrb[0].mxu0 %v2776
      %v2844 = vpop.f32.mrb[0].mxu0
      %v2845 = vadd.f32 0.0, %v2844
      %v2846 = vpop.f32.mrb[0].mxu0
      %2847 = vdwg.mxu0
      %v2848 = vadd.f32 %v2692, %v2845
      %v2849 = vld [vmem:[%s17] sm:$0x1]
      %v2851 = vlaneseq
      %v2852 = vshrl.u32 %v2851, 7
      %v2853 = vsub.s32 0, %v2852
      %v2854 = vrot.slane %v2849, %v2853
      %v2856 = vadd.f32 %v2848, %v2854
      %v2857 = vmax.f32 %v2856, 0.0
      %v2858 = vld [vmem:[%s18] sm:$0xff]
      %v2859 = vld [vmem:[%s18 + $0x8] sm:$0xff]
      %v2861 = vsel %vm1581, %v2858, 0
      %v2864 = vsel %vm1581, %v2859, 0
      %2866 = vmatprep.subr.mxu0 0.0
      %2867 = vmatpush1.msra.mxu0 %v2857
      %2868 = vmatprep.subr.mxu0 0.0
      %2869 = vmatpush1.msra.mxu0 0.0
      %2870 = vmatprep.subr.mxu0 0.0
      %2871 = vmatpush1.msra.mxu0 0.0
      %2872 = vmatprep.subr.mxu0 0.0
      %2873 = vmatpush1.msra.mxu0 0.0
      %2874 = vmatprep.subr.mxu0 0.0
      %2875 = vmatpush1.msra.mxu0 0.0
      %2876 = vmatprep.subr.mxu0 0.0
      %2877 = vmatpush1.msra.mxu0 0.0
      %2878 = vmatprep.subr.mxu0 0.0
      %2879 = vmatpush1.msra.mxu0 0.0
      %2880 = vmatprep.subr.mxu0 0.0
      %2881 = vmatpush1.msra.mxu0 0.0
      %2882 = vmatprep.subr.mxu0 0.0
      %2883 = vmatpush1.msra.mxu0 0.0
      %2884 = vmatprep.subr.mxu0 0.0
      %2885 = vmatpush1.msra.mxu0 0.0
      %2886 = vmatprep.subr.mxu0 0.0
      %2887 = vmatpush1.msra.mxu0 0.0
      %2888 = vmatprep.subr.mxu0 0.0
      %2889 = vmatpush1.msra.mxu0 0.0
      %2890 = vmatprep.subr.mxu0 0.0
      %2891 = vmatpush1.msra.mxu0 0.0
      %2892 = vmatprep.subr.mxu0 0.0
      %2893 = vmatpush1.msra.mxu0 0.0
      %2894 = vmatprep.subr.mxu0 0.0
      %2895 = vmatpush1.msra.mxu0 0.0
      %2896 = vmatprep.subr.mxu0 0.0
      %2897 = vmatpush1.msra.mxu0 0.0
      %2898 = vmatprep.subr.mxu0 0.0
      %2899 = vmatpush1.msra.mxu0 0.0
      %2900 = vmatprep.subr.mxu0 0.0
      %2901 = vmatpush1.msra.mxu0 0.0
      %2902 = vmatprep.subr.mxu0 0.0
      %2903 = vmatpush1.msra.mxu0 0.0
      %2904 = vmatprep.subr.mxu0 0.0
      %2905 = vmatpush1.msra.mxu0 0.0
      %2906 = vmatprep.subr.mxu0 0.0
      %2907 = vmatpush1.msra.mxu0 0.0
      %2908 = vmatprep.subr.mxu0 0.0
      %2909 = vmatpush1.msra.mxu0 0.0
      %2910 = vmatprep.subr.mxu0 0.0
      %2911 = vmatpush1.msra.mxu0 0.0
      %2912 = vmatprep.subr.mxu0 0.0
      %2913 = vmatpush1.msra.mxu0 0.0
      %2914 = vmatprep.subr.mxu0 0.0
      %2915 = vmatpush1.msra.mxu0 0.0
      %2916 = vmatprep.subr.mxu0 0.0
      %2917 = vmatpush1.msra.mxu0 0.0
      %2918 = vmatprep.subr.mxu0 0.0
      %2919 = vmatpush1.msra.mxu0 0.0
      %2920 = vmatprep.subr.mxu0 0.0
      %2921 = vmatpush1.msra.mxu0 0.0
      %2922 = vmatprep.subr.mxu0 0.0
      %2923 = vmatpush1.msra.mxu0 0.0
      %2924 = vmatprep.subr.mxu0 0.0
      %2925 = vmatpush1.msra.mxu0 0.0
      %2926 = vmatprep.subr.mxu0 0.0
      %2927 = vmatpush1.msra.mxu0 0.0
      %2928 = vmatprep.subr.mxu0 0.0
      %2929 = vmatpush1.msra.mxu0 0.0
      %2930 = vmatprep.mubr.f32.mxu0 0.0
      %2931 = vmatmul.mubr.f32.gmra.mrb[0].mxu0 %v2861
      %v2932 = vpop.f32.mrb[0].mxu0
      %v2933 = vadd.f32 0.0, %v2932
      %v2934 = vpop.f32.mrb[0].mxu0
      %2935 = vmatprep.mubr.f32.mxu0 0.0
      %2936 = vmatmul.mubr.f32.gmra.mrb[0].mxu0 %v2864
      %v2937 = vpop.f32.mrb[0].mxu0
      %v2938 = vadd.f32 0.0, %v2937
      %v2939 = vpop.f32.mrb[0].mxu0
      %2940 = vdwg.mxu0
      %v2941 = vld [vmem:[%s19] sm:$0xff]
      %v2942 = vld [vmem:[%s19 + $0x8] sm:$0xff]
      %v2943 = vld [vmem:[%s19 + $0x10] sm:$0xff]
      %v2944 = vld [vmem:[%s19 + $0x18] sm:$0xff]
      %v2945 = vld [vmem:[%s19 + $0x20] sm:$0xff]
      %v2946 = vld [vmem:[%s19 + $0x28] sm:$0xff]
      %v2947 = vld [vmem:[%s19 + $0x30] sm:$0xff]
      %v2948 = vld [vmem:[%s19 + $0x38] sm:$0xff]
      %v2949 = vld [vmem:[%s19 + $0x40] sm:$0xff]
      %v2950 = vld [vmem:[%s19 + $0x48] sm:$0xff]
      %v2951 = vld [vmem:[%s19 + $0x50] sm:$0xff]
      %v2952 = vld [vmem:[%s19 + $0x58] sm:$0xff]
      %v2953 = vld [vmem:[%s19 + $0x60] sm:$0xff]
      %v2954 = vld [vmem:[%s19 + $0x68] sm:$0xff]
      %v2955 = vld [vmem:[%s19 + $0x70] sm:$0xff]
      %v2956 = vld [vmem:[%s19 + $0x78] sm:$0xff]
      %s2957 = scalar_lea.vmem %s18, 16
      %v2958 = vld [vmem:[%s2957] sm:$0xff]
      %v2959 = vld [vmem:[%s2957 + $0x8] sm:$0xff]
      %v2961 = vsel %vm1581, %v2958, 0
      %v2964 = vsel %vm1581, %v2959, 0
      %2966 = vmatprep.subr.mxu0 0.0
      %2967 = vmatpush1.msra.mxu0 %v2857
      %2968 = vmatprep.subr.mxu0 0.0
      %2969 = vmatpush1.msra.mxu0 0.0
      %2970 = vmatprep.subr.mxu0 0.0
      %2971 = vmatpush1.msra.mxu0 0.0
      %2972 = vmatprep.subr.mxu0 0.0
      %2973 = vmatpush1.msra.mxu0 0.0
      %2974 = vmatprep.subr.mxu0 0.0
      %2975 = vmatpush1.msra.mxu0 0.0
      %2976 = vmatprep.subr.mxu0 0.0
      %2977 = vmatpush1.msra.mxu0 0.0
      %2978 = vmatprep.subr.mxu0 0.0
      %2979 = vmatpush1.msra.mxu0 0.0
      %2980 = vmatprep.subr.mxu0 0.0
      %2981 = vmatpush1.msra.mxu0 0.0
      %2982 = vmatprep.subr.mxu0 0.0
      %2983 = vmatpush1.msra.mxu0 0.0
      %2984 = vmatprep.subr.mxu0 0.0
      %2985 = vmatpush1.msra.mxu0 0.0
      %2986 = vmatprep.subr.mxu0 0.0
      %2987 = vmatpush1.msra.mxu0 0.0
      %2988 = vmatprep.subr.mxu0 0.0
      %2989 = vmatpush1.msra.mxu0 0.0
      %2990 = vmatprep.subr.mxu0 0.0
      %2991 = vmatpush1.msra.mxu0 0.0
      %2992 = vmatprep.subr.mxu0 0.0
      %2993 = vmatpush1.msra.mxu0 0.0
      %2994 = vmatprep.subr.mxu0 0.0
      %2995 = vmatpush1.msra.mxu0 0.0
      %2996 = vmatprep.subr.mxu0 0.0
      %2997 = vmatpush1.msra.mxu0 0.0
      %2998 = vmatprep.subr.mxu0 0.0
      %2999 = vmatpush1.msra.mxu0 0.0
      %3000 = vmatprep.subr.mxu0 0.0
      %3001 = vmatpush1.msra.mxu0 0.0
      %3002 = vmatprep.subr.mxu0 0.0
      %3003 = vmatpush1.msra.mxu0 0.0
      %3004 = vmatprep.subr.mxu0 0.0
      %3005 = vmatpush1.msra.mxu0 0.0
      %3006 = vmatprep.subr.mxu0 0.0
      %3007 = vmatpush1.msra.mxu0 0.0
      %3008 = vmatprep.subr.mxu0 0.0
      %3009 = vmatpush1.msra.mxu0 0.0
      %3010 = vmatprep.subr.mxu0 0.0
      %3011 = vmatpush1.msra.mxu0 0.0
      %3012 = vmatprep.subr.mxu0 0.0
      %3013 = vmatpush1.msra.mxu0 0.0
      %3014 = vmatprep.subr.mxu0 0.0
      %3015 = vmatpush1.msra.mxu0 0.0
      %3016 = vmatprep.subr.mxu0 0.0
      %3017 = vmatpush1.msra.mxu0 0.0
      %3018 = vmatprep.subr.mxu0 0.0
      %3019 = vmatpush1.msra.mxu0 0.0
      %3020 = vmatprep.subr.mxu0 0.0
      %3021 = vmatpush1.msra.mxu0 0.0
      %3022 = vmatprep.subr.mxu0 0.0
      %3023 = vmatpush1.msra.mxu0 0.0
      %3024 = vmatprep.subr.mxu0 0.0
      %3025 = vmatpush1.msra.mxu0 0.0
      %3026 = vmatprep.subr.mxu0 0.0
      %3027 = vmatpush1.msra.mxu0 0.0
      %3028 = vmatprep.subr.mxu0 0.0
      %3029 = vmatpush1.msra.mxu0 0.0
      %3030 = vmatprep.mubr.f32.mxu0 0.0
      %3031 = vmatmul.mubr.f32.gmra.mrb[0].mxu0 %v2961
      %v3032 = vpop.f32.mrb[0].mxu0
      %v3033 = vadd.f32 0.0, %v3032
      %v3034 = vpop.f32.mrb[0].mxu0
      %3035 = vmatprep.mubr.f32.mxu0 0.0
      %3036 = vmatmul.mubr.f32.gmra.mrb[0].mxu0 %v2964
      %v3037 = vpop.f32.mrb[0].mxu0
      %v3038 = vadd.f32 0.0, %v3037
      %v3039 = vpop.f32.mrb[0].mxu0
      %3040 = vdwg.mxu0
      %s3041 = scalar_lea.vmem %s19, 128
      %v3042 = vld [vmem:[%s3041] sm:$0xff]
      %v3043 = vld [vmem:[%s3041 + $0x8] sm:$0xff]
      %v3044 = vld [vmem:[%s3041 + $0x10] sm:$0xff]
      %v3045 = vld [vmem:[%s3041 + $0x18] sm:$0xff]
      %v3046 = vld [vmem:[%s3041 + $0x20] sm:$0xff]
      %v3047 = vld [vmem:[%s3041 + $0x28] sm:$0xff]
      %v3048 = vld [vmem:[%s3041 + $0x30] sm:$0xff]
      %v3049 = vld [vmem:[%s3041 + $0x38] sm:$0xff]
      %v3050 = vld [vmem:[%s3041 + $0x40] sm:$0xff]
      %v3051 = vld [vmem:[%s3041 + $0x48] sm:$0xff]
      %v3052 = vld [vmem:[%s3041 + $0x50] sm:$0xff]
      %v3053 = vld [vmem:[%s3041 + $0x58] sm:$0xff]
      %v3054 = vld [vmem:[%s3041 + $0x60] sm:$0xff]
      %v3055 = vld [vmem:[%s3041 + $0x68] sm:$0xff]
      %v3056 = vld [vmem:[%s3041 + $0x70] sm:$0xff]
      %v3057 = vld [vmem:[%s3041 + $0x78] sm:$0xff]
      %3058 = vmatprep.subr.mxu0 0.0
      %3059 = vmatpush1.msra.mxu0 %v3042
      %3060 = vmatprep.subr.mxu0 0.0
      %3061 = vmatpush1.msra.mxu0 %v3043
      %3062 = vmatprep.subr.mxu0 0.0
      %3063 = vmatpush1.msra.mxu0 %v3044
      %3064 = vmatprep.subr.mxu0 0.0
      %3065 = vmatpush1.msra.mxu0 %v3045
      %3066 = vmatprep.subr.mxu0 0.0
      %3067 = vmatpush1.msra.mxu0 %v3046
      %3068 = vmatprep.subr.mxu0 0.0
      %3069 = vmatpush1.msra.mxu0 %v3047
      %3070 = vmatprep.subr.mxu0 0.0
      %3071 = vmatpush1.msra.mxu0 %v3048
      %3072 = vmatprep.subr.mxu0 0.0
      %3073 = vmatpush1.msra.mxu0 %v3049
      %3074 = vmatprep.subr.mxu0 0.0
      %3075 = vmatpush1.msra.mxu0 %v3050
      %3076 = vmatprep.subr.mxu0 0.0
      %3077 = vmatpush1.msra.mxu0 %v3051
      %3078 = vmatprep.subr.mxu0 0.0
      %3079 = vmatpush1.msra.mxu0 %v3052
      %3080 = vmatprep.subr.mxu0 0.0
      %3081 = vmatpush1.msra.mxu0 %v3053
      %3082 = vmatprep.subr.mxu0 0.0
      %3083 = vmatpush1.msra.mxu0 %v3054
      %3084 = vmatprep.subr.mxu0 0.0
      %3085 = vmatpush1.msra.mxu0 %v3055
      %3086 = vmatprep.subr.mxu0 0.0
      %3087 = vmatpush1.msra.mxu0 %v3056
      %3088 = vmatprep.subr.mxu0 0.0
      %3089 = vmatpush1.msra.mxu0 %v3057
      %3090 = vmatprep.subr.mxu0 0.0
      %3091 = vmatpush1.msra.mxu0 0.0
      %3092 = vmatprep.subr.mxu0 0.0
      %3093 = vmatpush1.msra.mxu0 0.0
      %3094 = vmatprep.subr.mxu0 0.0
      %3095 = vmatpush1.msra.mxu0 0.0
      %3096 = vmatprep.subr.mxu0 0.0
      %3097 = vmatpush1.msra.mxu0 0.0
      %3098 = vmatprep.subr.mxu0 0.0
      %3099 = vmatpush1.msra.mxu0 0.0
      %3100 = vmatprep.subr.mxu0 0.0
      %3101 = vmatpush1.msra.mxu0 0.0
      %3102 = vmatprep.subr.mxu0 0.0
      %3103 = vmatpush1.msra.mxu0 0.0
      %3104 = vmatprep.subr.mxu0 0.0
      %3105 = vmatpush1.msra.mxu0 0.0
      %3106 = vmatprep.subr.mxu0 0.0
      %3107 = vmatpush1.msra.mxu0 0.0
      %3108 = vmatprep.subr.mxu0 0.0
      %3109 = vmatpush1.msra.mxu0 0.0
      %3110 = vmatprep.subr.mxu0 0.0
      %3111 = vmatpush1.msra.mxu0 0.0
      %3112 = vmatprep.subr.mxu0 0.0
      %3113 = vmatpush1.msra.mxu0 0.0
      %3114 = vmatprep.subr.mxu0 0.0
      %3115 = vmatpush1.msra.mxu0 0.0
      %3116 = vmatprep.subr.mxu0 0.0
      %3117 = vmatpush1.msra.mxu0 0.0
      %3118 = vmatprep.subr.mxu0 0.0
      %3119 = vmatpush1.msra.mxu0 0.0
      %3120 = vmatprep.subr.mxu0 0.0
      %3121 = vmatpush1.msra.mxu0 0.0
      %3122 = vmatprep.mubr.f32.mxu0 0.0
      %3123 = vmatmul.mubr.f32.gmra.mrb[0].mxu0 %v3033
      %v3124 = vpop.f32.mrb[0].mxu0
      %v3125 = vadd.f32 0.0, %v3124
      %v3126 = vpop.f32.mrb[0].mxu0
      %3127 = vmatprep.mubr.f32.mxu0 0.0
      %3128 = vmatmul.mubr.f32.gmra.mrb[0].mxu0 %v3038
      %v3129 = vpop.f32.mrb[0].mxu0
      %v3130 = vadd.f32 0.0, %v3129
      %v3131 = vpop.f32.mrb[0].mxu0
      %3132 = vdwg.mxu0
      %3133 = vmatprep.subr.mxu0 0.0
      %3134 = vmatpush1.msra.mxu0 %v2941
      %3135 = vmatprep.subr.mxu0 0.0
      %3136 = vmatpush1.msra.mxu0 %v2942
      %3137 = vmatprep.subr.mxu0 0.0
      %3138 = vmatpush1.msra.mxu0 %v2943
      %3139 = vmatprep.subr.mxu0 0.0
      %3140 = vmatpush1.msra.mxu0 %v2944
      %3141 = vmatprep.subr.mxu0 0.0
      %3142 = vmatpush1.msra.mxu0 %v2945
      %3143 = vmatprep.subr.mxu0 0.0
      %3144 = vmatpush1.msra.mxu0 %v2946
      %3145 = vmatprep.subr.mxu0 0.0
      %3146 = vmatpush1.msra.mxu0 %v2947
      %3147 = vmatprep.subr.mxu0 0.0
      %3148 = vmatpush1.msra.mxu0 %v2948
      %3149 = vmatprep.subr.mxu0 0.0
      %3150 = vmatpush1.msra.mxu0 %v2949
      %3151 = vmatprep.subr.mxu0 0.0
      %3152 = vmatpush1.msra.mxu0 %v2950
      %3153 = vmatprep.subr.mxu0 0.0
      %3154 = vmatpush1.msra.mxu0 %v2951
      %3155 = vmatprep.subr.mxu0 0.0
      %3156 = vmatpush1.msra.mxu0 %v2952
      %3157 = vmatprep.subr.mxu0 0.0
      %3158 = vmatpush1.msra.mxu0 %v2953
      %3159 = vmatprep.subr.mxu0 0.0
      %3160 = vmatpush1.msra.mxu0 %v2954
      %3161 = vmatprep.subr.mxu0 0.0
      %3162 = vmatpush1.msra.mxu0 %v2955
      %3163 = vmatprep.subr.mxu0 0.0
      %3164 = vmatpush1.msra.mxu0 %v2956
      %3165 = vmatprep.subr.mxu0 0.0
      %3166 = vmatpush1.msra.mxu0 0.0
      %3167 = vmatprep.subr.mxu0 0.0
      %3168 = vmatpush1.msra.mxu0 0.0
      %3169 = vmatprep.subr.mxu0 0.0
      %3170 = vmatpush1.msra.mxu0 0.0
      %3171 = vmatprep.subr.mxu0 0.0
      %3172 = vmatpush1.msra.mxu0 0.0
      %3173 = vmatprep.subr.mxu0 0.0
      %3174 = vmatpush1.msra.mxu0 0.0
      %3175 = vmatprep.subr.mxu0 0.0
      %3176 = vmatpush1.msra.mxu0 0.0
      %3177 = vmatprep.subr.mxu0 0.0
      %3178 = vmatpush1.msra.mxu0 0.0
      %3179 = vmatprep.subr.mxu0 0.0
      %3180 = vmatpush1.msra.mxu0 0.0
      %3181 = vmatprep.subr.mxu0 0.0
      %3182 = vmatpush1.msra.mxu0 0.0
      %3183 = vmatprep.subr.mxu0 0.0
      %3184 = vmatpush1.msra.mxu0 0.0
      %3185 = vmatprep.subr.mxu0 0.0
      %3186 = vmatpush1.msra.mxu0 0.0
      %3187 = vmatprep.subr.mxu0 0.0
      %3188 = vmatpush1.msra.mxu0 0.0
      %3189 = vmatprep.subr.mxu0 0.0
      %3190 = vmatpush1.msra.mxu0 0.0
      %3191 = vmatprep.subr.mxu0 0.0
      %3192 = vmatpush1.msra.mxu0 0.0
      %3193 = vmatprep.subr.mxu0 0.0
      %3194 = vmatpush1.msra.mxu0 0.0
      %3195 = vmatprep.subr.mxu0 0.0
      %3196 = vmatpush1.msra.mxu0 0.0
      %3197 = vmatprep.mubr.f32.mxu0 0.0
      %3198 = vmatmul.mubr.f32.gmra.mrb[0].mxu0 %v2933
      %v3199 = vpop.f32.mrb[0].mxu0
      %v3200 = vadd.f32 %v3125, %v3199
      %v3201 = vpop.f32.mrb[0].mxu0
      %3202 = vmatprep.mubr.f32.mxu0 0.0
      %3203 = vmatmul.mubr.f32.gmra.mrb[0].mxu0 %v2938
      %v3204 = vpop.f32.mrb[0].mxu0
      %v3205 = vadd.f32 %v3130, %v3204
      %v3206 = vpop.f32.mrb[0].mxu0
      %3207 = vdwg.mxu0
      %s3208 = scalar_lea.vmem %s18, 32
      %v3209 = vld [vmem:[%s3208] sm:$0xff]
      %v3210 = vld [vmem:[%s3208 + $0x8] sm:$0xff]
      %v3212 = vsel %vm1581, %v3209, 0
      %v3215 = vsel %vm1581, %v3210, 0
      %3217 = vmatprep.subr.mxu0 0.0
      %3218 = vmatpush1.msra.mxu0 %v2857
      %3219 = vmatprep.subr.mxu0 0.0
      %3220 = vmatpush1.msra.mxu0 0.0
      %3221 = vmatprep.subr.mxu0 0.0
      %3222 = vmatpush1.msra.mxu0 0.0
      %3223 = vmatprep.subr.mxu0 0.0
      %3224 = vmatpush1.msra.mxu0 0.0
      %3225 = vmatprep.subr.mxu0 0.0
      %3226 = vmatpush1.msra.mxu0 0.0
      %3227 = vmatprep.subr.mxu0 0.0
      %3228 = vmatpush1.msra.mxu0 0.0
      %3229 = vmatprep.subr.mxu0 0.0
      %3230 = vmatpush1.msra.mxu0 0.0
      %3231 = vmatprep.subr.mxu0 0.0
      %3232 = vmatpush1.msra.mxu0 0.0
      %3233 = vmatprep.subr.mxu0 0.0
      %3234 = vmatpush1.msra.mxu0 0.0
      %3235 = vmatprep.subr.mxu0 0.0
      %3236 = vmatpush1.msra.mxu0 0.0
      %3237 = vmatprep.subr.mxu0 0.0
      %3238 = vmatpush1.msra.mxu0 0.0
      %3239 = vmatprep.subr.mxu0 0.0
      %3240 = vmatpush1.msra.mxu0 0.0
      %3241 = vmatprep.subr.mxu0 0.0
      %3242 = vmatpush1.msra.mxu0 0.0
      %3243 = vmatprep.subr.mxu0 0.0
      %3244 = vmatpush1.msra.mxu0 0.0
      %3245 = vmatprep.subr.mxu0 0.0
      %3246 = vmatpush1.msra.mxu0 0.0
      %3247 = vmatprep.subr.mxu0 0.0
      %3248 = vmatpush1.msra.mxu0 0.0
      %3249 = vmatprep.subr.mxu0 0.0
      %3250 = vmatpush1.msra.mxu0 0.0
      %3251 = vmatprep.subr.mxu0 0.0
      %3252 = vmatpush1.msra.mxu0 0.0
      %3253 = vmatprep.subr.mxu0 0.0
      %3254 = vmatpush1.msra.mxu0 0.0
      %3255 = vmatprep.subr.mxu0 0.0
      %3256 = vmatpush1.msra.mxu0 0.0
      %3257 = vmatprep.subr.mxu0 0.0
      %3258 = vmatpush1.msra.mxu0 0.0
      %3259 = vmatprep.subr.mxu0 0.0
      %3260 = vmatpush1.msra.mxu0 0.0
      %3261 = vmatprep.subr.mxu0 0.0
      %3262 = vmatpush1.msra.mxu0 0.0
      %3263 = vmatprep.subr.mxu0 0.0
      %3264 = vmatpush1.msra.mxu0 0.0
      %3265 = vmatprep.subr.mxu0 0.0
      %3266 = vmatpush1.msra.mxu0 0.0
      %3267 = vmatprep.subr.mxu0 0.0
      %3268 = vmatpush1.msra.mxu0 0.0
      %3269 = vmatprep.subr.mxu0 0.0
      %3270 = vmatpush1.msra.mxu0 0.0
      %3271 = vmatprep.subr.mxu0 0.0
      %3272 = vmatpush1.msra.mxu0 0.0
      %3273 = vmatprep.subr.mxu0 0.0
      %3274 = vmatpush1.msra.mxu0 0.0
      %3275 = vmatprep.subr.mxu0 0.0
      %3276 = vmatpush1.msra.mxu0 0.0
      %3277 = vmatprep.subr.mxu0 0.0
      %3278 = vmatpush1.msra.mxu0 0.0
      %3279 = vmatprep.subr.mxu0 0.0
      %3280 = vmatpush1.msra.mxu0 0.0
      %3281 = vmatprep.mubr.f32.mxu0 0.0
      %3282 = vmatmul.mubr.f32.gmra.mrb[0].mxu0 %v3212
      %v3283 = vpop.f32.mrb[0].mxu0
      %v3284 = vadd.f32 0.0, %v3283
      %v3285 = vpop.f32.mrb[0].mxu0
      %3286 = vmatprep.mubr.f32.mxu0 0.0
      %3287 = vmatmul.mubr.f32.gmra.mrb[0].mxu0 %v3215
      %v3288 = vpop.f32.mrb[0].mxu0
      %v3289 = vadd.f32 0.0, %v3288
      %v3290 = vpop.f32.mrb[0].mxu0
      %3291 = vdwg.mxu0
      %s3292 = scalar_lea.vmem %s19, 256
      %v3293 = vld [vmem:[%s3292] sm:$0xff]
      %v3294 = vld [vmem:[%s3292 + $0x8] sm:$0xff]
      %v3295 = vld [vmem:[%s3292 + $0x10] sm:$0xff]
      %v3296 = vld [vmem:[%s3292 + $0x18] sm:$0xff]
      %v3297 = vld [vmem:[%s3292 + $0x20] sm:$0xff]
      %v3298 = vld [vmem:[%s3292 + $0x28] sm:$0xff]
      %v3299 = vld [vmem:[%s3292 + $0x30] sm:$0xff]
      %v3300 = vld [vmem:[%s3292 + $0x38] sm:$0xff]
      %v3301 = vld [vmem:[%s3292 + $0x40] sm:$0xff]
      %v3302 = vld [vmem:[%s3292 + $0x48] sm:$0xff]
      %v3303 = vld [vmem:[%s3292 + $0x50] sm:$0xff]
      %v3304 = vld [vmem:[%s3292 + $0x58] sm:$0xff]
      %v3305 = vld [vmem:[%s3292 + $0x60] sm:$0xff]
      %v3306 = vld [vmem:[%s3292 + $0x68] sm:$0xff]
      %v3307 = vld [vmem:[%s3292 + $0x70] sm:$0xff]
      %v3308 = vld [vmem:[%s3292 + $0x78] sm:$0xff]
      %3309 = vmatprep.subr.mxu0 0.0
      %3310 = vmatpush1.msra.mxu0 %v3293
      %3311 = vmatprep.subr.mxu0 0.0
      %3312 = vmatpush1.msra.mxu0 %v3294
      %3313 = vmatprep.subr.mxu0 0.0
      %3314 = vmatpush1.msra.mxu0 %v3295
      %3315 = vmatprep.subr.mxu0 0.0
      %3316 = vmatpush1.msra.mxu0 %v3296
      %3317 = vmatprep.subr.mxu0 0.0
      %3318 = vmatpush1.msra.mxu0 %v3297
      %3319 = vmatprep.subr.mxu0 0.0
      %3320 = vmatpush1.msra.mxu0 %v3298
      %3321 = vmatprep.subr.mxu0 0.0
      %3322 = vmatpush1.msra.mxu0 %v3299
      %3323 = vmatprep.subr.mxu0 0.0
      %3324 = vmatpush1.msra.mxu0 %v3300
      %3325 = vmatprep.subr.mxu0 0.0
      %3326 = vmatpush1.msra.mxu0 %v3301
      %3327 = vmatprep.subr.mxu0 0.0
      %3328 = vmatpush1.msra.mxu0 %v3302
      %3329 = vmatprep.subr.mxu0 0.0
      %3330 = vmatpush1.msra.mxu0 %v3303
      %3331 = vmatprep.subr.mxu0 0.0
      %3332 = vmatpush1.msra.mxu0 %v3304
      %3333 = vmatprep.subr.mxu0 0.0
      %3334 = vmatpush1.msra.mxu0 %v3305
      %3335 = vmatprep.subr.mxu0 0.0
      %3336 = vmatpush1.msra.mxu0 %v3306
      %3337 = vmatprep.subr.mxu0 0.0
      %3338 = vmatpush1.msra.mxu0 %v3307
      %3339 = vmatprep.subr.mxu0 0.0
      %3340 = vmatpush1.msra.mxu0 %v3308
      %3341 = vmatprep.subr.mxu0 0.0
      %3342 = vmatpush1.msra.mxu0 0.0
      %3343 = vmatprep.subr.mxu0 0.0
      %3344 = vmatpush1.msra.mxu0 0.0
      %3345 = vmatprep.subr.mxu0 0.0
      %3346 = vmatpush1.msra.mxu0 0.0
      %3347 = vmatprep.subr.mxu0 0.0
      %3348 = vmatpush1.msra.mxu0 0.0
      %3349 = vmatprep.subr.mxu0 0.0
      %3350 = vmatpush1.msra.mxu0 0.0
      %3351 = vmatprep.subr.mxu0 0.0
      %3352 = vmatpush1.msra.mxu0 0.0
      %3353 = vmatprep.subr.mxu0 0.0
      %3354 = vmatpush1.msra.mxu0 0.0
      %3355 = vmatprep.subr.mxu0 0.0
      %3356 = vmatpush1.msra.mxu0 0.0
      %3357 = vmatprep.subr.mxu0 0.0
      %3358 = vmatpush1.msra.mxu0 0.0
      %3359 = vmatprep.subr.mxu0 0.0
      %3360 = vmatpush1.msra.mxu0 0.0
      %3361 = vmatprep.subr.mxu0 0.0
      %3362 = vmatpush1.msra.mxu0 0.0
      %3363 = vmatprep.subr.mxu0 0.0
      %3364 = vmatpush1.msra.mxu0 0.0
      %3365 = vmatprep.subr.mxu0 0.0
      %3366 = vmatpush1.msra.mxu0 0.0
      %3367 = vmatprep.subr.mxu0 0.0
      %3368 = vmatpush1.msra.mxu0 0.0
      %3369 = vmatprep.subr.mxu0 0.0
      %3370 = vmatpush1.msra.mxu0 0.0
      %3371 = vmatprep.subr.mxu0 0.0
      %3372 = vmatpush1.msra.mxu0 0.0
      %3373 = vmatprep.mubr.f32.mxu0 0.0
      %3374 = vmatmul.mubr.f32.gmra.mrb[0].mxu0 %v3284
      %v3375 = vpop.f32.mrb[0].mxu0
      %v3376 = vadd.f32 0.0, %v3375
      %v3377 = vpop.f32.mrb[0].mxu0
      %3378 = vmatprep.mubr.f32.mxu0 0.0
      %3379 = vmatmul.mubr.f32.gmra.mrb[0].mxu0 %v3289
      %v3380 = vpop.f32.mrb[0].mxu0
      %v3381 = vadd.f32 0.0, %v3380
      %v3382 = vpop.f32.mrb[0].mxu0
      %3383 = vdwg.mxu0
      %v3384 = vadd.f32 %v3200, %v3376
      %v3385 = vadd.f32 %v3205, %v3381
      %v3386 = vld [vmem:[%s20] sm:$0x1]
      %v3388 = vlaneseq
      %v3389 = vshrl.u32 %v3388, 7
      %v3390 = vsub.s32 0, %v3389
      %v3391 = vrot.slane %v3386, %v3390
      %v3393 = vadd.f32 %v3384, %v3391
      %v3394 = vadd.f32 %v3385, %v3391
      %3395 = vst.msk [vmem:[%s656] sm:$0xff] %vm852, %v3393
      %3396 = vst.msk [vmem:[%s656 + $0x8] sm:$0xff] %vm852, %v3394
      %p3397 = scmp.lt.s32.totalorder %s32, 1
      %s3398 = scalar_select %p3397, %s32, 1
      %s3399 = smul.addr %s3398, 2
      %s3400 = smul.addr %s3399, 8
      %s3401 = scalar_lea.vmem %s21, %s3400
      // Predicated region
      $region105: #{conv_autoencoder_forward.1} parent=103 // pred_check
        %p3402 = pneg %p496
      $region106: #{conv_autoencoder_forward.1} parent=103 // pred_check_branch
        %3404 = sbr.rel (%p3402) target = $region108
      $region107: #{conv_autoencoder_forward.1} parent=103 // pred_region
        _
      $region108: #{conv_autoencoder_forward.1} parent=103 // pred_fallthru
        _
    $region104: #{conv_autoencoder_forward.1} parent=5 // pred_fallthru
      _
    %p3405 = scmp.le.s32.totalorder 2, %s27
    // Predicated region
    $region109: #{conv_autoencoder_forward.1} parent=5 // pred_check
      %p3406 = pneg %p3405
    $region110: #{conv_autoencoder_forward.1} parent=5 // pred_check_branch
      %3408 = sbr.rel (%p3406) target = $region112
    $region111: #{conv_autoencoder_forward.1} parent=5 // pred_region
      %s3409 = ssub.s32 %s27, 2
      // Predicated region
      $region113: #{conv_autoencoder_forward.1} parent=111 // pred_check
        %p3410 = pneg %p502
      $region114: #{conv_autoencoder_forward.1} parent=111 // pred_check_branch
        %3412 = sbr.rel (%p3410) target = $region116
      $region115: #{conv_autoencoder_forward.1} parent=111 // pred_region
        %p3413 = scmp.lt.s32.totalorder %s33, 1
        %s3414 = scalar_select %p3413, %s33, 1
        %s3415 = smul.addr %s3414, 2
        %s3416 = smul.addr %s3415, 8
        %s3417 = scalar_lea.vmem %s21, %s3416
      $region116: #{conv_autoencoder_forward.1} parent=111 // pred_fallthru
        _
    $region112: #{conv_autoencoder_forward.1} parent=5 // pred_fallthru
      _
  $region6: #{conv_autoencoder_forward.1} parent=0 // loop_footer
    %s31 = sadd.s32 1, %s27
  $region7: #{conv_autoencoder_forward.1} parent=0 // loop_footer_branch
    %26 = sbr.rel target = $region3
  $region8: #{conv_autoencoder_forward.1} parent=0 // loop_exit
    _

</llo_original>
